<compile_context>
chip_gen: v6e
topology: v6e:2x2x1
jax: 0.10.0
libtpu: 0.0.40
codegen_flags: <defaults>
</compile_context>

<pallas_src>
import math

import jax
import jax.numpy as jnp
from jax.experimental import pallas as pl
from jax.experimental.pallas import tpu as pltpu

# ---------------- small BERT config ----------------
BATCH = 2
SEQ = 8
HIDDEN = 32
NUM_HEADS = 2
HEAD_DIM = HIDDEN // NUM_HEADS
INTERMEDIATE = 64
NUM_LAYERS = 2
VOCAB = 100
NUM_LABELS = 2
LN_EPS = 1e-12

BS = BATCH * SEQ
VEC_PAD = 64                       # pad width of the packed vector slab (>= INTERMEDIATE)
ROWS_PER_LAYER = 13                # 6 qkv-head biases, bo, ln1g, ln1b, bi, bd, ln2g, ln2b
GLOBAL_BASE = NUM_LAYERS * ROWS_PER_LAYER   # emb_ln_g, emb_ln_b, pooler_b, clf_b


# ---------------- in-kernel helpers (traced) ----------------
def _layernorm(x, gamma, beta):
    mean = jnp.mean(x, axis=-1, keepdims=True)
    var = jnp.mean((x - mean) ** 2, axis=-1, keepdims=True)
    return (x - mean) * jax.lax.rsqrt(var + LN_EPS) * gamma + beta


def _gelu(x):
    # TODO(synk): tanh-approximate GELU; HF BERT default is exact erf GELU
    # (deviation ~1e-3).
    c = math.sqrt(2.0 / math.pi)
    return 0.5 * x * (1.0 + jnp.tanh(c * (x + 0.044715 * x * x * x)))


# ---------------- single fused forward kernel ----------------
def fused_bert_kernel(ids_ref, mask_ref, emb_ref,
                      wqkv_ref, wo_ref, wi_ref, wd_ref, headw_ref, vec_ref,
                      o_ref):
    def vec(row, width):
        return vec_ref[row][:, :width]          # (1, width), width offset 0 → cheap

    # --- fused embedding lookup: one-hot matmul picks word row AND the
    #     (pos + token_type) row appended at offset VOCAB + token_index ---
    col = jax.lax.broadcasted_iota(jnp.int32, (BS, VOCAB + BS), 1)
    row = jax.lax.broadcasted_iota(jnp.int32, (BS, VOCAB + BS), 0)
    ids = ids_ref[...]                           # (BS, 1) int32
    onehot = ((col == ids) | (col == (VOCAB + row))).astype(jnp.float32)
    emb = jnp.dot(onehot, emb_ref[...], preferred_element_type=jnp.float32)  # (BS, H)

    hidden = _layernorm(emb, vec(GLOBAL_BASE + 0, HIDDEN), vec(GLOBAL_BASE + 1, HIDDEN))

    # --- additive attention mask, broadcast ONCE to (B, S, S) ---
    neg = (1.0 - mask_ref[...]) * -10000.0                      # (B, S)
    add_mask = jnp.broadcast_to(neg.reshape(BATCH, 1, SEQ), (BATCH, SEQ, SEQ))

    # --- encoder layers (unrolled; all weights resident in VMEM) ---
    for l in range(NUM_LAYERS):
        base = l * ROWS_PER_LAYER
        hid16 = hidden.astype(jnp.bfloat16)
        attn_acc = jnp.zeros((BS, HIDDEN), jnp.float32)
        for h in range(NUM_HEADS):                              # tiny unrolled head loop
            # per-head projection weights are leading-axis indexed (no lane slicing)
            wq = wqkv_ref[(l * 3 + 0) * NUM_HEADS + h]          # (H, HD), 1/sqrt(d) folded
            wk = wqkv_ref[(l * 3 + 1) * NUM_HEADS + h]
            wv = wqkv_ref[(l * 3 + 2) * NUM_HEADS + h]
            q = jnp.dot(hid16, wq, preferred_element_type=jnp.float32) + vec(base + 0 * NUM_HEADS + h, HEAD_DIM)
            k = jnp.dot(hid16, wk, preferred_element_type=jnp.float32) + vec(base + 1 * NUM_HEADS + h, HEAD_DIM)
            v = jnp.dot(hid16, wv, preferred_element_type=jnp.float32) + vec(base + 2 * NUM_HEADS + h, HEAD_DIM)
            qb = q.reshape(BATCH, SEQ, HEAD_DIM)
            kb = k.reshape(BATCH, SEQ, HEAD_DIM)
            vb = v.reshape(BATCH, SEQ, HEAD_DIM)
            scores = jnp.einsum('bqd,bkd->bqk', qb, kb,
                                preferred_element_type=jnp.float32) + add_mask
            # no max-subtraction: scores are bounded (tiny logits, -1e4 mask),
            # exp never overflows in f32 (masked entries underflow to 0).
            p = jnp.exp(scores)
            p = p * pl.reciprocal(jnp.sum(p, axis=-1, keepdims=True), approx=True)
            ctx = jnp.einsum('bqk,bkd->bqd', p, vb,
                             preferred_element_type=jnp.float32).reshape(BS, HEAD_DIM)
            attn_acc = attn_acc + jnp.dot(ctx.astype(jnp.bfloat16),
                                          wo_ref[l * NUM_HEADS + h],
                                          preferred_element_type=jnp.float32)
        attn_out = attn_acc + vec(base + 6, HIDDEN)
        h1 = _layernorm(hidden + attn_out, vec(base + 7, HIDDEN), vec(base + 8, HIDDEN))

        ff = _gelu(jnp.dot(h1.astype(jnp.bfloat16), wi_ref[l],
                           preferred_element_type=jnp.float32) + vec(base + 9, INTERMEDIATE))
        ff_out = jnp.dot(ff.astype(jnp.bfloat16), wd_ref[l],
                         preferred_element_type=jnp.float32) + vec(base + 10, HIDDEN)
        # LN2 gamma/beta already carry the BlockOutputAttention scale (host fold),
        # so this IS the scaled block output feeding the next layer / pooler.
        hidden = _layernorm(h1 + ff_out, vec(base + 11, HIDDEN), vec(base + 12, HIDDEN))

    # --- pooler (tanh dense on CLS) + dropout(identity) + classifier ---
    cls = hidden.reshape(BATCH, SEQ, HIDDEN)[:, 0:1, :].reshape(BATCH, HIDDEN)
    pooled = jnp.tanh(jnp.dot(cls.astype(jnp.bfloat16), headw_ref[0],
                              preferred_element_type=jnp.float32)
                      + vec(GLOBAL_BASE + 2, HIDDEN))
    logits_full = jnp.dot(pooled.astype(jnp.bfloat16), headw_ref[1],
                          preferred_element_type=jnp.float32) + vec(GLOBAL_BASE + 3, HIDDEN)
    o_ref[...] = logits_full[:, :NUM_LABELS]


# ---------------- host-side parameter packing (done ONCE, hoisted) ----------------
def pack_params(params):
    layers = params["layers"]
    inv_sqrt_d = 1.0 / math.sqrt(HEAD_DIM)
    bw = params["block_weights"]

    def pad_row(v):
        v = jnp.asarray(v, jnp.float32).reshape(1, -1)
        return jnp.pad(v, ((0, 0), (0, VEC_PAD - v.shape[-1])))

    # embedding table: word rows + (pos + token_type_0) rows appended (one operand)
    static_emb = params["pos_emb"] + params["type_emb"][0][None, :]       # (S, H)
    emb_table = jnp.concatenate(
        [params["word_emb"], jnp.tile(static_emb, (BATCH, 1))], axis=0)   # (VOCAB+BS, H)

    wqkv_rows, wo_rows, wi_list, wd_list, vec_rows = [], [], [], [], []
    for l in range(NUM_LAYERS):
        (wq, bq, wk, bk, wv, bv, wo, bo,
         ln1g, ln1b, wi, bi, wd, bd, ln2g, ln2b) = layers[l]
        wq = wq * inv_sqrt_d                       # fold 1/sqrt(d) into Q path
        bq = bq * inv_sqrt_d
        for (w, b) in ((wq, bq), (wk, bk), (wv, bv)):
            bflat = jnp.asarray(b, jnp.float32).reshape(-1)
            for h in range(NUM_HEADS):
                sl = slice(h * HEAD_DIM, (h + 1) * HEAD_DIM)
                wqkv_rows.append(w[:, sl])         # (H, HD) per head
                vec_rows.append(pad_row(bflat[sl]))
        for h in range(NUM_HEADS):
            wo_rows.append(wo[h * HEAD_DIM:(h + 1) * HEAD_DIM, :])   # (HD, H) per head
        wi_list.append(wi)
        wd_list.append(wd)
        s = bw[l]
        # Fold BlockOutputAttention: scaled = LN2(x)*s = x_norm*(g*s) + (b*s)
        vec_rows += [pad_row(bo), pad_row(ln1g), pad_row(ln1b),
                     pad_row(bi), pad_row(bd),
                     pad_row(ln2g * s), pad_row(ln2b * s)]
    vec_rows += [pad_row(params["emb_ln_g"]), pad_row(params["emb_ln_b"]),
                 pad_row(params["pooler_b"]), pad_row(params["clf_b"])]

    clf_pad = jnp.pad(params["clf_w"], ((0, 0), (0, HIDDEN - NUM_LABELS)))
    bf = jnp.bfloat16
    return (emb_table.astype(jnp.float32),                   # (VOCAB+BS, H)
            jnp.stack(wqkv_rows, 0).astype(bf),              # (L*3*NH, H, HD)
            jnp.stack(wo_rows, 0).astype(bf),                # (L*NH, HD, H)
            jnp.stack(wi_list, 0).astype(bf),                # (L, H, I)
            jnp.stack(wd_list, 0).astype(bf),                # (L, I, H)
            jnp.stack([params["pooler_w"], clf_pad], 0).astype(bf),  # (2, H, H)
            jnp.stack(vec_rows, 0).astype(jnp.float32))      # (L*13+4, 1, 64)


# ---------------- deterministic parameter init ----------------
def init_params(key):
    def dense(k, fan_in, fan_out):
        return jax.random.normal(k, (fan_in, fan_out), jnp.float32) * 0.02

    keys = jax.random.split(key, 4 + NUM_LAYERS)
    params = {
        "word_emb": jax.random.normal(keys[0], (VOCAB, HIDDEN), jnp.float32) * 0.02,
        "pos_emb": jax.random.normal(keys[1], (SEQ, HIDDEN), jnp.float32) * 0.02,
        "type_emb": jax.random.normal(keys[2], (2, HIDDEN), jnp.float32) * 0.02,
        "emb_ln_g": jnp.ones((1, HIDDEN), jnp.float32),
        "emb_ln_b": jnp.zeros((1, HIDDEN), jnp.float32),
        # BlockOutputAttention: ones(num_blocks) / num_blocks
        "block_weights": jnp.ones((NUM_LAYERS,), jnp.float32) / NUM_LAYERS,
    }
    layers = []
    for i in range(NUM_LAYERS):
        lk = jax.random.split(keys[4 + i], 6)
        layers.append((
            dense(lk[0], HIDDEN, HIDDEN), jnp.zeros((1, HIDDEN), jnp.float32),   # Wq, bq
            dense(lk[1], HIDDEN, HIDDEN), jnp.zeros((1, HIDDEN), jnp.float32),   # Wk, bk
            dense(lk[2], HIDDEN, HIDDEN), jnp.zeros((1, HIDDEN), jnp.float32),   # Wv, bv
            dense(lk[3], HIDDEN, HIDDEN), jnp.zeros((1, HIDDEN), jnp.float32),   # Wo, bo
            jnp.ones((1, HIDDEN), jnp.float32), jnp.zeros((1, HIDDEN), jnp.float32),        # LN1
            dense(lk[4], HIDDEN, INTERMEDIATE), jnp.zeros((1, INTERMEDIATE), jnp.float32),  # Wi, bi
            dense(lk[5], INTERMEDIATE, HIDDEN), jnp.zeros((1, HIDDEN), jnp.float32),        # Wd, bd
            jnp.ones((1, HIDDEN), jnp.float32), jnp.zeros((1, HIDDEN), jnp.float32),        # LN2
        ))
    params["layers"] = layers
    pk = jax.random.split(keys[3], 2)
    params["pooler_w"] = dense(pk[0], HIDDEN, HIDDEN)
    params["pooler_b"] = jnp.zeros((1, HIDDEN), jnp.float32)
    params["clf_w"] = dense(pk[1], HIDDEN, NUM_LABELS)
    params["clf_b"] = jnp.zeros((1, NUM_LABELS), jnp.float32)
    return params


# ---------------- full forward (single pallas_call, jitted) ----------------
@jax.jit
def forward(packed, input_ids, attention_mask):
    ids = input_ids.reshape(BS, 1).astype(jnp.int32)
    maskf = attention_mask.astype(jnp.float32)               # (B, S), 1 = keep

    n_in = 2 + len(packed)
    vmem = pltpu.MemorySpace.VMEM
    return pl.pallas_call(
        fused_bert_kernel,
        out_shape=jax.ShapeDtypeStruct((BATCH, NUM_LABELS), jnp.float32),
        in_specs=[pl.BlockSpec(memory_space=vmem)] * n_in,
        out_specs=pl.BlockSpec(memory_space=vmem),
        cost_estimate=pl.CostEstimate(flops=690_000, transcendentals=3_000,
                                      bytes_accessed=60_000),
    )(ids, maskf, *packed)


if __name__ == "__main__":
    key = jax.random.PRNGKey(0)
    pkey, ikey = jax.random.split(key)
    params = init_params(pkey)

    # Hoisted, one-time weight packing (not in the per-call path).
    packed = jax.block_until_ready(pack_params(params))

    input_ids = jax.random.randint(ikey, (BATCH, SEQ), 0, VOCAB, dtype=jnp.int32)
    attention_mask = jnp.ones((BATCH, SEQ), jnp.int32)
    attention_mask = attention_mask.at[1, SEQ - 2:].set(0)    # some padding in batch 1

    logits = forward(packed, input_ids, attention_mask)
    jax.block_until_ready(logits)
    assert logits.shape == (BATCH, NUM_LABELS)
    print("KERNEL_OK")
</pallas_src>

<mosaic_0001>
module attributes {stable_mosaic.version = 11 : i64} {
  func.func @fused_bert_kernel(%arg0: memref<16x1xi32, #tpu.memory_space<vmem>>, %arg1: memref<2x8xf32, #tpu.memory_space<vmem>>, %arg2: memref<116x32xf32, #tpu.memory_space<vmem>>, %arg3: memref<12x32x16xbf16, #tpu.memory_space<vmem>>, %arg4: memref<4x16x32xbf16, #tpu.memory_space<vmem>>, %arg5: memref<2x32x64xbf16, #tpu.memory_space<vmem>>, %arg6: memref<2x64x32xbf16, #tpu.memory_space<vmem>>, %arg7: memref<2x32x32xbf16, #tpu.memory_space<vmem>>, %arg8: memref<30x1x64xf32, #tpu.memory_space<vmem>>, %arg9: memref<2x2xf32, #tpu.memory_space<vmem>>) attributes {dimension_semantics = [], scalar_prefetch = 0 : i64, scratch_operands = 0 : i64, tpu.core_type = #tpu.core_type<tc>} {
    %0 = tpu.iota {dimensions = array<i32: 1>} : vector<16x116xi32>
    %1 = tpu.iota {dimensions = array<i32: 0>} : vector<16x116xi32>
    %c0 = arith.constant 0 : index
    %c0_0 = arith.constant 0 : index
    %2 = vector.load %arg0[%c0, %c0_0] : memref<16x1xi32, #tpu.memory_space<vmem>>, vector<16x1xi32>
    %3 = vector.broadcast %2 : vector<16x1xi32> to vector<16x116xi32>
    %4 = arith.cmpi eq, %0, %3 : vector<16x116xi32>
    %c100_i32 = arith.constant 100 : i32
    %5 = vector.broadcast %c100_i32 : i32 to vector<16x116xi32>
    %6 = arith.addi %5, %1 : vector<16x116xi32>
    %7 = arith.cmpi eq, %0, %6 : vector<16x116xi32>
    %8 = arith.ori %4, %7 : vector<16x116xi1>
    %9 = arith.extui %8 : vector<16x116xi1> to vector<16x116xi32>
    %10 = arith.sitofp %9 : vector<16x116xi32> to vector<16x116xf32>
    %c0_1 = arith.constant 0 : index
    %c0_2 = arith.constant 0 : index
    %11 = vector.load %arg2[%c0_1, %c0_2] : memref<116x32xf32, #tpu.memory_space<vmem>>, vector<116x32xf32>
    %cst = arith.constant dense<0.000000e+00> : vector<16x32xf32>
    %12 = tpu.matmul %10, %11, %cst {dimension_numbers = #tpu.dot_dimension_numbers<[1], [0], [0], [1], [0, 0, 1, 1], [], []>} : vector<16x116xf32>, vector<116x32xf32>, vector<16x32xf32> -> vector<16x32xf32>
    %c26 = arith.constant 26 : index
    %c0_3 = arith.constant 0 : index
    %c0_4 = arith.constant 0 : index
    %13 = vector.load %arg8[%c26, %c0_3, %c0_4] : memref<30x1x64xf32, #tpu.memory_space<vmem>>, vector<1x1x64xf32>
    %14 = vector.shape_cast %13 : vector<1x1x64xf32> to vector<1x64xf32>
    %15 = vector.extract_strided_slice %14 {offsets = [0, 0], sizes = [1, 32], strides = [1, 1]} : vector<1x64xf32> to vector<1x32xf32>
    %c27 = arith.constant 27 : index
    %c0_5 = arith.constant 0 : index
    %c0_6 = arith.constant 0 : index
    %16 = vector.load %arg8[%c27, %c0_5, %c0_6] : memref<30x1x64xf32, #tpu.memory_space<vmem>>, vector<1x1x64xf32>
    %17 = vector.shape_cast %16 : vector<1x1x64xf32> to vector<1x64xf32>
    %18 = vector.extract_strided_slice %17 {offsets = [0, 0], sizes = [1, 32], strides = [1, 1]} : vector<1x64xf32> to vector<1x32xf32>
    %cst_7 = arith.constant dense<0.000000e+00> : vector<16xf32>
    %19 = vector.multi_reduction <add>, %12, %cst_7 [1] : vector<16x32xf32> to vector<16xf32>
    %20 = vector.shape_cast %19 : vector<16xf32> to vector<16x1xf32>
    %cst_8 = arith.constant 3.200000e+01 : f32
    %21 = vector.broadcast %cst_8 : f32 to vector<16x1xf32>
    %22 = arith.divf %20, %21 : vector<16x1xf32>
    %23 = vector.broadcast %22 : vector<16x1xf32> to vector<16x32xf32>
    %24 = arith.subf %12, %23 : vector<16x32xf32>
    %25 = arith.mulf %24, %24 : vector<16x32xf32>
    %cst_9 = arith.constant dense<0.000000e+00> : vector<16xf32>
    %26 = vector.multi_reduction <add>, %25, %cst_9 [1] : vector<16x32xf32> to vector<16xf32>
    %27 = vector.shape_cast %26 : vector<16xf32> to vector<16x1xf32>
    %cst_10 = arith.constant 3.200000e+01 : f32
    %28 = vector.broadcast %cst_10 : f32 to vector<16x1xf32>
    %29 = arith.divf %27, %28 : vector<16x1xf32>
    %30 = vector.broadcast %22 : vector<16x1xf32> to vector<16x32xf32>
    %31 = arith.subf %12, %30 : vector<16x32xf32>
    %cst_11 = arith.constant 9.99999996E-13 : f32
    %32 = vector.broadcast %cst_11 : f32 to vector<16x1xf32>
    %33 = arith.addf %29, %32 : vector<16x1xf32>
    %34 = math.rsqrt %33 : vector<16x1xf32>
    %35 = vector.broadcast %34 : vector<16x1xf32> to vector<16x32xf32>
    %36 = arith.mulf %31, %35 : vector<16x32xf32>
    %37 = vector.broadcast %15 : vector<1x32xf32> to vector<16x32xf32>
    %38 = arith.mulf %36, %37 : vector<16x32xf32>
    %39 = vector.broadcast %18 : vector<1x32xf32> to vector<16x32xf32>
    %40 = arith.addf %38, %39 : vector<16x32xf32>
    %c0_12 = arith.constant 0 : index
    %c0_13 = arith.constant 0 : index
    %41 = vector.load %arg1[%c0_12, %c0_13] : memref<2x8xf32, #tpu.memory_space<vmem>>, vector<2x8xf32>
    %cst_14 = arith.constant 1.000000e+00 : f32
    %42 = vector.broadcast %cst_14 : f32 to vector<2x8xf32>
    %43 = arith.subf %42, %41 : vector<2x8xf32>
    %cst_15 = arith.constant -1.000000e+04 : f32
    %44 = vector.broadcast %cst_15 : f32 to vector<2x8xf32>
    %45 = arith.mulf %43, %44 : vector<2x8xf32>
    %46 = vector.shape_cast %45 : vector<2x8xf32> to vector<2x1x8xf32>
    %47 = vector.shape_cast %46 : vector<2x1x8xf32> to vector<2x1x8xf32>
    %48 = vector.broadcast %47 : vector<2x1x8xf32> to vector<2x8x8xf32>
    %49 = arith.truncf %40 : vector<16x32xf32> to vector<16x32xbf16>
    %cst_16 = arith.constant 0.000000e+00 : f32
    %50 = vector.broadcast %cst_16 : f32 to vector<16x32xf32>
    %c0_17 = arith.constant 0 : index
    %c0_18 = arith.constant 0 : index
    %c0_19 = arith.constant 0 : index
    %51 = vector.load %arg3[%c0_17, %c0_18, %c0_19] : memref<12x32x16xbf16, #tpu.memory_space<vmem>>, vector<1x32x16xbf16>
    %52 = vector.shape_cast %51 : vector<1x32x16xbf16> to vector<32x16xbf16>
    %c2 = arith.constant 2 : index
    %c0_20 = arith.constant 0 : index
    %c0_21 = arith.constant 0 : index
    %53 = vector.load %arg3[%c2, %c0_20, %c0_21] : memref<12x32x16xbf16, #tpu.memory_space<vmem>>, vector<1x32x16xbf16>
    %54 = vector.shape_cast %53 : vector<1x32x16xbf16> to vector<32x16xbf16>
    %c4 = arith.constant 4 : index
    %c0_22 = arith.constant 0 : index
    %c0_23 = arith.constant 0 : index
    %55 = vector.load %arg3[%c4, %c0_22, %c0_23] : memref<12x32x16xbf16, #tpu.memory_space<vmem>>, vector<1x32x16xbf16>
    %56 = vector.shape_cast %55 : vector<1x32x16xbf16> to vector<32x16xbf16>
    %cst_24 = arith.constant dense<0.000000e+00> : vector<16x16xf32>
    %57 = tpu.matmul %49, %52, %cst_24 {dimension_numbers = #tpu.dot_dimension_numbers<[1], [0], [0], [1], [0, 0, 1, 1], [], []>} : vector<16x32xbf16>, vector<32x16xbf16>, vector<16x16xf32> -> vector<16x16xf32>
    %c0_25 = arith.constant 0 : index
    %c0_26 = arith.constant 0 : index
    %c0_27 = arith.constant 0 : index
    %58 = vector.load %arg8[%c0_25, %c0_26, %c0_27] : memref<30x1x64xf32, #tpu.memory_space<vmem>>, vector<1x1x64xf32>
    %59 = vector.shape_cast %58 : vector<1x1x64xf32> to vector<1x64xf32>
    %60 = vector.extract_strided_slice %59 {offsets = [0, 0], sizes = [1, 16], strides = [1, 1]} : vector<1x64xf32> to vector<1x16xf32>
    %61 = vector.broadcast %60 : vector<1x16xf32> to vector<16x16xf32>
    %62 = arith.addf %57, %61 : vector<16x16xf32>
    %cst_28 = arith.constant dense<0.000000e+00> : vector<16x16xf32>
    %63 = tpu.matmul %49, %54, %cst_28 {dimension_numbers = #tpu.dot_dimension_numbers<[1], [0], [0], [1], [0, 0, 1, 1], [], []>} : vector<16x32xbf16>, vector<32x16xbf16>, vector<16x16xf32> -> vector<16x16xf32>
    %c2_29 = arith.constant 2 : index
    %c0_30 = arith.constant 0 : index
    %c0_31 = arith.constant 0 : index
    %64 = vector.load %arg8[%c2_29, %c0_30, %c0_31] : memref<30x1x64xf32, #tpu.memory_space<vmem>>, vector<1x1x64xf32>
    %65 = vector.shape_cast %64 : vector<1x1x64xf32> to vector<1x64xf32>
    %66 = vector.extract_strided_slice %65 {offsets = [0, 0], sizes = [1, 16], strides = [1, 1]} : vector<1x64xf32> to vector<1x16xf32>
    %67 = vector.broadcast %66 : vector<1x16xf32> to vector<16x16xf32>
    %68 = arith.addf %63, %67 : vector<16x16xf32>
    %cst_32 = arith.constant dense<0.000000e+00> : vector<16x16xf32>
    %69 = tpu.matmul %49, %56, %cst_32 {dimension_numbers = #tpu.dot_dimension_numbers<[1], [0], [0], [1], [0, 0, 1, 1], [], []>} : vector<16x32xbf16>, vector<32x16xbf16>, vector<16x16xf32> -> vector<16x16xf32>
    %c4_33 = arith.constant 4 : index
    %c0_34 = arith.constant 0 : index
    %c0_35 = arith.constant 0 : index
    %70 = vector.load %arg8[%c4_33, %c0_34, %c0_35] : memref<30x1x64xf32, #tpu.memory_space<vmem>>, vector<1x1x64xf32>
    %71 = vector.shape_cast %70 : vector<1x1x64xf32> to vector<1x64xf32>
    %72 = vector.extract_strided_slice %71 {offsets = [0, 0], sizes = [1, 16], strides = [1, 1]} : vector<1x64xf32> to vector<1x16xf32>
    %73 = vector.broadcast %72 : vector<1x16xf32> to vector<16x16xf32>
    %74 = arith.addf %69, %73 : vector<16x16xf32>
    %75 = vector.shape_cast %62 : vector<16x16xf32> to vector<2x8x16xf32>
    %76 = vector.shape_cast %68 : vector<16x16xf32> to vector<2x8x16xf32>
    %77 = vector.shape_cast %74 : vector<16x16xf32> to vector<2x8x16xf32>
    "tpu.trace_start"() <{level = 10 : i32, message = "bqd,bkd->bqk"}> : () -> ()
    %cst_36 = arith.constant dense<0.000000e+00> : vector<2x8x8xf32>
    %78 = tpu.matmul %75, %76, %cst_36 {dimension_numbers = #tpu.dot_dimension_numbers<[2], [2], [1], [1], [0, 0, 0, 1, 1, 1], [0], [0]>} : vector<2x8x16xf32>, vector<2x8x16xf32>, vector<2x8x8xf32> -> vector<2x8x8xf32>
    "tpu.trace_stop"() : () -> ()
    %79 = arith.addf %78, %48 : vector<2x8x8xf32>
    %80 = math.exp %79 : vector<2x8x8xf32>
    %cst_37 = arith.constant dense<0.000000e+00> : vector<2x8xf32>
    %81 = vector.multi_reduction <add>, %80, %cst_37 [2] : vector<2x8x8xf32> to vector<2x8xf32>
    %82 = vector.shape_cast %81 : vector<2x8xf32> to vector<2x8x1xf32>
    %83 = tpu.reciprocal %82 {approx = true} : vector<2x8x1xf32> -> vector<2x8x1xf32>
    %84 = vector.broadcast %83 : vector<2x8x1xf32> to vector<2x8x8xf32>
    %85 = arith.mulf %80, %84 : vector<2x8x8xf32>
    "tpu.trace_start"() <{level = 10 : i32, message = "bqk,bkd->bqd"}> : () -> ()
    %cst_38 = arith.constant dense<0.000000e+00> : vector<2x8x16xf32>
    %86 = tpu.matmul %85, %77, %cst_38 {dimension_numbers = #tpu.dot_dimension_numbers<[2], [1], [1], [2], [0, 0, 0, 1, 1, 2], [0], [0]>} : vector<2x8x8xf32>, vector<2x8x16xf32>, vector<2x8x16xf32> -> vector<2x8x16xf32>
    "tpu.trace_stop"() : () -> ()
    %87 = vector.shape_cast %86 : vector<2x8x16xf32> to vector<16x16xf32>
    %88 = arith.truncf %87 : vector<16x16xf32> to vector<16x16xbf16>
    %c0_39 = arith.constant 0 : index
    %c0_40 = arith.constant 0 : index
    %c0_41 = arith.constant 0 : index
    %89 = vector.load %arg4[%c0_39, %c0_40, %c0_41] : memref<4x16x32xbf16, #tpu.memory_space<vmem>>, vector<1x16x32xbf16>
    %90 = vector.shape_cast %89 : vector<1x16x32xbf16> to vector<16x32xbf16>
    %cst_42 = arith.constant dense<0.000000e+00> : vector<16x32xf32>
    %91 = tpu.matmul %88, %90, %cst_42 {dimension_numbers = #tpu.dot_dimension_numbers<[1], [0], [0], [1], [0, 0, 1, 1], [], []>} : vector<16x16xbf16>, vector<16x32xbf16>, vector<16x32xf32> -> vector<16x32xf32>
    %92 = arith.addf %50, %91 : vector<16x32xf32>
    %c1 = arith.constant 1 : index
    %c0_43 = arith.constant 0 : index
    %c0_44 = arith.constant 0 : index
    %93 = vector.load %arg3[%c1, %c0_43, %c0_44] : memref<12x32x16xbf16, #tpu.memory_space<vmem>>, vector<1x32x16xbf16>
    %94 = vector.shape_cast %93 : vector<1x32x16xbf16> to vector<32x16xbf16>
    %c3 = arith.constant 3 : index
    %c0_45 = arith.constant 0 : index
    %c0_46 = arith.constant 0 : index
    %95 = vector.load %arg3[%c3, %c0_45, %c0_46] : memref<12x32x16xbf16, #tpu.memory_space<vmem>>, vector<1x32x16xbf16>
    %96 = vector.shape_cast %95 : vector<1x32x16xbf16> to vector<32x16xbf16>
    %c5 = arith.constant 5 : index
    %c0_47 = arith.constant 0 : index
    %c0_48 = arith.constant 0 : index
    %97 = vector.load %arg3[%c5, %c0_47, %c0_48] : memref<12x32x16xbf16, #tpu.memory_space<vmem>>, vector<1x32x16xbf16>
    %98 = vector.shape_cast %97 : vector<1x32x16xbf16> to vector<32x16xbf16>
    %cst_49 = arith.constant dense<0.000000e+00> : vector<16x16xf32>
    %99 = tpu.matmul %49, %94, %cst_49 {dimension_numbers = #tpu.dot_dimension_numbers<[1], [0], [0], [1], [0, 0, 1, 1], [], []>} : vector<16x32xbf16>, vector<32x16xbf16>, vector<16x16xf32> -> vector<16x16xf32>
    %c1_50 = arith.constant 1 : index
    %c0_51 = arith.constant 0 : index
    %c0_52 = arith.constant 0 : index
    %100 = vector.load %arg8[%c1_50, %c0_51, %c0_52] : memref<30x1x64xf32, #tpu.memory_space<vmem>>, vector<1x1x64xf32>
    %101 = vector.shape_cast %100 : vector<1x1x64xf32> to vector<1x64xf32>
    %102 = vector.extract_strided_slice %101 {offsets = [0, 0], sizes = [1, 16], strides = [1, 1]} : vector<1x64xf32> to vector<1x16xf32>
    %103 = vector.broadcast %102 : vector<1x16xf32> to vector<16x16xf32>
    %104 = arith.addf %99, %103 : vector<16x16xf32>
    %cst_53 = arith.constant dense<0.000000e+00> : vector<16x16xf32>
    %105 = tpu.matmul %49, %96, %cst_53 {dimension_numbers = #tpu.dot_dimension_numbers<[1], [0], [0], [1], [0, 0, 1, 1], [], []>} : vector<16x32xbf16>, vector<32x16xbf16>, vector<16x16xf32> -> vector<16x16xf32>
    %c3_54 = arith.constant 3 : index
    %c0_55 = arith.constant 0 : index
    %c0_56 = arith.constant 0 : index
    %106 = vector.load %arg8[%c3_54, %c0_55, %c0_56] : memref<30x1x64xf32, #tpu.memory_space<vmem>>, vector<1x1x64xf32>
    %107 = vector.shape_cast %106 : vector<1x1x64xf32> to vector<1x64xf32>
    %108 = vector.extract_strided_slice %107 {offsets = [0, 0], sizes = [1, 16], strides = [1, 1]} : vector<1x64xf32> to vector<1x16xf32>
    %109 = vector.broadcast %108 : vector<1x16xf32> to vector<16x16xf32>
    %110 = arith.addf %105, %109 : vector<16x16xf32>
    %cst_57 = arith.constant dense<0.000000e+00> : vector<16x16xf32>
    %111 = tpu.matmul %49, %98, %cst_57 {dimension_numbers = #tpu.dot_dimension_numbers<[1], [0], [0], [1], [0, 0, 1, 1], [], []>} : vector<16x32xbf16>, vector<32x16xbf16>, vector<16x16xf32> -> vector<16x16xf32>
    %c5_58 = arith.constant 5 : index
    %c0_59 = arith.constant 0 : index
    %c0_60 = arith.constant 0 : index
    %112 = vector.load %arg8[%c5_58, %c0_59, %c0_60] : memref<30x1x64xf32, #tpu.memory_space<vmem>>, vector<1x1x64xf32>
    %113 = vector.shape_cast %112 : vector<1x1x64xf32> to vector<1x64xf32>
    %114 = vector.extract_strided_slice %113 {offsets = [0, 0], sizes = [1, 16], strides = [1, 1]} : vector<1x64xf32> to vector<1x16xf32>
    %115 = vector.broadcast %114 : vector<1x16xf32> to vector<16x16xf32>
    %116 = arith.addf %111, %115 : vector<16x16xf32>
    %117 = vector.shape_cast %104 : vector<16x16xf32> to vector<2x8x16xf32>
    %118 = vector.shape_cast %110 : vector<16x16xf32> to vector<2x8x16xf32>
    %119 = vector.shape_cast %116 : vector<16x16xf32> to vector<2x8x16xf32>
    "tpu.trace_start"() <{level = 10 : i32, message = "bqd,bkd->bqk"}> : () -> ()
    %cst_61 = arith.constant dense<0.000000e+00> : vector<2x8x8xf32>
    %120 = tpu.matmul %117, %118, %cst_61 {dimension_numbers = #tpu.dot_dimension_numbers<[2], [2], [1], [1], [0, 0, 0, 1, 1, 1], [0], [0]>} : vector<2x8x16xf32>, vector<2x8x16xf32>, vector<2x8x8xf32> -> vector<2x8x8xf32>
    "tpu.trace_stop"() : () -> ()
    %121 = arith.addf %120, %48 : vector<2x8x8xf32>
    %122 = math.exp %121 : vector<2x8x8xf32>
    %cst_62 = arith.constant dense<0.000000e+00> : vector<2x8xf32>
    %123 = vector.multi_reduction <add>, %122, %cst_62 [2] : vector<2x8x8xf32> to vector<2x8xf32>
    %124 = vector.shape_cast %123 : vector<2x8xf32> to vector<2x8x1xf32>
    %125 = tpu.reciprocal %124 {approx = true} : vector<2x8x1xf32> -> vector<2x8x1xf32>
    %126 = vector.broadcast %125 : vector<2x8x1xf32> to vector<2x8x8xf32>
    %127 = arith.mulf %122, %126 : vector<2x8x8xf32>
    "tpu.trace_start"() <{level = 10 : i32, message = "bqk,bkd->bqd"}> : () -> ()
    %cst_63 = arith.constant dense<0.000000e+00> : vector<2x8x16xf32>
    %128 = tpu.matmul %127, %119, %cst_63 {dimension_numbers = #tpu.dot_dimension_numbers<[2], [1], [1], [2], [0, 0, 0, 1, 1, 2], [0], [0]>} : vector<2x8x8xf32>, vector<2x8x16xf32>, vector<2x8x16xf32> -> vector<2x8x16xf32>
    "tpu.trace_stop"() : () -> ()
    %129 = vector.shape_cast %128 : vector<2x8x16xf32> to vector<16x16xf32>
    %130 = arith.truncf %129 : vector<16x16xf32> to vector<16x16xbf16>
    %c1_64 = arith.constant 1 : index
    %c0_65 = arith.constant 0 : index
    %c0_66 = arith.constant 0 : index
    %131 = vector.load %arg4[%c1_64, %c0_65, %c0_66] : memref<4x16x32xbf16, #tpu.memory_space<vmem>>, vector<1x16x32xbf16>
    %132 = vector.shape_cast %131 : vector<1x16x32xbf16> to vector<16x32xbf16>
    %cst_67 = arith.constant dense<0.000000e+00> : vector<16x32xf32>
    %133 = tpu.matmul %130, %132, %cst_67 {dimension_numbers = #tpu.dot_dimension_numbers<[1], [0], [0], [1], [0, 0, 1, 1], [], []>} : vector<16x16xbf16>, vector<16x32xbf16>, vector<16x32xf32> -> vector<16x32xf32>
    %134 = arith.addf %92, %133 : vector<16x32xf32>
    %c6 = arith.constant 6 : index
    %c0_68 = arith.constant 0 : index
    %c0_69 = arith.constant 0 : index
    %135 = vector.load %arg8[%c6, %c0_68, %c0_69] : memref<30x1x64xf32, #tpu.memory_space<vmem>>, vector<1x1x64xf32>
    %136 = vector.shape_cast %135 : vector<1x1x64xf32> to vector<1x64xf32>
    %137 = vector.extract_strided_slice %136 {offsets = [0, 0], sizes = [1, 32], strides = [1, 1]} : vector<1x64xf32> to vector<1x32xf32>
    %138 = vector.broadcast %137 : vector<1x32xf32> to vector<16x32xf32>
    %139 = arith.addf %134, %138 : vector<16x32xf32>
    %140 = arith.addf %40, %139 : vector<16x32xf32>
    %c7 = arith.constant 7 : index
    %c0_70 = arith.constant 0 : index
    %c0_71 = arith.constant 0 : index
    %141 = vector.load %arg8[%c7, %c0_70, %c0_71] : memref<30x1x64xf32, #tpu.memory_space<vmem>>, vector<1x1x64xf32>
    %142 = vector.shape_cast %141 : vector<1x1x64xf32> to vector<1x64xf32>
    %143 = vector.extract_strided_slice %142 {offsets = [0, 0], sizes = [1, 32], strides = [1, 1]} : vector<1x64xf32> to vector<1x32xf32>
    %c8 = arith.constant 8 : index
    %c0_72 = arith.constant 0 : index
    %c0_73 = arith.constant 0 : index
    %144 = vector.load %arg8[%c8, %c0_72, %c0_73] : memref<30x1x64xf32, #tpu.memory_space<vmem>>, vector<1x1x64xf32>
    %145 = vector.shape_cast %144 : vector<1x1x64xf32> to vector<1x64xf32>
    %146 = vector.extract_strided_slice %145 {offsets = [0, 0], sizes = [1, 32], strides = [1, 1]} : vector<1x64xf32> to vector<1x32xf32>
    %cst_74 = arith.constant dense<0.000000e+00> : vector<16xf32>
    %147 = vector.multi_reduction <add>, %140, %cst_74 [1] : vector<16x32xf32> to vector<16xf32>
    %148 = vector.shape_cast %147 : vector<16xf32> to vector<16x1xf32>
    %cst_75 = arith.constant 3.200000e+01 : f32
    %149 = vector.broadcast %cst_75 : f32 to vector<16x1xf32>
    %150 = arith.divf %148, %149 : vector<16x1xf32>
    %151 = vector.broadcast %150 : vector<16x1xf32> to vector<16x32xf32>
    %152 = arith.subf %140, %151 : vector<16x32xf32>
    %153 = arith.mulf %152, %152 : vector<16x32xf32>
    %cst_76 = arith.constant dense<0.000000e+00> : vector<16xf32>
    %154 = vector.multi_reduction <add>, %153, %cst_76 [1] : vector<16x32xf32> to vector<16xf32>
    %155 = vector.shape_cast %154 : vector<16xf32> to vector<16x1xf32>
    %cst_77 = arith.constant 3.200000e+01 : f32
    %156 = vector.broadcast %cst_77 : f32 to vector<16x1xf32>
    %157 = arith.divf %155, %156 : vector<16x1xf32>
    %158 = vector.broadcast %150 : vector<16x1xf32> to vector<16x32xf32>
    %159 = arith.subf %140, %158 : vector<16x32xf32>
    %cst_78 = arith.constant 9.99999996E-13 : f32
    %160 = vector.broadcast %cst_78 : f32 to vector<16x1xf32>
    %161 = arith.addf %157, %160 : vector<16x1xf32>
    %162 = math.rsqrt %161 : vector<16x1xf32>
    %163 = vector.broadcast %162 : vector<16x1xf32> to vector<16x32xf32>
    %164 = arith.mulf %159, %163 : vector<16x32xf32>
    %165 = vector.broadcast %143 : vector<1x32xf32> to vector<16x32xf32>
    %166 = arith.mulf %164, %165 : vector<16x32xf32>
    %167 = vector.broadcast %146 : vector<1x32xf32> to vector<16x32xf32>
    %168 = arith.addf %166, %167 : vector<16x32xf32>
    %169 = arith.truncf %168 : vector<16x32xf32> to vector<16x32xbf16>
    %c0_79 = arith.constant 0 : index
    %c0_80 = arith.constant 0 : index
    %c0_81 = arith.constant 0 : index
    %170 = vector.load %arg5[%c0_79, %c0_80, %c0_81] : memref<2x32x64xbf16, #tpu.memory_space<vmem>>, vector<1x32x64xbf16>
    %171 = vector.shape_cast %170 : vector<1x32x64xbf16> to vector<32x64xbf16>
    %cst_82 = arith.constant dense<0.000000e+00> : vector<16x64xf32>
    %172 = tpu.matmul %169, %171, %cst_82 {dimension_numbers = #tpu.dot_dimension_numbers<[1], [0], [0], [1], [0, 0, 1, 1], [], []>} : vector<16x32xbf16>, vector<32x64xbf16>, vector<16x64xf32> -> vector<16x64xf32>
    %c9 = arith.constant 9 : index
    %c0_83 = arith.constant 0 : index
    %c0_84 = arith.constant 0 : index
    %173 = vector.load %arg8[%c9, %c0_83, %c0_84] : memref<30x1x64xf32, #tpu.memory_space<vmem>>, vector<1x1x64xf32>
    %174 = vector.shape_cast %173 : vector<1x1x64xf32> to vector<1x64xf32>
    %175 = vector.broadcast %174 : vector<1x64xf32> to vector<16x64xf32>
    %176 = arith.addf %172, %175 : vector<16x64xf32>
    %cst_85 = arith.constant 5.000000e-01 : f32
    %177 = vector.broadcast %cst_85 : f32 to vector<16x64xf32>
    %178 = arith.mulf %177, %176 : vector<16x64xf32>
    %cst_86 = arith.constant 4.471500e-02 : f32
    %179 = vector.broadcast %cst_86 : f32 to vector<16x64xf32>
    %180 = arith.mulf %179, %176 : vector<16x64xf32>
    %181 = arith.mulf %180, %176 : vector<16x64xf32>
    %182 = arith.mulf %181, %176 : vector<16x64xf32>
    %183 = arith.addf %176, %182 : vector<16x64xf32>
    %cst_87 = arith.constant 0.797884583 : f32
    %184 = vector.broadcast %cst_87 : f32 to vector<16x64xf32>
    %185 = arith.mulf %184, %183 : vector<16x64xf32>
    %186 = math.tanh %185 : vector<16x64xf32>
    %cst_88 = arith.constant 1.000000e+00 : f32
    %187 = vector.broadcast %cst_88 : f32 to vector<16x64xf32>
    %188 = arith.addf %187, %186 : vector<16x64xf32>
    %189 = arith.mulf %178, %188 : vector<16x64xf32>
    %190 = arith.truncf %189 : vector<16x64xf32> to vector<16x64xbf16>
    %c0_89 = arith.constant 0 : index
    %c0_90 = arith.constant 0 : index
    %c0_91 = arith.constant 0 : index
    %191 = vector.load %arg6[%c0_89, %c0_90, %c0_91] : memref<2x64x32xbf16, #tpu.memory_space<vmem>>, vector<1x64x32xbf16>
    %192 = vector.shape_cast %191 : vector<1x64x32xbf16> to vector<64x32xbf16>
    %cst_92 = arith.constant dense<0.000000e+00> : vector<16x32xf32>
    %193 = tpu.matmul %190, %192, %cst_92 {dimension_numbers = #tpu.dot_dimension_numbers<[1], [0], [0], [1], [0, 0, 1, 1], [], []>} : vector<16x64xbf16>, vector<64x32xbf16>, vector<16x32xf32> -> vector<16x32xf32>
    %c10 = arith.constant 10 : index
    %c0_93 = arith.constant 0 : index
    %c0_94 = arith.constant 0 : index
    %194 = vector.load %arg8[%c10, %c0_93, %c0_94] : memref<30x1x64xf32, #tpu.memory_space<vmem>>, vector<1x1x64xf32>
    %195 = vector.shape_cast %194 : vector<1x1x64xf32> to vector<1x64xf32>
    %196 = vector.extract_strided_slice %195 {offsets = [0, 0], sizes = [1, 32], strides = [1, 1]} : vector<1x64xf32> to vector<1x32xf32>
    %197 = vector.broadcast %196 : vector<1x32xf32> to vector<16x32xf32>
    %198 = arith.addf %193, %197 : vector<16x32xf32>
    %199 = arith.addf %168, %198 : vector<16x32xf32>
    %c11 = arith.constant 11 : index
    %c0_95 = arith.constant 0 : index
    %c0_96 = arith.constant 0 : index
    %200 = vector.load %arg8[%c11, %c0_95, %c0_96] : memref<30x1x64xf32, #tpu.memory_space<vmem>>, vector<1x1x64xf32>
    %201 = vector.shape_cast %200 : vector<1x1x64xf32> to vector<1x64xf32>
    %202 = vector.extract_strided_slice %201 {offsets = [0, 0], sizes = [1, 32], strides = [1, 1]} : vector<1x64xf32> to vector<1x32xf32>
    %c12 = arith.constant 12 : index
    %c0_97 = arith.constant 0 : index
    %c0_98 = arith.constant 0 : index
    %203 = vector.load %arg8[%c12, %c0_97, %c0_98] : memref<30x1x64xf32, #tpu.memory_space<vmem>>, vector<1x1x64xf32>
    %204 = vector.shape_cast %203 : vector<1x1x64xf32> to vector<1x64xf32>
    %205 = vector.extract_strided_slice %204 {offsets = [0, 0], sizes = [1, 32], strides = [1, 1]} : vector<1x64xf32> to vector<1x32xf32>
    %cst_99 = arith.constant dense<0.000000e+00> : vector<16xf32>
    %206 = vector.multi_reduction <add>, %199, %cst_99 [1] : vector<16x32xf32> to vector<16xf32>
    %207 = vector.shape_cast %206 : vector<16xf32> to vector<16x1xf32>
    %cst_100 = arith.constant 3.200000e+01 : f32
    %208 = vector.broadcast %cst_100 : f32 to vector<16x1xf32>
    %209 = arith.divf %207, %208 : vector<16x1xf32>
    %210 = vector.broadcast %209 : vector<16x1xf32> to vector<16x32xf32>
    %211 = arith.subf %199, %210 : vector<16x32xf32>
    %212 = arith.mulf %211, %211 : vector<16x32xf32>
    %cst_101 = arith.constant dense<0.000000e+00> : vector<16xf32>
    %213 = vector.multi_reduction <add>, %212, %cst_101 [1] : vector<16x32xf32> to vector<16xf32>
    %214 = vector.shape_cast %213 : vector<16xf32> to vector<16x1xf32>
    %cst_102 = arith.constant 3.200000e+01 : f32
    %215 = vector.broadcast %cst_102 : f32 to vector<16x1xf32>
    %216 = arith.divf %214, %215 : vector<16x1xf32>
    %217 = vector.broadcast %209 : vector<16x1xf32> to vector<16x32xf32>
    %218 = arith.subf %199, %217 : vector<16x32xf32>
    %cst_103 = arith.constant 9.99999996E-13 : f32
    %219 = vector.broadcast %cst_103 : f32 to vector<16x1xf32>
    %220 = arith.addf %216, %219 : vector<16x1xf32>
    %221 = math.rsqrt %220 : vector<16x1xf32>
    %222 = vector.broadcast %221 : vector<16x1xf32> to vector<16x32xf32>
    %223 = arith.mulf %218, %222 : vector<16x32xf32>
    %224 = vector.broadcast %202 : vector<1x32xf32> to vector<16x32xf32>
    %225 = arith.mulf %223, %224 : vector<16x32xf32>
    %226 = vector.broadcast %205 : vector<1x32xf32> to vector<16x32xf32>
    %227 = arith.addf %225, %226 : vector<16x32xf32>
    %228 = arith.truncf %227 : vector<16x32xf32> to vector<16x32xbf16>
    %cst_104 = arith.constant 0.000000e+00 : f32
    %229 = vector.broadcast %cst_104 : f32 to vector<16x32xf32>
    %c6_105 = arith.constant 6 : index
    %c0_106 = arith.constant 0 : index
    %c0_107 = arith.constant 0 : index
    %230 = vector.load %arg3[%c6_105, %c0_106, %c0_107] : memref<12x32x16xbf16, #tpu.memory_space<vmem>>, vector<1x32x16xbf16>
    %231 = vector.shape_cast %230 : vector<1x32x16xbf16> to vector<32x16xbf16>
    %c8_108 = arith.constant 8 : index
    %c0_109 = arith.constant 0 : index
    %c0_110 = arith.constant 0 : index
    %232 = vector.load %arg3[%c8_108, %c0_109, %c0_110] : memref<12x32x16xbf16, #tpu.memory_space<vmem>>, vector<1x32x16xbf16>
    %233 = vector.shape_cast %232 : vector<1x32x16xbf16> to vector<32x16xbf16>
    %c10_111 = arith.constant 10 : index
    %c0_112 = arith.constant 0 : index
    %c0_113 = arith.constant 0 : index
    %234 = vector.load %arg3[%c10_111, %c0_112, %c0_113] : memref<12x32x16xbf16, #tpu.memory_space<vmem>>, vector<1x32x16xbf16>
    %235 = vector.shape_cast %234 : vector<1x32x16xbf16> to vector<32x16xbf16>
    %cst_114 = arith.constant dense<0.000000e+00> : vector<16x16xf32>
    %236 = tpu.matmul %228, %231, %cst_114 {dimension_numbers = #tpu.dot_dimension_numbers<[1], [0], [0], [1], [0, 0, 1, 1], [], []>} : vector<16x32xbf16>, vector<32x16xbf16>, vector<16x16xf32> -> vector<16x16xf32>
    %c13 = arith.constant 13 : index
    %c0_115 = arith.constant 0 : index
    %c0_116 = arith.constant 0 : index
    %237 = vector.load %arg8[%c13, %c0_115, %c0_116] : memref<30x1x64xf32, #tpu.memory_space<vmem>>, vector<1x1x64xf32>
    %238 = vector.shape_cast %237 : vector<1x1x64xf32> to vector<1x64xf32>
    %239 = vector.extract_strided_slice %238 {offsets = [0, 0], sizes = [1, 16], strides = [1, 1]} : vector<1x64xf32> to vector<1x16xf32>
    %240 = vector.broadcast %239 : vector<1x16xf32> to vector<16x16xf32>
    %241 = arith.addf %236, %240 : vector<16x16xf32>
    %cst_117 = arith.constant dense<0.000000e+00> : vector<16x16xf32>
    %242 = tpu.matmul %228, %233, %cst_117 {dimension_numbers = #tpu.dot_dimension_numbers<[1], [0], [0], [1], [0, 0, 1, 1], [], []>} : vector<16x32xbf16>, vector<32x16xbf16>, vector<16x16xf32> -> vector<16x16xf32>
    %c15 = arith.constant 15 : index
    %c0_118 = arith.constant 0 : index
    %c0_119 = arith.constant 0 : index
    %243 = vector.load %arg8[%c15, %c0_118, %c0_119] : memref<30x1x64xf32, #tpu.memory_space<vmem>>, vector<1x1x64xf32>
    %244 = vector.shape_cast %243 : vector<1x1x64xf32> to vector<1x64xf32>
    %245 = vector.extract_strided_slice %244 {offsets = [0, 0], sizes = [1, 16], strides = [1, 1]} : vector<1x64xf32> to vector<1x16xf32>
    %246 = vector.broadcast %245 : vector<1x16xf32> to vector<16x16xf32>
    %247 = arith.addf %242, %246 : vector<16x16xf32>
    %cst_120 = arith.constant dense<0.000000e+00> : vector<16x16xf32>
    %248 = tpu.matmul %228, %235, %cst_120 {dimension_numbers = #tpu.dot_dimension_numbers<[1], [0], [0], [1], [0, 0, 1, 1], [], []>} : vector<16x32xbf16>, vector<32x16xbf16>, vector<16x16xf32> -> vector<16x16xf32>
    %c17 = arith.constant 17 : index
    %c0_121 = arith.constant 0 : index
    %c0_122 = arith.constant 0 : index
    %249 = vector.load %arg8[%c17, %c0_121, %c0_122] : memref<30x1x64xf32, #tpu.memory_space<vmem>>, vector<1x1x64xf32>
    %250 = vector.shape_cast %249 : vector<1x1x64xf32> to vector<1x64xf32>
    %251 = vector.extract_strided_slice %250 {offsets = [0, 0], sizes = [1, 16], strides = [1, 1]} : vector<1x64xf32> to vector<1x16xf32>
    %252 = vector.broadcast %251 : vector<1x16xf32> to vector<16x16xf32>
    %253 = arith.addf %248, %252 : vector<16x16xf32>
    %254 = vector.shape_cast %241 : vector<16x16xf32> to vector<2x8x16xf32>
    %255 = vector.shape_cast %247 : vector<16x16xf32> to vector<2x8x16xf32>
    %256 = vector.shape_cast %253 : vector<16x16xf32> to vector<2x8x16xf32>
    "tpu.trace_start"() <{level = 10 : i32, message = "bqd,bkd->bqk"}> : () -> ()
    %cst_123 = arith.constant dense<0.000000e+00> : vector<2x8x8xf32>
    %257 = tpu.matmul %254, %255, %cst_123 {dimension_numbers = #tpu.dot_dimension_numbers<[2], [2], [1], [1], [0, 0, 0, 1, 1, 1], [0], [0]>} : vector<2x8x16xf32>, vector<2x8x16xf32>, vector<2x8x8xf32> -> vector<2x8x8xf32>
    "tpu.trace_stop"() : () -> ()
    %258 = arith.addf %257, %48 : vector<2x8x8xf32>
    %259 = math.exp %258 : vector<2x8x8xf32>
    %cst_124 = arith.constant dense<0.000000e+00> : vector<2x8xf32>
    %260 = vector.multi_reduction <add>, %259, %cst_124 [2] : vector<2x8x8xf32> to vector<2x8xf32>
    %261 = vector.shape_cast %260 : vector<2x8xf32> to vector<2x8x1xf32>
    %262 = tpu.reciprocal %261 {approx = true} : vector<2x8x1xf32> -> vector<2x8x1xf32>
    %263 = vector.broadcast %262 : vector<2x8x1xf32> to vector<2x8x8xf32>
    %264 = arith.mulf %259, %263 : vector<2x8x8xf32>
    "tpu.trace_start"() <{level = 10 : i32, message = "bqk,bkd->bqd"}> : () -> ()
    %cst_125 = arith.constant dense<0.000000e+00> : vector<2x8x16xf32>
    %265 = tpu.matmul %264, %256, %cst_125 {dimension_numbers = #tpu.dot_dimension_numbers<[2], [1], [1], [2], [0, 0, 0, 1, 1, 2], [0], [0]>} : vector<2x8x8xf32>, vector<2x8x16xf32>, vector<2x8x16xf32> -> vector<2x8x16xf32>
    "tpu.trace_stop"() : () -> ()
    %266 = vector.shape_cast %265 : vector<2x8x16xf32> to vector<16x16xf32>
    %267 = arith.truncf %266 : vector<16x16xf32> to vector<16x16xbf16>
    %c2_126 = arith.constant 2 : index
    %c0_127 = arith.constant 0 : index
    %c0_128 = arith.constant 0 : index
    %268 = vector.load %arg4[%c2_126, %c0_127, %c0_128] : memref<4x16x32xbf16, #tpu.memory_space<vmem>>, vector<1x16x32xbf16>
    %269 = vector.shape_cast %268 : vector<1x16x32xbf16> to vector<16x32xbf16>
    %cst_129 = arith.constant dense<0.000000e+00> : vector<16x32xf32>
    %270 = tpu.matmul %267, %269, %cst_129 {dimension_numbers = #tpu.dot_dimension_numbers<[1], [0], [0], [1], [0, 0, 1, 1], [], []>} : vector<16x16xbf16>, vector<16x32xbf16>, vector<16x32xf32> -> vector<16x32xf32>
    %271 = arith.addf %229, %270 : vector<16x32xf32>
    %c7_130 = arith.constant 7 : index
    %c0_131 = arith.constant 0 : index
    %c0_132 = arith.constant 0 : index
    %272 = vector.load %arg3[%c7_130, %c0_131, %c0_132] : memref<12x32x16xbf16, #tpu.memory_space<vmem>>, vector<1x32x16xbf16>
    %273 = vector.shape_cast %272 : vector<1x32x16xbf16> to vector<32x16xbf16>
    %c9_133 = arith.constant 9 : index
    %c0_134 = arith.constant 0 : index
    %c0_135 = arith.constant 0 : index
    %274 = vector.load %arg3[%c9_133, %c0_134, %c0_135] : memref<12x32x16xbf16, #tpu.memory_space<vmem>>, vector<1x32x16xbf16>
    %275 = vector.shape_cast %274 : vector<1x32x16xbf16> to vector<32x16xbf16>
    %c11_136 = arith.constant 11 : index
    %c0_137 = arith.constant 0 : index
    %c0_138 = arith.constant 0 : index
    %276 = vector.load %arg3[%c11_136, %c0_137, %c0_138] : memref<12x32x16xbf16, #tpu.memory_space<vmem>>, vector<1x32x16xbf16>
    %277 = vector.shape_cast %276 : vector<1x32x16xbf16> to vector<32x16xbf16>
    %cst_139 = arith.constant dense<0.000000e+00> : vector<16x16xf32>
    %278 = tpu.matmul %228, %273, %cst_139 {dimension_numbers = #tpu.dot_dimension_numbers<[1], [0], [0], [1], [0, 0, 1, 1], [], []>} : vector<16x32xbf16>, vector<32x16xbf16>, vector<16x16xf32> -> vector<16x16xf32>
    %c14 = arith.constant 14 : index
    %c0_140 = arith.constant 0 : index
    %c0_141 = arith.constant 0 : index
    %279 = vector.load %arg8[%c14, %c0_140, %c0_141] : memref<30x1x64xf32, #tpu.memory_space<vmem>>, vector<1x1x64xf32>
    %280 = vector.shape_cast %279 : vector<1x1x64xf32> to vector<1x64xf32>
    %281 = vector.extract_strided_slice %280 {offsets = [0, 0], sizes = [1, 16], strides = [1, 1]} : vector<1x64xf32> to vector<1x16xf32>
    %282 = vector.broadcast %281 : vector<1x16xf32> to vector<16x16xf32>
    %283 = arith.addf %278, %282 : vector<16x16xf32>
    %cst_142 = arith.constant dense<0.000000e+00> : vector<16x16xf32>
    %284 = tpu.matmul %228, %275, %cst_142 {dimension_numbers = #tpu.dot_dimension_numbers<[1], [0], [0], [1], [0, 0, 1, 1], [], []>} : vector<16x32xbf16>, vector<32x16xbf16>, vector<16x16xf32> -> vector<16x16xf32>
    %c16 = arith.constant 16 : index
    %c0_143 = arith.constant 0 : index
    %c0_144 = arith.constant 0 : index
    %285 = vector.load %arg8[%c16, %c0_143, %c0_144] : memref<30x1x64xf32, #tpu.memory_space<vmem>>, vector<1x1x64xf32>
    %286 = vector.shape_cast %285 : vector<1x1x64xf32> to vector<1x64xf32>
    %287 = vector.extract_strided_slice %286 {offsets = [0, 0], sizes = [1, 16], strides = [1, 1]} : vector<1x64xf32> to vector<1x16xf32>
    %288 = vector.broadcast %287 : vector<1x16xf32> to vector<16x16xf32>
    %289 = arith.addf %284, %288 : vector<16x16xf32>
    %cst_145 = arith.constant dense<0.000000e+00> : vector<16x16xf32>
    %290 = tpu.matmul %228, %277, %cst_145 {dimension_numbers = #tpu.dot_dimension_numbers<[1], [0], [0], [1], [0, 0, 1, 1], [], []>} : vector<16x32xbf16>, vector<32x16xbf16>, vector<16x16xf32> -> vector<16x16xf32>
    %c18 = arith.constant 18 : index
    %c0_146 = arith.constant 0 : index
    %c0_147 = arith.constant 0 : index
    %291 = vector.load %arg8[%c18, %c0_146, %c0_147] : memref<30x1x64xf32, #tpu.memory_space<vmem>>, vector<1x1x64xf32>
    %292 = vector.shape_cast %291 : vector<1x1x64xf32> to vector<1x64xf32>
    %293 = vector.extract_strided_slice %292 {offsets = [0, 0], sizes = [1, 16], strides = [1, 1]} : vector<1x64xf32> to vector<1x16xf32>
    %294 = vector.broadcast %293 : vector<1x16xf32> to vector<16x16xf32>
    %295 = arith.addf %290, %294 : vector<16x16xf32>
    %296 = vector.shape_cast %283 : vector<16x16xf32> to vector<2x8x16xf32>
    %297 = vector.shape_cast %289 : vector<16x16xf32> to vector<2x8x16xf32>
    %298 = vector.shape_cast %295 : vector<16x16xf32> to vector<2x8x16xf32>
    "tpu.trace_start"() <{level = 10 : i32, message = "bqd,bkd->bqk"}> : () -> ()
    %cst_148 = arith.constant dense<0.000000e+00> : vector<2x8x8xf32>
    %299 = tpu.matmul %296, %297, %cst_148 {dimension_numbers = #tpu.dot_dimension_numbers<[2], [2], [1], [1], [0, 0, 0, 1, 1, 1], [0], [0]>} : vector<2x8x16xf32>, vector<2x8x16xf32>, vector<2x8x8xf32> -> vector<2x8x8xf32>
    "tpu.trace_stop"() : () -> ()
    %300 = arith.addf %299, %48 : vector<2x8x8xf32>
    %301 = math.exp %300 : vector<2x8x8xf32>
    %cst_149 = arith.constant dense<0.000000e+00> : vector<2x8xf32>
    %302 = vector.multi_reduction <add>, %301, %cst_149 [2] : vector<2x8x8xf32> to vector<2x8xf32>
    %303 = vector.shape_cast %302 : vector<2x8xf32> to vector<2x8x1xf32>
    %304 = tpu.reciprocal %303 {approx = true} : vector<2x8x1xf32> -> vector<2x8x1xf32>
    %305 = vector.broadcast %304 : vector<2x8x1xf32> to vector<2x8x8xf32>
    %306 = arith.mulf %301, %305 : vector<2x8x8xf32>
    "tpu.trace_start"() <{level = 10 : i32, message = "bqk,bkd->bqd"}> : () -> ()
    %cst_150 = arith.constant dense<0.000000e+00> : vector<2x8x16xf32>
    %307 = tpu.matmul %306, %298, %cst_150 {dimension_numbers = #tpu.dot_dimension_numbers<[2], [1], [1], [2], [0, 0, 0, 1, 1, 2], [0], [0]>} : vector<2x8x8xf32>, vector<2x8x16xf32>, vector<2x8x16xf32> -> vector<2x8x16xf32>
    "tpu.trace_stop"() : () -> ()
    %308 = vector.shape_cast %307 : vector<2x8x16xf32> to vector<16x16xf32>
    %309 = arith.truncf %308 : vector<16x16xf32> to vector<16x16xbf16>
    %c3_151 = arith.constant 3 : index
    %c0_152 = arith.constant 0 : index
    %c0_153 = arith.constant 0 : index
    %310 = vector.load %arg4[%c3_151, %c0_152, %c0_153] : memref<4x16x32xbf16, #tpu.memory_space<vmem>>, vector<1x16x32xbf16>
    %311 = vector.shape_cast %310 : vector<1x16x32xbf16> to vector<16x32xbf16>
    %cst_154 = arith.constant dense<0.000000e+00> : vector<16x32xf32>
    %312 = tpu.matmul %309, %311, %cst_154 {dimension_numbers = #tpu.dot_dimension_numbers<[1], [0], [0], [1], [0, 0, 1, 1], [], []>} : vector<16x16xbf16>, vector<16x32xbf16>, vector<16x32xf32> -> vector<16x32xf32>
    %313 = arith.addf %271, %312 : vector<16x32xf32>
    %c19 = arith.constant 19 : index
    %c0_155 = arith.constant 0 : index
    %c0_156 = arith.constant 0 : index
    %314 = vector.load %arg8[%c19, %c0_155, %c0_156] : memref<30x1x64xf32, #tpu.memory_space<vmem>>, vector<1x1x64xf32>
    %315 = vector.shape_cast %314 : vector<1x1x64xf32> to vector<1x64xf32>
    %316 = vector.extract_strided_slice %315 {offsets = [0, 0], sizes = [1, 32], strides = [1, 1]} : vector<1x64xf32> to vector<1x32xf32>
    %317 = vector.broadcast %316 : vector<1x32xf32> to vector<16x32xf32>
    %318 = arith.addf %313, %317 : vector<16x32xf32>
    %319 = arith.addf %227, %318 : vector<16x32xf32>
    %c20 = arith.constant 20 : index
    %c0_157 = arith.constant 0 : index
    %c0_158 = arith.constant 0 : index
    %320 = vector.load %arg8[%c20, %c0_157, %c0_158] : memref<30x1x64xf32, #tpu.memory_space<vmem>>, vector<1x1x64xf32>
    %321 = vector.shape_cast %320 : vector<1x1x64xf32> to vector<1x64xf32>
    %322 = vector.extract_strided_slice %321 {offsets = [0, 0], sizes = [1, 32], strides = [1, 1]} : vector<1x64xf32> to vector<1x32xf32>
    %c21 = arith.constant 21 : index
    %c0_159 = arith.constant 0 : index
    %c0_160 = arith.constant 0 : index
    %323 = vector.load %arg8[%c21, %c0_159, %c0_160] : memref<30x1x64xf32, #tpu.memory_space<vmem>>, vector<1x1x64xf32>
    %324 = vector.shape_cast %323 : vector<1x1x64xf32> to vector<1x64xf32>
    %325 = vector.extract_strided_slice %324 {offsets = [0, 0], sizes = [1, 32], strides = [1, 1]} : vector<1x64xf32> to vector<1x32xf32>
    %cst_161 = arith.constant dense<0.000000e+00> : vector<16xf32>
    %326 = vector.multi_reduction <add>, %319, %cst_161 [1] : vector<16x32xf32> to vector<16xf32>
    %327 = vector.shape_cast %326 : vector<16xf32> to vector<16x1xf32>
    %cst_162 = arith.constant 3.200000e+01 : f32
    %328 = vector.broadcast %cst_162 : f32 to vector<16x1xf32>
    %329 = arith.divf %327, %328 : vector<16x1xf32>
    %330 = vector.broadcast %329 : vector<16x1xf32> to vector<16x32xf32>
    %331 = arith.subf %319, %330 : vector<16x32xf32>
    %332 = arith.mulf %331, %331 : vector<16x32xf32>
    %cst_163 = arith.constant dense<0.000000e+00> : vector<16xf32>
    %333 = vector.multi_reduction <add>, %332, %cst_163 [1] : vector<16x32xf32> to vector<16xf32>
    %334 = vector.shape_cast %333 : vector<16xf32> to vector<16x1xf32>
    %cst_164 = arith.constant 3.200000e+01 : f32
    %335 = vector.broadcast %cst_164 : f32 to vector<16x1xf32>
    %336 = arith.divf %334, %335 : vector<16x1xf32>
    %337 = vector.broadcast %329 : vector<16x1xf32> to vector<16x32xf32>
    %338 = arith.subf %319, %337 : vector<16x32xf32>
    %cst_165 = arith.constant 9.99999996E-13 : f32
    %339 = vector.broadcast %cst_165 : f32 to vector<16x1xf32>
    %340 = arith.addf %336, %339 : vector<16x1xf32>
    %341 = math.rsqrt %340 : vector<16x1xf32>
    %342 = vector.broadcast %341 : vector<16x1xf32> to vector<16x32xf32>
    %343 = arith.mulf %338, %342 : vector<16x32xf32>
    %344 = vector.broadcast %322 : vector<1x32xf32> to vector<16x32xf32>
    %345 = arith.mulf %343, %344 : vector<16x32xf32>
    %346 = vector.broadcast %325 : vector<1x32xf32> to vector<16x32xf32>
    %347 = arith.addf %345, %346 : vector<16x32xf32>
    %348 = arith.truncf %347 : vector<16x32xf32> to vector<16x32xbf16>
    %c1_166 = arith.constant 1 : index
    %c0_167 = arith.constant 0 : index
    %c0_168 = arith.constant 0 : index
    %349 = vector.load %arg5[%c1_166, %c0_167, %c0_168] : memref<2x32x64xbf16, #tpu.memory_space<vmem>>, vector<1x32x64xbf16>
    %350 = vector.shape_cast %349 : vector<1x32x64xbf16> to vector<32x64xbf16>
    %cst_169 = arith.constant dense<0.000000e+00> : vector<16x64xf32>
    %351 = tpu.matmul %348, %350, %cst_169 {dimension_numbers = #tpu.dot_dimension_numbers<[1], [0], [0], [1], [0, 0, 1, 1], [], []>} : vector<16x32xbf16>, vector<32x64xbf16>, vector<16x64xf32> -> vector<16x64xf32>
    %c22 = arith.constant 22 : index
    %c0_170 = arith.constant 0 : index
    %c0_171 = arith.constant 0 : index
    %352 = vector.load %arg8[%c22, %c0_170, %c0_171] : memref<30x1x64xf32, #tpu.memory_space<vmem>>, vector<1x1x64xf32>
    %353 = vector.shape_cast %352 : vector<1x1x64xf32> to vector<1x64xf32>
    %354 = vector.broadcast %353 : vector<1x64xf32> to vector<16x64xf32>
    %355 = arith.addf %351, %354 : vector<16x64xf32>
    %cst_172 = arith.constant 5.000000e-01 : f32
    %356 = vector.broadcast %cst_172 : f32 to vector<16x64xf32>
    %357 = arith.mulf %356, %355 : vector<16x64xf32>
    %cst_173 = arith.constant 4.471500e-02 : f32
    %358 = vector.broadcast %cst_173 : f32 to vector<16x64xf32>
    %359 = arith.mulf %358, %355 : vector<16x64xf32>
    %360 = arith.mulf %359, %355 : vector<16x64xf32>
    %361 = arith.mulf %360, %355 : vector<16x64xf32>
    %362 = arith.addf %355, %361 : vector<16x64xf32>
    %cst_174 = arith.constant 0.797884583 : f32
    %363 = vector.broadcast %cst_174 : f32 to vector<16x64xf32>
    %364 = arith.mulf %363, %362 : vector<16x64xf32>
    %365 = math.tanh %364 : vector<16x64xf32>
    %cst_175 = arith.constant 1.000000e+00 : f32
    %366 = vector.broadcast %cst_175 : f32 to vector<16x64xf32>
    %367 = arith.addf %366, %365 : vector<16x64xf32>
    %368 = arith.mulf %357, %367 : vector<16x64xf32>
    %369 = arith.truncf %368 : vector<16x64xf32> to vector<16x64xbf16>
    %c1_176 = arith.constant 1 : index
    %c0_177 = arith.constant 0 : index
    %c0_178 = arith.constant 0 : index
    %370 = vector.load %arg6[%c1_176, %c0_177, %c0_178] : memref<2x64x32xbf16, #tpu.memory_space<vmem>>, vector<1x64x32xbf16>
    %371 = vector.shape_cast %370 : vector<1x64x32xbf16> to vector<64x32xbf16>
    %cst_179 = arith.constant dense<0.000000e+00> : vector<16x32xf32>
    %372 = tpu.matmul %369, %371, %cst_179 {dimension_numbers = #tpu.dot_dimension_numbers<[1], [0], [0], [1], [0, 0, 1, 1], [], []>} : vector<16x64xbf16>, vector<64x32xbf16>, vector<16x32xf32> -> vector<16x32xf32>
    %c23 = arith.constant 23 : index
    %c0_180 = arith.constant 0 : index
    %c0_181 = arith.constant 0 : index
    %373 = vector.load %arg8[%c23, %c0_180, %c0_181] : memref<30x1x64xf32, #tpu.memory_space<vmem>>, vector<1x1x64xf32>
    %374 = vector.shape_cast %373 : vector<1x1x64xf32> to vector<1x64xf32>
    %375 = vector.extract_strided_slice %374 {offsets = [0, 0], sizes = [1, 32], strides = [1, 1]} : vector<1x64xf32> to vector<1x32xf32>
    %376 = vector.broadcast %375 : vector<1x32xf32> to vector<16x32xf32>
    %377 = arith.addf %372, %376 : vector<16x32xf32>
    %378 = arith.addf %347, %377 : vector<16x32xf32>
    %c24 = arith.constant 24 : index
    %c0_182 = arith.constant 0 : index
    %c0_183 = arith.constant 0 : index
    %379 = vector.load %arg8[%c24, %c0_182, %c0_183] : memref<30x1x64xf32, #tpu.memory_space<vmem>>, vector<1x1x64xf32>
    %380 = vector.shape_cast %379 : vector<1x1x64xf32> to vector<1x64xf32>
    %381 = vector.extract_strided_slice %380 {offsets = [0, 0], sizes = [1, 32], strides = [1, 1]} : vector<1x64xf32> to vector<1x32xf32>
    %c25 = arith.constant 25 : index
    %c0_184 = arith.constant 0 : index
    %c0_185 = arith.constant 0 : index
    %382 = vector.load %arg8[%c25, %c0_184, %c0_185] : memref<30x1x64xf32, #tpu.memory_space<vmem>>, vector<1x1x64xf32>
    %383 = vector.shape_cast %382 : vector<1x1x64xf32> to vector<1x64xf32>
    %384 = vector.extract_strided_slice %383 {offsets = [0, 0], sizes = [1, 32], strides = [1, 1]} : vector<1x64xf32> to vector<1x32xf32>
    %cst_186 = arith.constant dense<0.000000e+00> : vector<16xf32>
    %385 = vector.multi_reduction <add>, %378, %cst_186 [1] : vector<16x32xf32> to vector<16xf32>
    %386 = vector.shape_cast %385 : vector<16xf32> to vector<16x1xf32>
    %cst_187 = arith.constant 3.200000e+01 : f32
    %387 = vector.broadcast %cst_187 : f32 to vector<16x1xf32>
    %388 = arith.divf %386, %387 : vector<16x1xf32>
    %389 = vector.broadcast %388 : vector<16x1xf32> to vector<16x32xf32>
    %390 = arith.subf %378, %389 : vector<16x32xf32>
    %391 = arith.mulf %390, %390 : vector<16x32xf32>
    %cst_188 = arith.constant dense<0.000000e+00> : vector<16xf32>
    %392 = vector.multi_reduction <add>, %391, %cst_188 [1] : vector<16x32xf32> to vector<16xf32>
    %393 = vector.shape_cast %392 : vector<16xf32> to vector<16x1xf32>
    %cst_189 = arith.constant 3.200000e+01 : f32
    %394 = vector.broadcast %cst_189 : f32 to vector<16x1xf32>
    %395 = arith.divf %393, %394 : vector<16x1xf32>
    %396 = vector.broadcast %388 : vector<16x1xf32> to vector<16x32xf32>
    %397 = arith.subf %378, %396 : vector<16x32xf32>
    %cst_190 = arith.constant 9.99999996E-13 : f32
    %398 = vector.broadcast %cst_190 : f32 to vector<16x1xf32>
    %399 = arith.addf %395, %398 : vector<16x1xf32>
    %400 = math.rsqrt %399 : vector<16x1xf32>
    %401 = vector.broadcast %400 : vector<16x1xf32> to vector<16x32xf32>
    %402 = arith.mulf %397, %401 : vector<16x32xf32>
    %403 = vector.broadcast %381 : vector<1x32xf32> to vector<16x32xf32>
    %404 = arith.mulf %402, %403 : vector<16x32xf32>
    %405 = vector.broadcast %384 : vector<1x32xf32> to vector<16x32xf32>
    %406 = arith.addf %404, %405 : vector<16x32xf32>
    %407 = vector.shape_cast %406 : vector<16x32xf32> to vector<2x8x32xf32>
    %408 = vector.extract_strided_slice %407 {offsets = [0, 0, 0], sizes = [2, 1, 32], strides = [1, 1, 1]} : vector<2x8x32xf32> to vector<2x1x32xf32>
    %409 = vector.shape_cast %408 : vector<2x1x32xf32> to vector<2x32xf32>
    %410 = arith.truncf %409 : vector<2x32xf32> to vector<2x32xbf16>
    %c0_191 = arith.constant 0 : index
    %c0_192 = arith.constant 0 : index
    %c0_193 = arith.constant 0 : index
    %411 = vector.load %arg7[%c0_191, %c0_192, %c0_193] : memref<2x32x32xbf16, #tpu.memory_space<vmem>>, vector<1x32x32xbf16>
    %412 = vector.shape_cast %411 : vector<1x32x32xbf16> to vector<32x32xbf16>
    %cst_194 = arith.constant dense<0.000000e+00> : vector<2x32xf32>
    %413 = tpu.matmul %410, %412, %cst_194 {dimension_numbers = #tpu.dot_dimension_numbers<[1], [0], [0], [1], [0, 0, 1, 1], [], []>} : vector<2x32xbf16>, vector<32x32xbf16>, vector<2x32xf32> -> vector<2x32xf32>
    %c28 = arith.constant 28 : index
    %c0_195 = arith.constant 0 : index
    %c0_196 = arith.constant 0 : index
    %414 = vector.load %arg8[%c28, %c0_195, %c0_196] : memref<30x1x64xf32, #tpu.memory_space<vmem>>, vector<1x1x64xf32>
    %415 = vector.shape_cast %414 : vector<1x1x64xf32> to vector<1x64xf32>
    %416 = vector.extract_strided_slice %415 {offsets = [0, 0], sizes = [1, 32], strides = [1, 1]} : vector<1x64xf32> to vector<1x32xf32>
    %417 = vector.broadcast %416 : vector<1x32xf32> to vector<2x32xf32>
    %418 = arith.addf %413, %417 : vector<2x32xf32>
    %419 = math.tanh %418 : vector<2x32xf32>
    %420 = arith.truncf %419 : vector<2x32xf32> to vector<2x32xbf16>
    %c1_197 = arith.constant 1 : index
    %c0_198 = arith.constant 0 : index
    %c0_199 = arith.constant 0 : index
    %421 = vector.load %arg7[%c1_197, %c0_198, %c0_199] : memref<2x32x32xbf16, #tpu.memory_space<vmem>>, vector<1x32x32xbf16>
    %422 = vector.shape_cast %421 : vector<1x32x32xbf16> to vector<32x32xbf16>
    %cst_200 = arith.constant dense<0.000000e+00> : vector<2x32xf32>
    %423 = tpu.matmul %420, %422, %cst_200 {dimension_numbers = #tpu.dot_dimension_numbers<[1], [0], [0], [1], [0, 0, 1, 1], [], []>} : vector<2x32xbf16>, vector<32x32xbf16>, vector<2x32xf32> -> vector<2x32xf32>
    %c29 = arith.constant 29 : index
    %c0_201 = arith.constant 0 : index
    %c0_202 = arith.constant 0 : index
    %424 = vector.load %arg8[%c29, %c0_201, %c0_202] : memref<30x1x64xf32, #tpu.memory_space<vmem>>, vector<1x1x64xf32>
    %425 = vector.shape_cast %424 : vector<1x1x64xf32> to vector<1x64xf32>
    %426 = vector.extract_strided_slice %425 {offsets = [0, 0], sizes = [1, 32], strides = [1, 1]} : vector<1x64xf32> to vector<1x32xf32>
    %427 = vector.broadcast %426 : vector<1x32xf32> to vector<2x32xf32>
    %428 = arith.addf %423, %427 : vector<2x32xf32>
    %429 = vector.extract_strided_slice %428 {offsets = [0, 0], sizes = [2, 2], strides = [1, 1]} : vector<2x32xf32> to vector<2x2xf32>
    %c0_203 = arith.constant 0 : index
    %c0_204 = arith.constant 0 : index
    %430 = vector.load %arg9[%c0_203, %c0_204] : memref<2x2xf32, #tpu.memory_space<vmem>>, vector<2x2xf32>
    tpu.vector_store %arg9[%c0_203, %c0_204], %429 {strides = array<i32>} : memref<2x2xf32, #tpu.memory_space<vmem>>, vector<2x2xf32>,
    return
  }
}

</mosaic_0001>

<llo_original>
// kernel: forward.1
$region0: #{forward.1}
  #allocation0 [shape = 'u32[]', space=smem, size = 0x4, offset = 0x4, fixed_abs, tag = 'smem constant byte address 0x4 - core index']
  #allocation1 [shape = 'u32[144,128]{1,0:T(1,128)}', space=vmem, size = 0x12000, scoped, tag = 'internal scratch']
  %s0 = inlined_call_operand.vmem [shape: s32[16,1], index: 0, kind: input, shape index: {}]
  %s1 = inlined_call_operand.vmem [shape: f32[2,8], index: 1, kind: input, shape index: {}]
  %s2 = inlined_call_operand.vmem [shape: f32[116,32], index: 2, kind: input, shape index: {}]
  %s3 = inlined_call_operand.vmem [shape: bf16[12,32,16], index: 3, kind: input, shape index: {}]
  %s4 = inlined_call_operand.vmem [shape: bf16[4,16,32], index: 4, kind: input, shape index: {}]
  %s5 = inlined_call_operand.vmem [shape: bf16[2,32,64], index: 5, kind: input, shape index: {}]
  %s6 = inlined_call_operand.vmem [shape: bf16[2,64,32], index: 6, kind: input, shape index: {}]
  %s7 = inlined_call_operand.vmem [shape: bf16[2,32,32], index: 7, kind: input, shape index: {}]
  %s8 = inlined_call_operand.vmem [shape: f32[30,1,64], index: 8, kind: input, shape index: {}]
  %s9 = inlined_call_operand.hbm [shape: f32[2,2], index: 9, kind: output, shape index: {}]
  %s10 = sld [smem:[#allocation0]]
  $region46: #{forward.1} parent=0
    _
  %s12 = ssub.s32 1, %s10
  %s13 = scalar_select 0, %s12, %s10
  $region1: #{forward.1} parent=0
    #allocation2 [shape = 'u8[1024]{0}', space=vmem, size = 0x400, scoped, tag = 'output window, operand 0, single buffered']
    #allocation3 [shape = 's32[1]{0}', space=sflag, size = 0x4, scoped, tag = 'scoped memory for forward.1']
    %14 = vsyncpa [#allocation3], 0
    // Predicated region
    $region2: #{forward.1} parent=1 // pred_check
      _
    $region3: #{forward.1} parent=1 // pred_check_branch
      %16 = sbr.rel (0) target = $region5
    $region4: #{forward.1} parent=1 // pred_region
      _
    $region5: #{forward.1} parent=1 // pred_fallthru
      _
    // Predicated region
    $region6: #{forward.1} parent=1 // pred_check
      _
    $region7: #{forward.1} parent=1 // pred_check_branch
      %18 = sbr.rel (0) target = $region9
    $region8: #{forward.1} parent=1 // pred_region
      _
    $region9: #{forward.1} parent=1 // pred_fallthru
      _
    // Predicated region
    $region10: #{forward.1} parent=1 // pred_check
      _
    $region11: #{forward.1} parent=1 // pred_check_branch
      %20 = sbr.rel (0) target = $region13
    $region12: #{forward.1} parent=1 // pred_region
      _
    $region13: #{forward.1} parent=1 // pred_fallthru
      _
    // Predicated region
    $region14: #{forward.1} parent=1 // pred_check
      _
    $region15: #{forward.1} parent=1 // pred_check_branch
      %22 = sbr.rel (0) target = $region17
    $region16: #{forward.1} parent=1 // pred_region
      _
    $region17: #{forward.1} parent=1 // pred_fallthru
      _
    // Predicated region
    $region18: #{forward.1} parent=1 // pred_check
      _
    $region19: #{forward.1} parent=1 // pred_check_branch
      %24 = sbr.rel (0) target = $region21
    $region20: #{forward.1} parent=1 // pred_region
      _
    $region21: #{forward.1} parent=1 // pred_fallthru
      _
    // Predicated region
    $region22: #{forward.1} parent=1 // pred_check
      _
    $region23: #{forward.1} parent=1 // pred_check_branch
      %26 = sbr.rel (0) target = $region25
    $region24: #{forward.1} parent=1 // pred_region
      _
    $region25: #{forward.1} parent=1 // pred_fallthru
      _
    // Predicated region
    $region26: #{forward.1} parent=1 // pred_check
      _
    $region27: #{forward.1} parent=1 // pred_check_branch
      %28 = sbr.rel (0) target = $region29
    $region28: #{forward.1} parent=1 // pred_region
      _
    $region29: #{forward.1} parent=1 // pred_fallthru
      _
    // Predicated region
    $region30: #{forward.1} parent=1 // pred_check
      _
    $region31: #{forward.1} parent=1 // pred_check_branch
      %30 = sbr.rel (0) target = $region33
    $region32: #{forward.1} parent=1 // pred_region
      _
    $region33: #{forward.1} parent=1 // pred_fallthru
      _
    // Predicated region
    $region34: #{forward.1} parent=1 // pred_check
      _
    $region35: #{forward.1} parent=1 // pred_check_branch
      %32 = sbr.rel (0) target = $region37
    $region36: #{forward.1} parent=1 // pred_region
      _
    $region37: #{forward.1} parent=1 // pred_fallthru
      _
    %v34 = vlaneseq
    %v35 = vand.u32 %v34, 127
    %v36 = vlaneseq
    %v37 = vshrl.u32 %v36, 7
    %v38 = vadd.s32 %v37, 8
    %v39 = vld [vmem:[%s0] sm:$0xff]
    %v40 = vld [vmem:[%s0 + $0x8] sm:$0xff]
    %41 = vset.pattern.permute.xlu0 0
    %42 = vperm.xlu0 %41, %v39
    %v43 = vpop.permute.xlu0 %42
    %44 = vset.pattern.permute.xlu0 0
    %45 = vperm.xlu0 %44, %v40
    %v46 = vpop.permute.xlu0 %45
    %vm47 = vcmp.eq.s32.totalorder %v35, %v43
    %vm48 = vcmp.eq.s32.totalorder %v35, %v46
    %v49 = vadd.s32 %v37, 100
    %v50 = vadd.s32 %v38, 100
    %vm51 = vcmp.eq.s32.totalorder %v35, %v49
    %vm52 = vcmp.eq.s32.totalorder %v35, %v50
    %vm53 = vmor %vm47, %vm51
    %vm54 = vmor %vm48, %vm52
    %v55 = vsel %vm53, 1, 0
    %v56 = vsel %vm54, 1, 0
    %v57 = vcvt.s32.f32 %v55
    %v58 = vcvt.s32.f32 %v56
    %v59 = vld [vmem:[%s2] sm:$0xff]
    %v60 = vld [vmem:[%s2 + $0x8] sm:$0xff]
    %v61 = vld [vmem:[%s2 + $0x10] sm:$0xff]
    %v62 = vld [vmem:[%s2 + $0x18] sm:$0xff]
    %v63 = vld [vmem:[%s2 + $0x20] sm:$0xff]
    %v64 = vld [vmem:[%s2 + $0x28] sm:$0xff]
    %v65 = vld [vmem:[%s2 + $0x30] sm:$0xff]
    %v66 = vld [vmem:[%s2 + $0x38] sm:$0xff]
    %v67 = vld [vmem:[%s2 + $0x40] sm:$0xff]
    %v68 = vld [vmem:[%s2 + $0x48] sm:$0xff]
    %v69 = vld [vmem:[%s2 + $0x50] sm:$0xff]
    %v70 = vld [vmem:[%s2 + $0x58] sm:$0xff]
    %v71 = vld [vmem:[%s2 + $0x60] sm:$0xff]
    %v72 = vld [vmem:[%s2 + $0x68] sm:$0xff]
    %v73 = vld [vmem:[%s2 + $0x70] sm:$0xf]
    %vm74 = vcmask 949248
    %v76 = vsel %vm74, %v57, 0
    %v79 = vsel %vm74, %v58, 0
    %vm81 = vcmask 1043456
    %v83 = vsel %vm81, %v73, 0
    %85 = vmatprep.subr.mxu0 0.0
    %86 = vmatpush1.msra.mxu0 0.0
    %87 = vmatprep.subr.mxu0 0.0
    %88 = vmatpush1.msra.mxu0 %v83
    %89 = vmatprep.subr.mxu0 0.0
    %90 = vmatpush1.msra.mxu0 %v72
    %91 = vmatprep.subr.mxu0 0.0
    %92 = vmatpush1.msra.mxu0 %v71
    %93 = vmatprep.subr.mxu0 0.0
    %94 = vmatpush1.msra.mxu0 %v70
    %95 = vmatprep.subr.mxu0 0.0
    %96 = vmatpush1.msra.mxu0 %v69
    %97 = vmatprep.subr.mxu0 0.0
    %98 = vmatpush1.msra.mxu0 %v68
    %99 = vmatprep.subr.mxu0 0.0
    %100 = vmatpush1.msra.mxu0 %v67
    %101 = vmatprep.subr.mxu0 0.0
    %102 = vmatpush1.msra.mxu0 %v66
    %103 = vmatprep.subr.mxu0 0.0
    %104 = vmatpush1.msra.mxu0 %v65
    %105 = vmatprep.subr.mxu0 0.0
    %106 = vmatpush1.msra.mxu0 %v64
    %107 = vmatprep.subr.mxu0 0.0
    %108 = vmatpush1.msra.mxu0 %v63
    %109 = vmatprep.subr.mxu0 0.0
    %110 = vmatpush1.msra.mxu0 %v62
    %111 = vmatprep.subr.mxu0 0.0
    %112 = vmatpush1.msra.mxu0 %v61
    %113 = vmatprep.subr.mxu0 0.0
    %114 = vmatpush1.msra.mxu0 %v60
    %115 = vmatprep.subr.mxu0 0.0
    %116 = vmatpush1.msra.mxu0 %v59
    %117 = vmatprep.subr.mxu0 0.0
    %118 = vmatpush2.msra.mxu0 0.0
    %119 = vmatprep.subr.mxu0 0.0
    %120 = vmatpush2.msra.mxu0 0.0
    %121 = vmatprep.subr.mxu0 0.0
    %122 = vmatpush2.msra.mxu0 0.0
    %123 = vmatprep.subr.mxu0 0.0
    %124 = vmatpush2.msra.mxu0 0.0
    %125 = vmatprep.subr.mxu0 0.0
    %126 = vmatpush2.msra.mxu0 0.0
    %127 = vmatprep.subr.mxu0 0.0
    %128 = vmatpush2.msra.mxu0 0.0
    %129 = vmatprep.subr.mxu0 0.0
    %130 = vmatpush2.msra.mxu0 0.0
    %131 = vmatprep.subr.mxu0 0.0
    %132 = vmatpush2.msra.mxu0 0.0
    %133 = vmatprep.subr.mxu0 0.0
    %134 = vmatpush2.msra.mxu0 0.0
    %135 = vmatprep.subr.mxu0 0.0
    %136 = vmatpush2.msra.mxu0 0.0
    %137 = vmatprep.subr.mxu0 0.0
    %138 = vmatpush2.msra.mxu0 0.0
    %139 = vmatprep.subr.mxu0 0.0
    %140 = vmatpush2.msra.mxu0 0.0
    %141 = vmatprep.subr.mxu0 0.0
    %142 = vmatpush2.msra.mxu0 0.0
    %143 = vmatprep.subr.mxu0 0.0
    %144 = vmatpush2.msra.mxu0 0.0
    %145 = vmatprep.subr.mxu0 0.0
    %146 = vmatpush2.msra.mxu0 0.0
    %147 = vmatprep.subr.mxu0 0.0
    %148 = vmatpush2.msra.mxu0 0.0
    %149 = vmatprep.mubr.f32.mxu0 0.0
    %150 = vmatmul.mubr.f32.gmra.mxu0 %v76
    %v151 = vpop.f32.mrf.mxu0
    %v152 = vadd.f32 0.0, %v151
    %v153 = vpop.f32.mrf.mxu0
    %154 = vmatprep.mubr.f32.mxu0 0.0
    %155 = vmatmul.mubr.f32.gmra.mxu0 %v79
    %v156 = vpop.f32.mrf.mxu0
    %v157 = vadd.f32 0.0, %v156
    %v158 = vpop.f32.mrf.mxu0
    %159 = vdwg.mxu0
    %s160 = scalar_lea.vmem %s8, 26
    %v161 = vld [vmem:[%s160] sm:$0x1]
    %s162 = scalar_lea.vmem %s8, 27
    %v163 = vld [vmem:[%s162] sm:$0x1]
    %vm164 = vcmask 261120
    %v165 = vsel %vm164, %v152, 0.0
    %166 = vadd.xlane.f32.xlu0 %v165
    %v167 = vpop.xlane.xlu0 %166
    %v168 = vsel %vm164, %v157, 0.0
    %169 = vadd.xlane.f32.xlu0 %v168
    %v170 = vpop.xlane.xlu0 %169
    %v171 = vrcp.pop 32.0
    %v172 = vmul.f32 %v167, %v171
    %v173 = vmul.f32 %v170, %v171
    %v174 = vsub.f32 %v152, %v172
    %v175 = vsub.f32 %v157, %v173
    %v176 = vmul.f32 %v174, %v174
    %v177 = vmul.f32 %v175, %v175
    %v178 = vsel %vm164, %v176, 0.0
    %179 = vadd.xlane.f32.xlu0 %v178
    %v180 = vpop.xlane.xlu0 %179
    %v181 = vsel %vm164, %v177, 0.0
    %182 = vadd.xlane.f32.xlu0 %v181
    %v183 = vpop.xlane.xlu0 %182
    %v184 = vmul.f32 %v180, %v171
    %v185 = vmul.f32 %v183, %v171
    %v186 = vadd.f32 %v184, 1e-12
    %v187 = vadd.f32 %v185, 1e-12
    %v188 = vrsqrt.pop %v186
    %v189 = vrsqrt.pop %v187
    %v190 = vmul.f32 %v174, %v188
    %v191 = vmul.f32 %v175, %v189
    %v193 = vlaneseq
    %v194 = vshrl.u32 %v193, 7
    %v195 = vsub.s32 0, %v194
    %v196 = vrot.slane %v161, %v195
    %v198 = vmul.f32 %v190, %v196
    %v199 = vmul.f32 %v191, %v196
    %v201 = vlaneseq
    %v202 = vshrl.u32 %v201, 7
    %v203 = vsub.s32 0, %v202
    %v204 = vrot.slane %v163, %v203
    %v206 = vadd.f32 %v198, %v204
    %v207 = vadd.f32 %v199, %v204
    %v208 = vld [vmem:[%s1] sm:$0x3]
    %v209 = vsub.f32 1.0, %v208
    %v210 = vmul.f32 %v209, -10000.0
    %v213 = vunpack.c.l.s4 1966171168
    %v214 = vunpack.c.0.s8 %v213
    %v215 = vlaneseq
    %v216 = vshrl.u32 %v215, 7
    %v217 = vsub.s32 %v214, %v216
    %v218 = vrot.slane %v210, %v217
    %v219 = vcombine.high %v218, %v218
    %v221 = vunpack.c.l.s4 1966171168
    %v222 = vunpack.c.0.s8 %v221
    %v223 = vlaneseq
    %v224 = vshrl.u32 %v223, 7
    %v225 = vsub.s32 %v222, %v224
    %v226 = vrot.slane %v218, %v225
    %v228 = vunpack.c.l.s4 1966171168
    %v229 = vunpack.c.0.s8 %v228
    %v230 = vlaneseq
    %v231 = vshrl.u32 %v230, 7
    %v232 = vsub.s32 %v229, %v231
    %v233 = vrot.slane %v219, %v232
    %v234 = vlaneseq
    %v235 = vshrl.u32 %v234, 7
    %v236 = vsub.s32 0, %v235
    %v237 = vrot.slane %v226, %v236
    %v238 = vlaneseq
    %v239 = vshrl.u32 %v238, 7
    %v240 = vsub.s32 0, %v239
    %v241 = vrot.slane %v233, %v240
    %v244 = vpack.c.bf16 %v207, %v206
    %v245 = vld [vmem:[%s3] sm:$0xf]
    %v246 = vld [vmem:[%s3 + $0x4] sm:$0xf]
    %v247 = vld [vmem:[%s3 + $0x8] sm:$0xf]
    %v248 = vld [vmem:[%s3 + $0xc] sm:$0xf]
    %s249 = scalar_lea.vmem %s3, 32
    %v250 = vld [vmem:[%s249] sm:$0xf]
    %v251 = vld [vmem:[%s249 + $0x4] sm:$0xf]
    %v252 = vld [vmem:[%s249 + $0x8] sm:$0xf]
    %v253 = vld [vmem:[%s249 + $0xc] sm:$0xf]
    %s254 = scalar_lea.vmem %s3, 64
    %v255 = vld [vmem:[%s254] sm:$0xf]
    %v256 = vld [vmem:[%s254 + $0x4] sm:$0xf]
    %v257 = vld [vmem:[%s254 + $0x8] sm:$0xf]
    %v258 = vld [vmem:[%s254 + $0xc] sm:$0xf]
    %v259 = vld [vmem:[%s8] sm:$0x1]
    %v261 = vlaneseq
    %v262 = vshrl.u32 %v261, 7
    %v263 = vsub.s32 0, %v262
    %v264 = vrot.slane %v259, %v263
    %v270 = vunpack.c.l.b16 %v245
    %v271 = vunpack.c.l.b16 %v246
    %v272 = vunpack.c.l.b16 %v247
    %v273 = vunpack.c.l.b16 %v248
    %v274 = vpack.c.b16 %v271, %v270
    %v275 = vpack.c.b16 %v273, %v272
    %v279 = vsel %vm164, %v244, 0
    %281 = vmatprep.subr.bf16.mxu0 0
    %282 = vmatpush1.bf16.msra.mxu0 0
    %283 = vmatprep.subr.bf16.mxu0 0
    %284 = vmatpush1.bf16.msra.mxu0 0
    %285 = vmatprep.subr.bf16.mxu0 0
    %286 = vmatpush1.bf16.msra.mxu0 0
    %287 = vmatprep.subr.bf16.mxu0 0
    %288 = vmatpush1.bf16.msra.mxu0 0
    %289 = vmatprep.subr.bf16.mxu0 0
    %290 = vmatpush1.bf16.msra.mxu0 0
    %291 = vmatprep.subr.bf16.mxu0 0
    %292 = vmatpush1.bf16.msra.mxu0 0
    %293 = vmatprep.subr.bf16.mxu0 0
    %294 = vmatpush1.bf16.msra.mxu0 %v275
    %295 = vmatprep.subr.bf16.mxu0 0
    %296 = vmatpush1.bf16.msra.mxu0 %v274
    %297 = vmatprep.subr.bf16.mxu0 0
    %298 = vmatpush2.bf16.msra.mxu0 0
    %299 = vmatprep.subr.bf16.mxu0 0
    %300 = vmatpush2.bf16.msra.mxu0 0
    %301 = vmatprep.subr.bf16.mxu0 0
    %302 = vmatpush2.bf16.msra.mxu0 0
    %303 = vmatprep.subr.bf16.mxu0 0
    %304 = vmatpush2.bf16.msra.mxu0 0
    %305 = vmatprep.subr.bf16.mxu0 0
    %306 = vmatpush2.bf16.msra.mxu0 0
    %307 = vmatprep.subr.bf16.mxu0 0
    %308 = vmatpush2.bf16.msra.mxu0 0
    %309 = vmatprep.subr.bf16.mxu0 0
    %310 = vmatpush2.bf16.msra.mxu0 0
    %311 = vmatprep.subr.bf16.mxu0 0
    %312 = vmatpush2.bf16.msra.mxu0 0
    %313 = vmatprep.mubr.bf16.mxu0 0
    %314 = vmatmul.mubr.bf16.gmra.mxu0 %v279
    %v315 = vpop.f32.mrf.mxu0
    %v316 = vadd.f32 %v264, %v315
    %v317 = vpop.f32.mrf.mxu0
    %v318 = vpop.f32.mrf.mxu0
    %v319 = vadd.f32 %v264, %v318
    %v320 = vpop.f32.mrf.mxu0
    %321 = vdwg.mxu0
    %s322 = scalar_lea.vmem %s8, 2
    %v323 = vld [vmem:[%s322] sm:$0x1]
    %v325 = vlaneseq
    %v326 = vshrl.u32 %v325, 7
    %v327 = vsub.s32 0, %v326
    %v328 = vrot.slane %v323, %v327
    %v334 = vunpack.c.l.b16 %v250
    %v335 = vunpack.c.l.b16 %v251
    %v336 = vunpack.c.l.b16 %v252
    %v337 = vunpack.c.l.b16 %v253
    %v338 = vpack.c.b16 %v335, %v334
    %v339 = vpack.c.b16 %v337, %v336
    %342 = vmatprep.subr.bf16.mxu0 0
    %343 = vmatpush1.bf16.msra.mxu0 0
    %344 = vmatprep.subr.bf16.mxu0 0
    %345 = vmatpush1.bf16.msra.mxu0 0
    %346 = vmatprep.subr.bf16.mxu0 0
    %347 = vmatpush1.bf16.msra.mxu0 0
    %348 = vmatprep.subr.bf16.mxu0 0
    %349 = vmatpush1.bf16.msra.mxu0 0
    %350 = vmatprep.subr.bf16.mxu0 0
    %351 = vmatpush1.bf16.msra.mxu0 0
    %352 = vmatprep.subr.bf16.mxu0 0
    %353 = vmatpush1.bf16.msra.mxu0 0
    %354 = vmatprep.subr.bf16.mxu0 0
    %355 = vmatpush1.bf16.msra.mxu0 %v339
    %356 = vmatprep.subr.bf16.mxu0 0
    %357 = vmatpush1.bf16.msra.mxu0 %v338
    %358 = vmatprep.subr.bf16.mxu0 0
    %359 = vmatpush2.bf16.msra.mxu0 0
    %360 = vmatprep.subr.bf16.mxu0 0
    %361 = vmatpush2.bf16.msra.mxu0 0
    %362 = vmatprep.subr.bf16.mxu0 0
    %363 = vmatpush2.bf16.msra.mxu0 0
    %364 = vmatprep.subr.bf16.mxu0 0
    %365 = vmatpush2.bf16.msra.mxu0 0
    %366 = vmatprep.subr.bf16.mxu0 0
    %367 = vmatpush2.bf16.msra.mxu0 0
    %368 = vmatprep.subr.bf16.mxu0 0
    %369 = vmatpush2.bf16.msra.mxu0 0
    %370 = vmatprep.subr.bf16.mxu0 0
    %371 = vmatpush2.bf16.msra.mxu0 0
    %372 = vmatprep.subr.bf16.mxu0 0
    %373 = vmatpush2.bf16.msra.mxu0 0
    %374 = vmatprep.mubr.bf16.mxu0 0
    %375 = vmatmul.mubr.bf16.gmra.mxu0 %v279
    %v376 = vpop.f32.mrf.mxu0
    %v377 = vadd.f32 %v328, %v376
    %v378 = vpop.f32.mrf.mxu0
    %v379 = vpop.f32.mrf.mxu0
    %v380 = vadd.f32 %v328, %v379
    %v381 = vpop.f32.mrf.mxu0
    %382 = vdwg.mxu0
    %s383 = scalar_lea.vmem %s8, 4
    %v384 = vld [vmem:[%s383] sm:$0x1]
    %v386 = vlaneseq
    %v387 = vshrl.u32 %v386, 7
    %v388 = vsub.s32 0, %v387
    %v389 = vrot.slane %v384, %v388
    %v395 = vunpack.c.l.b16 %v255
    %v396 = vunpack.c.l.b16 %v256
    %v397 = vunpack.c.l.b16 %v257
    %v398 = vunpack.c.l.b16 %v258
    %v399 = vpack.c.b16 %v396, %v395
    %v400 = vpack.c.b16 %v398, %v397
    %403 = vmatprep.subr.bf16.mxu0 0
    %404 = vmatpush1.bf16.msra.mxu0 0
    %405 = vmatprep.subr.bf16.mxu0 0
    %406 = vmatpush1.bf16.msra.mxu0 0
    %407 = vmatprep.subr.bf16.mxu0 0
    %408 = vmatpush1.bf16.msra.mxu0 0
    %409 = vmatprep.subr.bf16.mxu0 0
    %410 = vmatpush1.bf16.msra.mxu0 0
    %411 = vmatprep.subr.bf16.mxu0 0
    %412 = vmatpush1.bf16.msra.mxu0 0
    %413 = vmatprep.subr.bf16.mxu0 0
    %414 = vmatpush1.bf16.msra.mxu0 0
    %415 = vmatprep.subr.bf16.mxu0 0
    %416 = vmatpush1.bf16.msra.mxu0 %v400
    %417 = vmatprep.subr.bf16.mxu0 0
    %418 = vmatpush1.bf16.msra.mxu0 %v399
    %419 = vmatprep.subr.bf16.mxu0 0
    %420 = vmatpush2.bf16.msra.mxu0 0
    %421 = vmatprep.subr.bf16.mxu0 0
    %422 = vmatpush2.bf16.msra.mxu0 0
    %423 = vmatprep.subr.bf16.mxu0 0
    %424 = vmatpush2.bf16.msra.mxu0 0
    %425 = vmatprep.subr.bf16.mxu0 0
    %426 = vmatpush2.bf16.msra.mxu0 0
    %427 = vmatprep.subr.bf16.mxu0 0
    %428 = vmatpush2.bf16.msra.mxu0 0
    %429 = vmatprep.subr.bf16.mxu0 0
    %430 = vmatpush2.bf16.msra.mxu0 0
    %431 = vmatprep.subr.bf16.mxu0 0
    %432 = vmatpush2.bf16.msra.mxu0 0
    %433 = vmatprep.subr.bf16.mxu0 0
    %434 = vmatpush2.bf16.msra.mxu0 0
    %435 = vmatprep.mubr.bf16.mxu0 0
    %436 = vmatmul.mubr.bf16.gmra.mxu0 %v279
    %v437 = vpop.f32.mrf.mxu0
    %v438 = vadd.f32 %v389, %v437
    %v439 = vpop.f32.mrf.mxu0
    %v440 = vpop.f32.mrf.mxu0
    %v441 = vadd.f32 %v389, %v440
    %v442 = vpop.f32.mrf.mxu0
    %443 = vdwg.mxu0
    %vm444 = vcmask 130048
    %v446 = vsel %vm444, %v316, 0
    %v449 = vsel %vm444, %v377, 0
    %451 = vmatprep.subr.mxu0 0.0
    %452 = vmatpush1.xpose.msra.mxu0 0.0
    %453 = vmatprep.subr.mxu0 0.0
    %454 = vmatpush1.xpose.msra.mxu0 0.0
    %455 = vmatprep.subr.mxu0 0.0
    %456 = vmatpush1.xpose.msra.mxu0 0.0
    %457 = vmatprep.subr.mxu0 0.0
    %458 = vmatpush1.xpose.msra.mxu0 0.0
    %459 = vmatprep.subr.mxu0 0.0
    %460 = vmatpush1.xpose.msra.mxu0 0.0
    %461 = vmatprep.subr.mxu0 0.0
    %462 = vmatpush1.xpose.msra.mxu0 0.0
    %463 = vmatprep.subr.mxu0 0.0
    %464 = vmatpush1.xpose.msra.mxu0 0.0
    %465 = vmatprep.subr.mxu0 0.0
    %466 = vmatpush1.xpose.msra.mxu0 0.0
    %467 = vmatprep.subr.mxu0 0.0
    %468 = vmatpush1.xpose.msra.mxu0 0.0
    %469 = vmatprep.subr.mxu0 0.0
    %470 = vmatpush1.xpose.msra.mxu0 0.0
    %471 = vmatprep.subr.mxu0 0.0
    %472 = vmatpush1.xpose.msra.mxu0 0.0
    %473 = vmatprep.subr.mxu0 0.0
    %474 = vmatpush1.xpose.msra.mxu0 0.0
    %475 = vmatprep.subr.mxu0 0.0
    %476 = vmatpush1.xpose.msra.mxu0 0.0
    %477 = vmatprep.subr.mxu0 0.0
    %478 = vmatpush1.xpose.msra.mxu0 0.0
    %479 = vmatprep.subr.mxu0 0.0
    %480 = vmatpush1.xpose.msra.mxu0 0.0
    %481 = vmatprep.subr.mxu0 0.0
    %482 = vmatpush1.xpose.msra.mxu0 %v449
    %483 = vmatprep.subr.mxu0 0.0
    %484 = vmatpush2.xpose.msra.mxu0 0.0
    %485 = vmatprep.subr.mxu0 0.0
    %486 = vmatpush2.xpose.msra.mxu0 0.0
    %487 = vmatprep.subr.mxu0 0.0
    %488 = vmatpush2.xpose.msra.mxu0 0.0
    %489 = vmatprep.subr.mxu0 0.0
    %490 = vmatpush2.xpose.msra.mxu0 0.0
    %491 = vmatprep.subr.mxu0 0.0
    %492 = vmatpush2.xpose.msra.mxu0 0.0
    %493 = vmatprep.subr.mxu0 0.0
    %494 = vmatpush2.xpose.msra.mxu0 0.0
    %495 = vmatprep.subr.mxu0 0.0
    %496 = vmatpush2.xpose.msra.mxu0 0.0
    %497 = vmatprep.subr.mxu0 0.0
    %498 = vmatpush2.xpose.msra.mxu0 0.0
    %499 = vmatprep.subr.mxu0 0.0
    %500 = vmatpush2.xpose.msra.mxu0 0.0
    %501 = vmatprep.subr.mxu0 0.0
    %502 = vmatpush2.xpose.msra.mxu0 0.0
    %503 = vmatprep.subr.mxu0 0.0
    %504 = vmatpush2.xpose.msra.mxu0 0.0
    %505 = vmatprep.subr.mxu0 0.0
    %506 = vmatpush2.xpose.msra.mxu0 0.0
    %507 = vmatprep.subr.mxu0 0.0
    %508 = vmatpush2.xpose.msra.mxu0 0.0
    %509 = vmatprep.subr.mxu0 0.0
    %510 = vmatpush2.xpose.msra.mxu0 0.0
    %511 = vmatprep.subr.mxu0 0.0
    %512 = vmatpush2.xpose.msra.mxu0 0.0
    %513 = vmatprep.subr.mxu0 0.0
    %514 = vmatpush2.xpose.msra.mxu0 0.0
    %515 = vmatprep.mubr.f32.mxu0 0.0
    %516 = vmatmul.mubr.f32.gmra.mxu0 %v446
    %v517 = vpop.f32.mrf.mxu0
    %v518 = vadd.f32 %v237, %v517
    %v519 = vpop.f32.mrf.mxu0
    %520 = vdwg.mxu0
    %v522 = vsel %vm444, %v319, 0
    %v525 = vsel %vm444, %v380, 0
    %527 = vmatprep.subr.mxu0 0.0
    %528 = vmatpush1.xpose.msra.mxu0 0.0
    %529 = vmatprep.subr.mxu0 0.0
    %530 = vmatpush1.xpose.msra.mxu0 0.0
    %531 = vmatprep.subr.mxu0 0.0
    %532 = vmatpush1.xpose.msra.mxu0 0.0
    %533 = vmatprep.subr.mxu0 0.0
    %534 = vmatpush1.xpose.msra.mxu0 0.0
    %535 = vmatprep.subr.mxu0 0.0
    %536 = vmatpush1.xpose.msra.mxu0 0.0
    %537 = vmatprep.subr.mxu0 0.0
    %538 = vmatpush1.xpose.msra.mxu0 0.0
    %539 = vmatprep.subr.mxu0 0.0
    %540 = vmatpush1.xpose.msra.mxu0 0.0
    %541 = vmatprep.subr.mxu0 0.0
    %542 = vmatpush1.xpose.msra.mxu0 0.0
    %543 = vmatprep.subr.mxu0 0.0
    %544 = vmatpush1.xpose.msra.mxu0 0.0
    %545 = vmatprep.subr.mxu0 0.0
    %546 = vmatpush1.xpose.msra.mxu0 0.0
    %547 = vmatprep.subr.mxu0 0.0
    %548 = vmatpush1.xpose.msra.mxu0 0.0
    %549 = vmatprep.subr.mxu0 0.0
    %550 = vmatpush1.xpose.msra.mxu0 0.0
    %551 = vmatprep.subr.mxu0 0.0
    %552 = vmatpush1.xpose.msra.mxu0 0.0
    %553 = vmatprep.subr.mxu0 0.0
    %554 = vmatpush1.xpose.msra.mxu0 0.0
    %555 = vmatprep.subr.mxu0 0.0
    %556 = vmatpush1.xpose.msra.mxu0 0.0
    %557 = vmatprep.subr.mxu0 0.0
    %558 = vmatpush1.xpose.msra.mxu0 %v525
    %559 = vmatprep.subr.mxu0 0.0
    %560 = vmatpush2.xpose.msra.mxu0 0.0
    %561 = vmatprep.subr.mxu0 0.0
    %562 = vmatpush2.xpose.msra.mxu0 0.0
    %563 = vmatprep.subr.mxu0 0.0
    %564 = vmatpush2.xpose.msra.mxu0 0.0
    %565 = vmatprep.subr.mxu0 0.0
    %566 = vmatpush2.xpose.msra.mxu0 0.0
    %567 = vmatprep.subr.mxu0 0.0
    %568 = vmatpush2.xpose.msra.mxu0 0.0
    %569 = vmatprep.subr.mxu0 0.0
    %570 = vmatpush2.xpose.msra.mxu0 0.0
    %571 = vmatprep.subr.mxu0 0.0
    %572 = vmatpush2.xpose.msra.mxu0 0.0
    %573 = vmatprep.subr.mxu0 0.0
    %574 = vmatpush2.xpose.msra.mxu0 0.0
    %575 = vmatprep.subr.mxu0 0.0
    %576 = vmatpush2.xpose.msra.mxu0 0.0
    %577 = vmatprep.subr.mxu0 0.0
    %578 = vmatpush2.xpose.msra.mxu0 0.0
    %579 = vmatprep.subr.mxu0 0.0
    %580 = vmatpush2.xpose.msra.mxu0 0.0
    %581 = vmatprep.subr.mxu0 0.0
    %582 = vmatpush2.xpose.msra.mxu0 0.0
    %583 = vmatprep.subr.mxu0 0.0
    %584 = vmatpush2.xpose.msra.mxu0 0.0
    %585 = vmatprep.subr.mxu0 0.0
    %586 = vmatpush2.xpose.msra.mxu0 0.0
    %587 = vmatprep.subr.mxu0 0.0
    %588 = vmatpush2.xpose.msra.mxu0 0.0
    %589 = vmatprep.subr.mxu0 0.0
    %590 = vmatpush2.xpose.msra.mxu0 0.0
    %591 = vmatprep.mubr.f32.mxu0 0.0
    %592 = vmatmul.mubr.f32.gmra.mxu0 %v522
    %v593 = vpop.f32.mrf.mxu0
    %v594 = vadd.f32 %v241, %v593
    %v595 = vpop.f32.mrf.mxu0
    %596 = vdwg.mxu0
    %v597 = vmul.f32 %v518, 1.442695
    %v598 = vpow.pop %v597
    %v599 = vmul.f32 %v594, 1.442695
    %v600 = vpow.pop %v599
    %vm601 = vcmask 64512
    %v602 = vsel %vm601, %v598, 0.0
    %603 = vadd.xlane.f32.xlu0 %v602
    %v604 = vpop.xlane.xlu0 %603
    %v605 = vsel %vm601, %v600, 0.0
    %606 = vadd.xlane.f32.xlu0 %v605
    %v607 = vpop.xlane.xlu0 %606
    %v608 = vrcp.pop %v604
    %v609 = vrcp.pop %v607
    %v610 = vmul.f32 %v598, %v608
    %v611 = vmul.f32 %v600, %v609
    %v613 = vsel %vm601, %v610, 0
    %615 = vmatprep.subr.mxu0 0.0
    %616 = vmatpush1.msra.mxu0 0.0
    %617 = vmatprep.subr.mxu0 0.0
    %618 = vmatpush1.msra.mxu0 0.0
    %619 = vmatprep.subr.mxu0 0.0
    %620 = vmatpush1.msra.mxu0 0.0
    %621 = vmatprep.subr.mxu0 0.0
    %622 = vmatpush1.msra.mxu0 0.0
    %623 = vmatprep.subr.mxu0 0.0
    %624 = vmatpush1.msra.mxu0 0.0
    %625 = vmatprep.subr.mxu0 0.0
    %626 = vmatpush1.msra.mxu0 0.0
    %627 = vmatprep.subr.mxu0 0.0
    %628 = vmatpush1.msra.mxu0 0.0
    %629 = vmatprep.subr.mxu0 0.0
    %630 = vmatpush1.msra.mxu0 0.0
    %631 = vmatprep.subr.mxu0 0.0
    %632 = vmatpush1.msra.mxu0 0.0
    %633 = vmatprep.subr.mxu0 0.0
    %634 = vmatpush1.msra.mxu0 0.0
    %635 = vmatprep.subr.mxu0 0.0
    %636 = vmatpush1.msra.mxu0 0.0
    %637 = vmatprep.subr.mxu0 0.0
    %638 = vmatpush1.msra.mxu0 0.0
    %639 = vmatprep.subr.mxu0 0.0
    %640 = vmatpush1.msra.mxu0 0.0
    %641 = vmatprep.subr.mxu0 0.0
    %642 = vmatpush1.msra.mxu0 0.0
    %643 = vmatprep.subr.mxu0 0.0
    %644 = vmatpush1.msra.mxu0 0.0
    %645 = vmatprep.subr.mxu0 0.0
    %646 = vmatpush1.msra.mxu0 %v438
    %647 = vmatprep.subr.mxu0 0.0
    %648 = vmatpush2.msra.mxu0 0.0
    %649 = vmatprep.subr.mxu0 0.0
    %650 = vmatpush2.msra.mxu0 0.0
    %651 = vmatprep.subr.mxu0 0.0
    %652 = vmatpush2.msra.mxu0 0.0
    %653 = vmatprep.subr.mxu0 0.0
    %654 = vmatpush2.msra.mxu0 0.0
    %655 = vmatprep.subr.mxu0 0.0
    %656 = vmatpush2.msra.mxu0 0.0
    %657 = vmatprep.subr.mxu0 0.0
    %658 = vmatpush2.msra.mxu0 0.0
    %659 = vmatprep.subr.mxu0 0.0
    %660 = vmatpush2.msra.mxu0 0.0
    %661 = vmatprep.subr.mxu0 0.0
    %662 = vmatpush2.msra.mxu0 0.0
    %663 = vmatprep.subr.mxu0 0.0
    %664 = vmatpush2.msra.mxu0 0.0
    %665 = vmatprep.subr.mxu0 0.0
    %666 = vmatpush2.msra.mxu0 0.0
    %667 = vmatprep.subr.mxu0 0.0
    %668 = vmatpush2.msra.mxu0 0.0
    %669 = vmatprep.subr.mxu0 0.0
    %670 = vmatpush2.msra.mxu0 0.0
    %671 = vmatprep.subr.mxu0 0.0
    %672 = vmatpush2.msra.mxu0 0.0
    %673 = vmatprep.subr.mxu0 0.0
    %674 = vmatpush2.msra.mxu0 0.0
    %675 = vmatprep.subr.mxu0 0.0
    %676 = vmatpush2.msra.mxu0 0.0
    %677 = vmatprep.subr.mxu0 0.0
    %678 = vmatpush2.msra.mxu0 0.0
    %679 = vmatprep.mubr.f32.mxu0 0.0
    %680 = vmatmul.mubr.f32.gmra.mxu0 %v613
    %v681 = vpop.f32.mrf.mxu0
    %v682 = vadd.f32 0.0, %v681
    %v683 = vpop.f32.mrf.mxu0
    %684 = vdwg.mxu0
    %v686 = vsel %vm601, %v611, 0
    %688 = vmatprep.subr.mxu0 0.0
    %689 = vmatpush1.msra.mxu0 0.0
    %690 = vmatprep.subr.mxu0 0.0
    %691 = vmatpush1.msra.mxu0 0.0
    %692 = vmatprep.subr.mxu0 0.0
    %693 = vmatpush1.msra.mxu0 0.0
    %694 = vmatprep.subr.mxu0 0.0
    %695 = vmatpush1.msra.mxu0 0.0
    %696 = vmatprep.subr.mxu0 0.0
    %697 = vmatpush1.msra.mxu0 0.0
    %698 = vmatprep.subr.mxu0 0.0
    %699 = vmatpush1.msra.mxu0 0.0
    %700 = vmatprep.subr.mxu0 0.0
    %701 = vmatpush1.msra.mxu0 0.0
    %702 = vmatprep.subr.mxu0 0.0
    %703 = vmatpush1.msra.mxu0 0.0
    %704 = vmatprep.subr.mxu0 0.0
    %705 = vmatpush1.msra.mxu0 0.0
    %706 = vmatprep.subr.mxu0 0.0
    %707 = vmatpush1.msra.mxu0 0.0
    %708 = vmatprep.subr.mxu0 0.0
    %709 = vmatpush1.msra.mxu0 0.0
    %710 = vmatprep.subr.mxu0 0.0
    %711 = vmatpush1.msra.mxu0 0.0
    %712 = vmatprep.subr.mxu0 0.0
    %713 = vmatpush1.msra.mxu0 0.0
    %714 = vmatprep.subr.mxu0 0.0
    %715 = vmatpush1.msra.mxu0 0.0
    %716 = vmatprep.subr.mxu0 0.0
    %717 = vmatpush1.msra.mxu0 0.0
    %718 = vmatprep.subr.mxu0 0.0
    %719 = vmatpush1.msra.mxu0 %v441
    %720 = vmatprep.subr.mxu0 0.0
    %721 = vmatpush2.msra.mxu0 0.0
    %722 = vmatprep.subr.mxu0 0.0
    %723 = vmatpush2.msra.mxu0 0.0
    %724 = vmatprep.subr.mxu0 0.0
    %725 = vmatpush2.msra.mxu0 0.0
    %726 = vmatprep.subr.mxu0 0.0
    %727 = vmatpush2.msra.mxu0 0.0
    %728 = vmatprep.subr.mxu0 0.0
    %729 = vmatpush2.msra.mxu0 0.0
    %730 = vmatprep.subr.mxu0 0.0
    %731 = vmatpush2.msra.mxu0 0.0
    %732 = vmatprep.subr.mxu0 0.0
    %733 = vmatpush2.msra.mxu0 0.0
    %734 = vmatprep.subr.mxu0 0.0
    %735 = vmatpush2.msra.mxu0 0.0
    %736 = vmatprep.subr.mxu0 0.0
    %737 = vmatpush2.msra.mxu0 0.0
    %738 = vmatprep.subr.mxu0 0.0
    %739 = vmatpush2.msra.mxu0 0.0
    %740 = vmatprep.subr.mxu0 0.0
    %741 = vmatpush2.msra.mxu0 0.0
    %742 = vmatprep.subr.mxu0 0.0
    %743 = vmatpush2.msra.mxu0 0.0
    %744 = vmatprep.subr.mxu0 0.0
    %745 = vmatpush2.msra.mxu0 0.0
    %746 = vmatprep.subr.mxu0 0.0
    %747 = vmatpush2.msra.mxu0 0.0
    %748 = vmatprep.subr.mxu0 0.0
    %749 = vmatpush2.msra.mxu0 0.0
    %750 = vmatprep.subr.mxu0 0.0
    %751 = vmatpush2.msra.mxu0 0.0
    %752 = vmatprep.mubr.f32.mxu0 0.0
    %753 = vmatmul.mubr.f32.gmra.mxu0 %v686
    %v754 = vpop.f32.mrf.mxu0
    %v755 = vadd.f32 0.0, %v754
    %v756 = vpop.f32.mrf.mxu0
    %757 = vdwg.mxu0
    %v758 = vpack.c.bf16 %v755, %v682
    %v759 = vld [vmem:[%s4] sm:$0xf]
    %v760 = vld [vmem:[%s4 + $0x4] sm:$0xf]
    %s761 = scalar_lea.vmem %s3, 16
    %v762 = vld [vmem:[%s761] sm:$0xf]
    %v763 = vld [vmem:[%s761 + $0x4] sm:$0xf]
    %v764 = vld [vmem:[%s761 + $0x8] sm:$0xf]
    %v765 = vld [vmem:[%s761 + $0xc] sm:$0xf]
    %s766 = scalar_lea.vmem %s3, 48
    %v767 = vld [vmem:[%s766] sm:$0xf]
    %v768 = vld [vmem:[%s766 + $0x4] sm:$0xf]
    %v769 = vld [vmem:[%s766 + $0x8] sm:$0xf]
    %v770 = vld [vmem:[%s766 + $0xc] sm:$0xf]
    %s771 = scalar_lea.vmem %s3, 80
    %v772 = vld [vmem:[%s771] sm:$0xf]
    %v773 = vld [vmem:[%s771 + $0x4] sm:$0xf]
    %v774 = vld [vmem:[%s771 + $0x8] sm:$0xf]
    %v775 = vld [vmem:[%s771 + $0xc] sm:$0xf]
    %s776 = scalar_lea.vmem %s8, 1
    %v777 = vld [vmem:[%s776] sm:$0x1]
    %v779 = vlaneseq
    %v780 = vshrl.u32 %v779, 7
    %v781 = vsub.s32 0, %v780
    %v782 = vrot.slane %v777, %v781
    %v788 = vunpack.c.l.b16 %v762
    %v789 = vunpack.c.l.b16 %v763
    %v790 = vunpack.c.l.b16 %v764
    %v791 = vunpack.c.l.b16 %v765
    %v792 = vpack.c.b16 %v789, %v788
    %v793 = vpack.c.b16 %v791, %v790
    %796 = vmatprep.subr.bf16.mxu0 0
    %797 = vmatpush1.bf16.msra.mxu0 0
    %798 = vmatprep.subr.bf16.mxu0 0
    %799 = vmatpush1.bf16.msra.mxu0 0
    %800 = vmatprep.subr.bf16.mxu0 0
    %801 = vmatpush1.bf16.msra.mxu0 0
    %802 = vmatprep.subr.bf16.mxu0 0
    %803 = vmatpush1.bf16.msra.mxu0 0
    %804 = vmatprep.subr.bf16.mxu0 0
    %805 = vmatpush1.bf16.msra.mxu0 0
    %806 = vmatprep.subr.bf16.mxu0 0
    %807 = vmatpush1.bf16.msra.mxu0 0
    %808 = vmatprep.subr.bf16.mxu0 0
    %809 = vmatpush1.bf16.msra.mxu0 %v793
    %810 = vmatprep.subr.bf16.mxu0 0
    %811 = vmatpush1.bf16.msra.mxu0 %v792
    %812 = vmatprep.subr.bf16.mxu0 0
    %813 = vmatpush2.bf16.msra.mxu0 0
    %814 = vmatprep.subr.bf16.mxu0 0
    %815 = vmatpush2.bf16.msra.mxu0 0
    %816 = vmatprep.subr.bf16.mxu0 0
    %817 = vmatpush2.bf16.msra.mxu0 0
    %818 = vmatprep.subr.bf16.mxu0 0
    %819 = vmatpush2.bf16.msra.mxu0 0
    %820 = vmatprep.subr.bf16.mxu0 0
    %821 = vmatpush2.bf16.msra.mxu0 0
    %822 = vmatprep.subr.bf16.mxu0 0
    %823 = vmatpush2.bf16.msra.mxu0 0
    %824 = vmatprep.subr.bf16.mxu0 0
    %825 = vmatpush2.bf16.msra.mxu0 0
    %826 = vmatprep.subr.bf16.mxu0 0
    %827 = vmatpush2.bf16.msra.mxu0 0
    %828 = vmatprep.mubr.bf16.mxu0 0
    %829 = vmatmul.mubr.bf16.gmra.mxu0 %v279
    %v830 = vpop.f32.mrf.mxu0
    %v831 = vadd.f32 %v782, %v830
    %v832 = vpop.f32.mrf.mxu0
    %v833 = vpop.f32.mrf.mxu0
    %v834 = vadd.f32 %v782, %v833
    %v835 = vpop.f32.mrf.mxu0
    %836 = vdwg.mxu0
    %s837 = scalar_lea.vmem %s8, 3
    %v838 = vld [vmem:[%s837] sm:$0x1]
    %v840 = vlaneseq
    %v841 = vshrl.u32 %v840, 7
    %v842 = vsub.s32 0, %v841
    %v843 = vrot.slane %v838, %v842
    %v849 = vunpack.c.l.b16 %v767
    %v850 = vunpack.c.l.b16 %v768
    %v851 = vunpack.c.l.b16 %v769
    %v852 = vunpack.c.l.b16 %v770
    %v853 = vpack.c.b16 %v850, %v849
    %v854 = vpack.c.b16 %v852, %v851
    %857 = vmatprep.subr.bf16.mxu0 0
    %858 = vmatpush1.bf16.msra.mxu0 0
    %859 = vmatprep.subr.bf16.mxu0 0
    %860 = vmatpush1.bf16.msra.mxu0 0
    %861 = vmatprep.subr.bf16.mxu0 0
    %862 = vmatpush1.bf16.msra.mxu0 0
    %863 = vmatprep.subr.bf16.mxu0 0
    %864 = vmatpush1.bf16.msra.mxu0 0
    %865 = vmatprep.subr.bf16.mxu0 0
    %866 = vmatpush1.bf16.msra.mxu0 0
    %867 = vmatprep.subr.bf16.mxu0 0
    %868 = vmatpush1.bf16.msra.mxu0 0
    %869 = vmatprep.subr.bf16.mxu0 0
    %870 = vmatpush1.bf16.msra.mxu0 %v854
    %871 = vmatprep.subr.bf16.mxu0 0
    %872 = vmatpush1.bf16.msra.mxu0 %v853
    %873 = vmatprep.subr.bf16.mxu0 0
    %874 = vmatpush2.bf16.msra.mxu0 0
    %875 = vmatprep.subr.bf16.mxu0 0
    %876 = vmatpush2.bf16.msra.mxu0 0
    %877 = vmatprep.subr.bf16.mxu0 0
    %878 = vmatpush2.bf16.msra.mxu0 0
    %879 = vmatprep.subr.bf16.mxu0 0
    %880 = vmatpush2.bf16.msra.mxu0 0
    %881 = vmatprep.subr.bf16.mxu0 0
    %882 = vmatpush2.bf16.msra.mxu0 0
    %883 = vmatprep.subr.bf16.mxu0 0
    %884 = vmatpush2.bf16.msra.mxu0 0
    %885 = vmatprep.subr.bf16.mxu0 0
    %886 = vmatpush2.bf16.msra.mxu0 0
    %887 = vmatprep.subr.bf16.mxu0 0
    %888 = vmatpush2.bf16.msra.mxu0 0
    %889 = vmatprep.mubr.bf16.mxu0 0
    %890 = vmatmul.mubr.bf16.gmra.mxu0 %v279
    %v891 = vpop.f32.mrf.mxu0
    %v892 = vadd.f32 %v843, %v891
    %v893 = vpop.f32.mrf.mxu0
    %v894 = vpop.f32.mrf.mxu0
    %v895 = vadd.f32 %v843, %v894
    %v896 = vpop.f32.mrf.mxu0
    %897 = vdwg.mxu0
    %s898 = scalar_lea.vmem %s8, 5
    %v899 = vld [vmem:[%s898] sm:$0x1]
    %v901 = vlaneseq
    %v902 = vshrl.u32 %v901, 7
    %v903 = vsub.s32 0, %v902
    %v904 = vrot.slane %v899, %v903
    %v910 = vunpack.c.l.b16 %v772
    %v911 = vunpack.c.l.b16 %v773
    %v912 = vunpack.c.l.b16 %v774
    %v913 = vunpack.c.l.b16 %v775
    %v914 = vpack.c.b16 %v911, %v910
    %v915 = vpack.c.b16 %v913, %v912
    %918 = vmatprep.subr.bf16.mxu0 0
    %919 = vmatpush1.bf16.msra.mxu0 0
    %920 = vmatprep.subr.bf16.mxu0 0
    %921 = vmatpush1.bf16.msra.mxu0 0
    %922 = vmatprep.subr.bf16.mxu0 0
    %923 = vmatpush1.bf16.msra.mxu0 0
    %924 = vmatprep.subr.bf16.mxu0 0
    %925 = vmatpush1.bf16.msra.mxu0 0
    %926 = vmatprep.subr.bf16.mxu0 0
    %927 = vmatpush1.bf16.msra.mxu0 0
    %928 = vmatprep.subr.bf16.mxu0 0
    %929 = vmatpush1.bf16.msra.mxu0 0
    %930 = vmatprep.subr.bf16.mxu0 0
    %931 = vmatpush1.bf16.msra.mxu0 %v915
    %932 = vmatprep.subr.bf16.mxu0 0
    %933 = vmatpush1.bf16.msra.mxu0 %v914
    %934 = vmatprep.subr.bf16.mxu0 0
    %935 = vmatpush2.bf16.msra.mxu0 0
    %936 = vmatprep.subr.bf16.mxu0 0
    %937 = vmatpush2.bf16.msra.mxu0 0
    %938 = vmatprep.subr.bf16.mxu0 0
    %939 = vmatpush2.bf16.msra.mxu0 0
    %940 = vmatprep.subr.bf16.mxu0 0
    %941 = vmatpush2.bf16.msra.mxu0 0
    %942 = vmatprep.subr.bf16.mxu0 0
    %943 = vmatpush2.bf16.msra.mxu0 0
    %944 = vmatprep.subr.bf16.mxu0 0
    %945 = vmatpush2.bf16.msra.mxu0 0
    %946 = vmatprep.subr.bf16.mxu0 0
    %947 = vmatpush2.bf16.msra.mxu0 0
    %948 = vmatprep.subr.bf16.mxu0 0
    %949 = vmatpush2.bf16.msra.mxu0 0
    %950 = vmatprep.mubr.bf16.mxu0 0
    %951 = vmatmul.mubr.bf16.gmra.mxu0 %v279
    %v952 = vpop.f32.mrf.mxu0
    %v953 = vadd.f32 %v904, %v952
    %v954 = vpop.f32.mrf.mxu0
    %v955 = vpop.f32.mrf.mxu0
    %v956 = vadd.f32 %v904, %v955
    %v957 = vpop.f32.mrf.mxu0
    %958 = vdwg.mxu0
    %v960 = vsel %vm444, %v831, 0
    %v963 = vsel %vm444, %v892, 0
    %965 = vmatprep.subr.mxu0 0.0
    %966 = vmatpush1.xpose.msra.mxu0 0.0
    %967 = vmatprep.subr.mxu0 0.0
    %968 = vmatpush1.xpose.msra.mxu0 0.0
    %969 = vmatprep.subr.mxu0 0.0
    %970 = vmatpush1.xpose.msra.mxu0 0.0
    %971 = vmatprep.subr.mxu0 0.0
    %972 = vmatpush1.xpose.msra.mxu0 0.0
    %973 = vmatprep.subr.mxu0 0.0
    %974 = vmatpush1.xpose.msra.mxu0 0.0
    %975 = vmatprep.subr.mxu0 0.0
    %976 = vmatpush1.xpose.msra.mxu0 0.0
    %977 = vmatprep.subr.mxu0 0.0
    %978 = vmatpush1.xpose.msra.mxu0 0.0
    %979 = vmatprep.subr.mxu0 0.0
    %980 = vmatpush1.xpose.msra.mxu0 0.0
    %981 = vmatprep.subr.mxu0 0.0
    %982 = vmatpush1.xpose.msra.mxu0 0.0
    %983 = vmatprep.subr.mxu0 0.0
    %984 = vmatpush1.xpose.msra.mxu0 0.0
    %985 = vmatprep.subr.mxu0 0.0
    %986 = vmatpush1.xpose.msra.mxu0 0.0
    %987 = vmatprep.subr.mxu0 0.0
    %988 = vmatpush1.xpose.msra.mxu0 0.0
    %989 = vmatprep.subr.mxu0 0.0
    %990 = vmatpush1.xpose.msra.mxu0 0.0
    %991 = vmatprep.subr.mxu0 0.0
    %992 = vmatpush1.xpose.msra.mxu0 0.0
    %993 = vmatprep.subr.mxu0 0.0
    %994 = vmatpush1.xpose.msra.mxu0 0.0
    %995 = vmatprep.subr.mxu0 0.0
    %996 = vmatpush1.xpose.msra.mxu0 %v963
    %997 = vmatprep.subr.mxu0 0.0
    %998 = vmatpush2.xpose.msra.mxu0 0.0
    %999 = vmatprep.subr.mxu0 0.0
    %1000 = vmatpush2.xpose.msra.mxu0 0.0
    %1001 = vmatprep.subr.mxu0 0.0
    %1002 = vmatpush2.xpose.msra.mxu0 0.0
    %1003 = vmatprep.subr.mxu0 0.0
    %1004 = vmatpush2.xpose.msra.mxu0 0.0
    %1005 = vmatprep.subr.mxu0 0.0
    %1006 = vmatpush2.xpose.msra.mxu0 0.0
    %1007 = vmatprep.subr.mxu0 0.0
    %1008 = vmatpush2.xpose.msra.mxu0 0.0
    %1009 = vmatprep.subr.mxu0 0.0
    %1010 = vmatpush2.xpose.msra.mxu0 0.0
    %1011 = vmatprep.subr.mxu0 0.0
    %1012 = vmatpush2.xpose.msra.mxu0 0.0
    %1013 = vmatprep.subr.mxu0 0.0
    %1014 = vmatpush2.xpose.msra.mxu0 0.0
    %1015 = vmatprep.subr.mxu0 0.0
    %1016 = vmatpush2.xpose.msra.mxu0 0.0
    %1017 = vmatprep.subr.mxu0 0.0
    %1018 = vmatpush2.xpose.msra.mxu0 0.0
    %1019 = vmatprep.subr.mxu0 0.0
    %1020 = vmatpush2.xpose.msra.mxu0 0.0
    %1021 = vmatprep.subr.mxu0 0.0
    %1022 = vmatpush2.xpose.msra.mxu0 0.0
    %1023 = vmatprep.subr.mxu0 0.0
    %1024 = vmatpush2.xpose.msra.mxu0 0.0
    %1025 = vmatprep.subr.mxu0 0.0
    %1026 = vmatpush2.xpose.msra.mxu0 0.0
    %1027 = vmatprep.subr.mxu0 0.0
    %1028 = vmatpush2.xpose.msra.mxu0 0.0
    %1029 = vmatprep.mubr.f32.mxu0 0.0
    %1030 = vmatmul.mubr.f32.gmra.mxu0 %v960
    %v1031 = vpop.f32.mrf.mxu0
    %v1032 = vadd.f32 %v237, %v1031
    %v1033 = vpop.f32.mrf.mxu0
    %1034 = vdwg.mxu0
    %v1036 = vsel %vm444, %v834, 0
    %v1039 = vsel %vm444, %v895, 0
    %1041 = vmatprep.subr.mxu0 0.0
    %1042 = vmatpush1.xpose.msra.mxu0 0.0
    %1043 = vmatprep.subr.mxu0 0.0
    %1044 = vmatpush1.xpose.msra.mxu0 0.0
    %1045 = vmatprep.subr.mxu0 0.0
    %1046 = vmatpush1.xpose.msra.mxu0 0.0
    %1047 = vmatprep.subr.mxu0 0.0
    %1048 = vmatpush1.xpose.msra.mxu0 0.0
    %1049 = vmatprep.subr.mxu0 0.0
    %1050 = vmatpush1.xpose.msra.mxu0 0.0
    %1051 = vmatprep.subr.mxu0 0.0
    %1052 = vmatpush1.xpose.msra.mxu0 0.0
    %1053 = vmatprep.subr.mxu0 0.0
    %1054 = vmatpush1.xpose.msra.mxu0 0.0
    %1055 = vmatprep.subr.mxu0 0.0
    %1056 = vmatpush1.xpose.msra.mxu0 0.0
    %1057 = vmatprep.subr.mxu0 0.0
    %1058 = vmatpush1.xpose.msra.mxu0 0.0
    %1059 = vmatprep.subr.mxu0 0.0
    %1060 = vmatpush1.xpose.msra.mxu0 0.0
    %1061 = vmatprep.subr.mxu0 0.0
    %1062 = vmatpush1.xpose.msra.mxu0 0.0
    %1063 = vmatprep.subr.mxu0 0.0
    %1064 = vmatpush1.xpose.msra.mxu0 0.0
    %1065 = vmatprep.subr.mxu0 0.0
    %1066 = vmatpush1.xpose.msra.mxu0 0.0
    %1067 = vmatprep.subr.mxu0 0.0
    %1068 = vmatpush1.xpose.msra.mxu0 0.0
    %1069 = vmatprep.subr.mxu0 0.0
    %1070 = vmatpush1.xpose.msra.mxu0 0.0
    %1071 = vmatprep.subr.mxu0 0.0
    %1072 = vmatpush1.xpose.msra.mxu0 %v1039
    %1073 = vmatprep.subr.mxu0 0.0
    %1074 = vmatpush2.xpose.msra.mxu0 0.0
    %1075 = vmatprep.subr.mxu0 0.0
    %1076 = vmatpush2.xpose.msra.mxu0 0.0
    %1077 = vmatprep.subr.mxu0 0.0
    %1078 = vmatpush2.xpose.msra.mxu0 0.0
    %1079 = vmatprep.subr.mxu0 0.0
    %1080 = vmatpush2.xpose.msra.mxu0 0.0
    %1081 = vmatprep.subr.mxu0 0.0
    %1082 = vmatpush2.xpose.msra.mxu0 0.0
    %1083 = vmatprep.subr.mxu0 0.0
    %1084 = vmatpush2.xpose.msra.mxu0 0.0
    %1085 = vmatprep.subr.mxu0 0.0
    %1086 = vmatpush2.xpose.msra.mxu0 0.0
    %1087 = vmatprep.subr.mxu0 0.0
    %1088 = vmatpush2.xpose.msra.mxu0 0.0
    %1089 = vmatprep.subr.mxu0 0.0
    %1090 = vmatpush2.xpose.msra.mxu0 0.0
    %1091 = vmatprep.subr.mxu0 0.0
    %1092 = vmatpush2.xpose.msra.mxu0 0.0
    %1093 = vmatprep.subr.mxu0 0.0
    %1094 = vmatpush2.xpose.msra.mxu0 0.0
    %1095 = vmatprep.subr.mxu0 0.0
    %1096 = vmatpush2.xpose.msra.mxu0 0.0
    %1097 = vmatprep.subr.mxu0 0.0
    %1098 = vmatpush2.xpose.msra.mxu0 0.0
    %1099 = vmatprep.subr.mxu0 0.0
    %1100 = vmatpush2.xpose.msra.mxu0 0.0
    %1101 = vmatprep.subr.mxu0 0.0
    %1102 = vmatpush2.xpose.msra.mxu0 0.0
    %1103 = vmatprep.subr.mxu0 0.0
    %1104 = vmatpush2.xpose.msra.mxu0 0.0
    %1105 = vmatprep.mubr.f32.mxu0 0.0
    %1106 = vmatmul.mubr.f32.gmra.mxu0 %v1036
    %v1107 = vpop.f32.mrf.mxu0
    %v1108 = vadd.f32 %v241, %v1107
    %v1109 = vpop.f32.mrf.mxu0
    %1110 = vdwg.mxu0
    %v1111 = vmul.f32 %v1032, 1.442695
    %v1112 = vpow.pop %v1111
    %v1113 = vmul.f32 %v1108, 1.442695
    %v1114 = vpow.pop %v1113
    %v1115 = vsel %vm601, %v1112, 0.0
    %1116 = vadd.xlane.f32.xlu0 %v1115
    %v1117 = vpop.xlane.xlu0 %1116
    %v1118 = vsel %vm601, %v1114, 0.0
    %1119 = vadd.xlane.f32.xlu0 %v1118
    %v1120 = vpop.xlane.xlu0 %1119
    %v1121 = vrcp.pop %v1117
    %v1122 = vrcp.pop %v1120
    %v1123 = vmul.f32 %v1112, %v1121
    %v1124 = vmul.f32 %v1114, %v1122
    %v1126 = vsel %vm601, %v1123, 0
    %1128 = vmatprep.subr.mxu0 0.0
    %1129 = vmatpush1.msra.mxu0 0.0
    %1130 = vmatprep.subr.mxu0 0.0
    %1131 = vmatpush1.msra.mxu0 0.0
    %1132 = vmatprep.subr.mxu0 0.0
    %1133 = vmatpush1.msra.mxu0 0.0
    %1134 = vmatprep.subr.mxu0 0.0
    %1135 = vmatpush1.msra.mxu0 0.0
    %1136 = vmatprep.subr.mxu0 0.0
    %1137 = vmatpush1.msra.mxu0 0.0
    %1138 = vmatprep.subr.mxu0 0.0
    %1139 = vmatpush1.msra.mxu0 0.0
    %1140 = vmatprep.subr.mxu0 0.0
    %1141 = vmatpush1.msra.mxu0 0.0
    %1142 = vmatprep.subr.mxu0 0.0
    %1143 = vmatpush1.msra.mxu0 0.0
    %1144 = vmatprep.subr.mxu0 0.0
    %1145 = vmatpush1.msra.mxu0 0.0
    %1146 = vmatprep.subr.mxu0 0.0
    %1147 = vmatpush1.msra.mxu0 0.0
    %1148 = vmatprep.subr.mxu0 0.0
    %1149 = vmatpush1.msra.mxu0 0.0
    %1150 = vmatprep.subr.mxu0 0.0
    %1151 = vmatpush1.msra.mxu0 0.0
    %1152 = vmatprep.subr.mxu0 0.0
    %1153 = vmatpush1.msra.mxu0 0.0
    %1154 = vmatprep.subr.mxu0 0.0
    %1155 = vmatpush1.msra.mxu0 0.0
    %1156 = vmatprep.subr.mxu0 0.0
    %1157 = vmatpush1.msra.mxu0 0.0
    %1158 = vmatprep.subr.mxu0 0.0
    %1159 = vmatpush1.msra.mxu0 %v953
    %1160 = vmatprep.subr.mxu0 0.0
    %1161 = vmatpush2.msra.mxu0 0.0
    %1162 = vmatprep.subr.mxu0 0.0
    %1163 = vmatpush2.msra.mxu0 0.0
    %1164 = vmatprep.subr.mxu0 0.0
    %1165 = vmatpush2.msra.mxu0 0.0
    %1166 = vmatprep.subr.mxu0 0.0
    %1167 = vmatpush2.msra.mxu0 0.0
    %1168 = vmatprep.subr.mxu0 0.0
    %1169 = vmatpush2.msra.mxu0 0.0
    %1170 = vmatprep.subr.mxu0 0.0
    %1171 = vmatpush2.msra.mxu0 0.0
    %1172 = vmatprep.subr.mxu0 0.0
    %1173 = vmatpush2.msra.mxu0 0.0
    %1174 = vmatprep.subr.mxu0 0.0
    %1175 = vmatpush2.msra.mxu0 0.0
    %1176 = vmatprep.subr.mxu0 0.0
    %1177 = vmatpush2.msra.mxu0 0.0
    %1178 = vmatprep.subr.mxu0 0.0
    %1179 = vmatpush2.msra.mxu0 0.0
    %1180 = vmatprep.subr.mxu0 0.0
    %1181 = vmatpush2.msra.mxu0 0.0
    %1182 = vmatprep.subr.mxu0 0.0
    %1183 = vmatpush2.msra.mxu0 0.0
    %1184 = vmatprep.subr.mxu0 0.0
    %1185 = vmatpush2.msra.mxu0 0.0
    %1186 = vmatprep.subr.mxu0 0.0
    %1187 = vmatpush2.msra.mxu0 0.0
    %1188 = vmatprep.subr.mxu0 0.0
    %1189 = vmatpush2.msra.mxu0 0.0
    %1190 = vmatprep.subr.mxu0 0.0
    %1191 = vmatpush2.msra.mxu0 0.0
    %1192 = vmatprep.mubr.f32.mxu0 0.0
    %1193 = vmatmul.mubr.f32.gmra.mxu0 %v1126
    %v1194 = vpop.f32.mrf.mxu0
    %v1195 = vadd.f32 0.0, %v1194
    %v1196 = vpop.f32.mrf.mxu0
    %1197 = vdwg.mxu0
    %v1199 = vsel %vm601, %v1124, 0
    %1201 = vmatprep.subr.mxu0 0.0
    %1202 = vmatpush1.msra.mxu0 0.0
    %1203 = vmatprep.subr.mxu0 0.0
    %1204 = vmatpush1.msra.mxu0 0.0
    %1205 = vmatprep.subr.mxu0 0.0
    %1206 = vmatpush1.msra.mxu0 0.0
    %1207 = vmatprep.subr.mxu0 0.0
    %1208 = vmatpush1.msra.mxu0 0.0
    %1209 = vmatprep.subr.mxu0 0.0
    %1210 = vmatpush1.msra.mxu0 0.0
    %1211 = vmatprep.subr.mxu0 0.0
    %1212 = vmatpush1.msra.mxu0 0.0
    %1213 = vmatprep.subr.mxu0 0.0
    %1214 = vmatpush1.msra.mxu0 0.0
    %1215 = vmatprep.subr.mxu0 0.0
    %1216 = vmatpush1.msra.mxu0 0.0
    %1217 = vmatprep.subr.mxu0 0.0
    %1218 = vmatpush1.msra.mxu0 0.0
    %1219 = vmatprep.subr.mxu0 0.0
    %1220 = vmatpush1.msra.mxu0 0.0
    %1221 = vmatprep.subr.mxu0 0.0
    %1222 = vmatpush1.msra.mxu0 0.0
    %1223 = vmatprep.subr.mxu0 0.0
    %1224 = vmatpush1.msra.mxu0 0.0
    %1225 = vmatprep.subr.mxu0 0.0
    %1226 = vmatpush1.msra.mxu0 0.0
    %1227 = vmatprep.subr.mxu0 0.0
    %1228 = vmatpush1.msra.mxu0 0.0
    %1229 = vmatprep.subr.mxu0 0.0
    %1230 = vmatpush1.msra.mxu0 0.0
    %1231 = vmatprep.subr.mxu0 0.0
    %1232 = vmatpush1.msra.mxu0 %v956
    %1233 = vmatprep.subr.mxu0 0.0
    %1234 = vmatpush2.msra.mxu0 0.0
    %1235 = vmatprep.subr.mxu0 0.0
    %1236 = vmatpush2.msra.mxu0 0.0
    %1237 = vmatprep.subr.mxu0 0.0
    %1238 = vmatpush2.msra.mxu0 0.0
    %1239 = vmatprep.subr.mxu0 0.0
    %1240 = vmatpush2.msra.mxu0 0.0
    %1241 = vmatprep.subr.mxu0 0.0
    %1242 = vmatpush2.msra.mxu0 0.0
    %1243 = vmatprep.subr.mxu0 0.0
    %1244 = vmatpush2.msra.mxu0 0.0
    %1245 = vmatprep.subr.mxu0 0.0
    %1246 = vmatpush2.msra.mxu0 0.0
    %1247 = vmatprep.subr.mxu0 0.0
    %1248 = vmatpush2.msra.mxu0 0.0
    %1249 = vmatprep.subr.mxu0 0.0
    %1250 = vmatpush2.msra.mxu0 0.0
    %1251 = vmatprep.subr.mxu0 0.0
    %1252 = vmatpush2.msra.mxu0 0.0
    %1253 = vmatprep.subr.mxu0 0.0
    %1254 = vmatpush2.msra.mxu0 0.0
    %1255 = vmatprep.subr.mxu0 0.0
    %1256 = vmatpush2.msra.mxu0 0.0
    %1257 = vmatprep.subr.mxu0 0.0
    %1258 = vmatpush2.msra.mxu0 0.0
    %1259 = vmatprep.subr.mxu0 0.0
    %1260 = vmatpush2.msra.mxu0 0.0
    %1261 = vmatprep.subr.mxu0 0.0
    %1262 = vmatpush2.msra.mxu0 0.0
    %1263 = vmatprep.subr.mxu0 0.0
    %1264 = vmatpush2.msra.mxu0 0.0
    %1265 = vmatprep.mubr.f32.mxu0 0.0
    %1266 = vmatmul.mubr.f32.gmra.mxu0 %v1199
    %v1267 = vpop.f32.mrf.mxu0
    %v1268 = vadd.f32 0.0, %v1267
    %v1269 = vpop.f32.mrf.mxu0
    %1270 = vdwg.mxu0
    %v1271 = vpack.c.bf16 %v1268, %v1195
    %s1272 = scalar_lea.vmem %s4, 8
    %v1273 = vld [vmem:[%s1272] sm:$0xf]
    %v1274 = vld [vmem:[%s1272 + $0x4] sm:$0xf]
    %v1277 = vunpack.c.l.b16 %v1273
    %v1278 = vunpack.c.l.b16 %v1274
    %v1279 = vpack.c.b16 %v1278, %v1277
    %v1282 = vsel %vm444, %v1271, 0
    %1284 = vmatprep.subr.bf16.mxu0 0
    %1285 = vmatpush1.bf16.msra.mxu0 0
    %1286 = vmatprep.subr.bf16.mxu0 0
    %1287 = vmatpush1.bf16.msra.mxu0 0
    %1288 = vmatprep.subr.bf16.mxu0 0
    %1289 = vmatpush1.bf16.msra.mxu0 0
    %1290 = vmatprep.subr.bf16.mxu0 0
    %1291 = vmatpush1.bf16.msra.mxu0 0
    %1292 = vmatprep.subr.bf16.mxu0 0
    %1293 = vmatpush1.bf16.msra.mxu0 0
    %1294 = vmatprep.subr.bf16.mxu0 0
    %1295 = vmatpush1.bf16.msra.mxu0 0
    %1296 = vmatprep.subr.bf16.mxu0 0
    %1297 = vmatpush1.bf16.msra.mxu0 0
    %1298 = vmatprep.subr.bf16.mxu0 0
    %1299 = vmatpush1.bf16.msra.mxu0 %v1279
    %1300 = vmatprep.subr.bf16.mxu0 0
    %1301 = vmatpush2.bf16.msra.mxu0 0
    %1302 = vmatprep.subr.bf16.mxu0 0
    %1303 = vmatpush2.bf16.msra.mxu0 0
    %1304 = vmatprep.subr.bf16.mxu0 0
    %1305 = vmatpush2.bf16.msra.mxu0 0
    %1306 = vmatprep.subr.bf16.mxu0 0
    %1307 = vmatpush2.bf16.msra.mxu0 0
    %1308 = vmatprep.subr.bf16.mxu0 0
    %1309 = vmatpush2.bf16.msra.mxu0 0
    %1310 = vmatprep.subr.bf16.mxu0 0
    %1311 = vmatpush2.bf16.msra.mxu0 0
    %1312 = vmatprep.subr.bf16.mxu0 0
    %1313 = vmatpush2.bf16.msra.mxu0 0
    %1314 = vmatprep.subr.bf16.mxu0 0
    %1315 = vmatpush2.bf16.msra.mxu0 0
    %1316 = vmatprep.mubr.bf16.mxu0 0
    %1317 = vmatmul.mubr.bf16.gmra.mxu0 %v1282
    %v1318 = vpop.f32.mrf.mxu0
    %v1319 = vadd.f32 0.0, %v1318
    %v1320 = vpop.f32.mrf.mxu0
    %v1321 = vpop.f32.mrf.mxu0
    %v1322 = vadd.f32 0.0, %v1321
    %v1323 = vpop.f32.mrf.mxu0
    %1324 = vdwg.mxu0
    %v1327 = vunpack.c.l.b16 %v759
    %v1328 = vunpack.c.l.b16 %v760
    %v1329 = vpack.c.b16 %v1328, %v1327
    %v1332 = vsel %vm444, %v758, 0
    %1334 = vmatprep.subr.bf16.mxu0 0
    %1335 = vmatpush1.bf16.msra.mxu0 0
    %1336 = vmatprep.subr.bf16.mxu0 0
    %1337 = vmatpush1.bf16.msra.mxu0 0
    %1338 = vmatprep.subr.bf16.mxu0 0
    %1339 = vmatpush1.bf16.msra.mxu0 0
    %1340 = vmatprep.subr.bf16.mxu0 0
    %1341 = vmatpush1.bf16.msra.mxu0 0
    %1342 = vmatprep.subr.bf16.mxu0 0
    %1343 = vmatpush1.bf16.msra.mxu0 0
    %1344 = vmatprep.subr.bf16.mxu0 0
    %1345 = vmatpush1.bf16.msra.mxu0 0
    %1346 = vmatprep.subr.bf16.mxu0 0
    %1347 = vmatpush1.bf16.msra.mxu0 0
    %1348 = vmatprep.subr.bf16.mxu0 0
    %1349 = vmatpush1.bf16.msra.mxu0 %v1329
    %1350 = vmatprep.subr.bf16.mxu0 0
    %1351 = vmatpush2.bf16.msra.mxu0 0
    %1352 = vmatprep.subr.bf16.mxu0 0
    %1353 = vmatpush2.bf16.msra.mxu0 0
    %1354 = vmatprep.subr.bf16.mxu0 0
    %1355 = vmatpush2.bf16.msra.mxu0 0
    %1356 = vmatprep.subr.bf16.mxu0 0
    %1357 = vmatpush2.bf16.msra.mxu0 0
    %1358 = vmatprep.subr.bf16.mxu0 0
    %1359 = vmatpush2.bf16.msra.mxu0 0
    %1360 = vmatprep.subr.bf16.mxu0 0
    %1361 = vmatpush2.bf16.msra.mxu0 0
    %1362 = vmatprep.subr.bf16.mxu0 0
    %1363 = vmatpush2.bf16.msra.mxu0 0
    %1364 = vmatprep.subr.bf16.mxu0 0
    %1365 = vmatpush2.bf16.msra.mxu0 0
    %1366 = vmatprep.mubr.bf16.mxu0 0
    %1367 = vmatmul.mubr.bf16.gmra.mxu0 %v1332
    %v1368 = vpop.f32.mrf.mxu0
    %v1369 = vadd.f32 %v1319, %v1368
    %v1370 = vpop.f32.mrf.mxu0
    %v1371 = vpop.f32.mrf.mxu0
    %v1372 = vadd.f32 %v1322, %v1371
    %v1373 = vpop.f32.mrf.mxu0
    %1374 = vdwg.mxu0
    %s1375 = scalar_lea.vmem %s8, 6
    %v1376 = vld [vmem:[%s1375] sm:$0x1]
    %v1378 = vlaneseq
    %v1379 = vshrl.u32 %v1378, 7
    %v1380 = vsub.s32 0, %v1379
    %v1381 = vrot.slane %v1376, %v1380
    %v1383 = vadd.f32 %v1369, %v1381
    %v1384 = vadd.f32 %v1372, %v1381
    %v1385 = vadd.f32 %v206, %v1383
    %v1386 = vadd.f32 %v207, %v1384
    %s1387 = scalar_lea.vmem %s8, 7
    %v1388 = vld [vmem:[%s1387] sm:$0x1]
    %s1389 = scalar_lea.vmem %s8, 8
    %v1390 = vld [vmem:[%s1389] sm:$0x1]
    %v1391 = vsel %vm164, %v1385, 0.0
    %1392 = vadd.xlane.f32.xlu0 %v1391
    %v1393 = vpop.xlane.xlu0 %1392
    %v1394 = vsel %vm164, %v1386, 0.0
    %1395 = vadd.xlane.f32.xlu0 %v1394
    %v1396 = vpop.xlane.xlu0 %1395
    %v1397 = vmul.f32 %v1393, %v171
    %v1398 = vmul.f32 %v1396, %v171
    %v1399 = vsub.f32 %v1385, %v1397
    %v1400 = vsub.f32 %v1386, %v1398
    %v1401 = vmul.f32 %v1399, %v1399
    %v1402 = vmul.f32 %v1400, %v1400
    %v1403 = vsel %vm164, %v1401, 0.0
    %1404 = vadd.xlane.f32.xlu0 %v1403
    %v1405 = vpop.xlane.xlu0 %1404
    %v1406 = vsel %vm164, %v1402, 0.0
    %1407 = vadd.xlane.f32.xlu0 %v1406
    %v1408 = vpop.xlane.xlu0 %1407
    %v1409 = vmul.f32 %v1405, %v171
    %v1410 = vmul.f32 %v1408, %v171
    %v1411 = vadd.f32 %v1409, 1e-12
    %v1412 = vadd.f32 %v1410, 1e-12
    %v1413 = vrsqrt.pop %v1411
    %v1414 = vrsqrt.pop %v1412
    %v1415 = vmul.f32 %v1399, %v1413
    %v1416 = vmul.f32 %v1400, %v1414
    %v1418 = vlaneseq
    %v1419 = vshrl.u32 %v1418, 7
    %v1420 = vsub.s32 0, %v1419
    %v1421 = vrot.slane %v1388, %v1420
    %v1423 = vmul.f32 %v1415, %v1421
    %v1424 = vmul.f32 %v1416, %v1421
    %v1426 = vlaneseq
    %v1427 = vshrl.u32 %v1426, 7
    %v1428 = vsub.s32 0, %v1427
    %v1429 = vrot.slane %v1390, %v1428
    %v1431 = vadd.f32 %v1423, %v1429
    %v1432 = vadd.f32 %v1424, %v1429
    %v1433 = vpack.c.bf16 %v1432, %v1431
    %v1434 = vld [vmem:[%s5] sm:$0xf]
    %v1435 = vld [vmem:[%s5 + $0x4] sm:$0xf]
    %v1436 = vld [vmem:[%s5 + $0x8] sm:$0xf]
    %v1437 = vld [vmem:[%s5 + $0xc] sm:$0xf]
    %s1438 = scalar_lea.vmem %s8, 9
    %v1439 = vld [vmem:[%s1438] sm:$0x1]
    %v1441 = vlaneseq
    %v1442 = vshrl.u32 %v1441, 7
    %v1443 = vsub.s32 0, %v1442
    %v1444 = vrot.slane %v1439, %v1443
    %v1450 = vunpack.c.l.b16 %v1434
    %v1451 = vunpack.c.l.b16 %v1435
    %v1452 = vunpack.c.l.b16 %v1436
    %v1453 = vunpack.c.l.b16 %v1437
    %v1454 = vpack.c.b16 %v1451, %v1450
    %v1455 = vpack.c.b16 %v1453, %v1452
    %v1459 = vsel %vm164, %v1433, 0
    %1461 = vmatprep.subr.bf16.mxu0 0
    %1462 = vmatpush1.bf16.msra.mxu0 0
    %1463 = vmatprep.subr.bf16.mxu0 0
    %1464 = vmatpush1.bf16.msra.mxu0 0
    %1465 = vmatprep.subr.bf16.mxu0 0
    %1466 = vmatpush1.bf16.msra.mxu0 0
    %1467 = vmatprep.subr.bf16.mxu0 0
    %1468 = vmatpush1.bf16.msra.mxu0 0
    %1469 = vmatprep.subr.bf16.mxu0 0
    %1470 = vmatpush1.bf16.msra.mxu0 0
    %1471 = vmatprep.subr.bf16.mxu0 0
    %1472 = vmatpush1.bf16.msra.mxu0 0
    %1473 = vmatprep.subr.bf16.mxu0 0
    %1474 = vmatpush1.bf16.msra.mxu0 %v1455
    %1475 = vmatprep.subr.bf16.mxu0 0
    %1476 = vmatpush1.bf16.msra.mxu0 %v1454
    %1477 = vmatprep.subr.bf16.mxu0 0
    %1478 = vmatpush2.bf16.msra.mxu0 0
    %1479 = vmatprep.subr.bf16.mxu0 0
    %1480 = vmatpush2.bf16.msra.mxu0 0
    %1481 = vmatprep.subr.bf16.mxu0 0
    %1482 = vmatpush2.bf16.msra.mxu0 0
    %1483 = vmatprep.subr.bf16.mxu0 0
    %1484 = vmatpush2.bf16.msra.mxu0 0
    %1485 = vmatprep.subr.bf16.mxu0 0
    %1486 = vmatpush2.bf16.msra.mxu0 0
    %1487 = vmatprep.subr.bf16.mxu0 0
    %1488 = vmatpush2.bf16.msra.mxu0 0
    %1489 = vmatprep.subr.bf16.mxu0 0
    %1490 = vmatpush2.bf16.msra.mxu0 0
    %1491 = vmatprep.subr.bf16.mxu0 0
    %1492 = vmatpush2.bf16.msra.mxu0 0
    %1493 = vmatprep.mubr.bf16.mxu0 0
    %1494 = vmatmul.mubr.bf16.gmra.mxu0 %v1459
    %v1495 = vpop.f32.mrf.mxu0
    %v1496 = vadd.f32 %v1444, %v1495
    %v1497 = vpop.f32.mrf.mxu0
    %v1498 = vpop.f32.mrf.mxu0
    %v1499 = vadd.f32 %v1444, %v1498
    %v1500 = vpop.f32.mrf.mxu0
    %1501 = vdwg.mxu0
    %v1502 = vmul.f32 %v1496, 0.5
    %v1503 = vmul.f32 %v1499, 0.5
    %v1504 = vmul.f32 %v1496, 0.044715
    %v1505 = vmul.f32 %v1499, 0.044715
    %v1506 = vmul.f32 %v1504, %v1496
    %v1507 = vmul.f32 %v1505, %v1499
    %v1508 = vmul.f32 %v1506, %v1496
    %v1509 = vmul.f32 %v1507, %v1499
    %v1510 = vadd.f32 %v1496, %v1508
    %v1511 = vadd.f32 %v1499, %v1509
    %v1512 = vmul.f32 %v1510, 0.7978846
    %v1513 = vmul.f32 %v1511, 0.7978846
    %v1514 = vtanh.pop %v1512
    %v1515 = vtanh.pop %v1513
    %v1516 = vadd.f32 %v1514, 1.0
    %v1517 = vadd.f32 %v1515, 1.0
    %v1518 = vmul.f32 %v1502, %v1516
    %v1519 = vmul.f32 %v1503, %v1517
    %v1520 = vpack.c.bf16 %v1519, %v1518
    %v1521 = vld [vmem:[%s6] sm:$0xf]
    %v1522 = vld [vmem:[%s6 + $0x4] sm:$0xf]
    %v1523 = vld [vmem:[%s6 + $0x8] sm:$0xf]
    %v1524 = vld [vmem:[%s6 + $0xc] sm:$0xf]
    %v1525 = vld [vmem:[%s6 + $0x10] sm:$0xf]
    %v1526 = vld [vmem:[%s6 + $0x14] sm:$0xf]
    %v1527 = vld [vmem:[%s6 + $0x18] sm:$0xf]
    %v1528 = vld [vmem:[%s6 + $0x1c] sm:$0xf]
    %s1529 = scalar_lea.vmem %s8, 10
    %v1530 = vld [vmem:[%s1529] sm:$0x1]
    %v1532 = vlaneseq
    %v1533 = vshrl.u32 %v1532, 7
    %v1534 = vsub.s32 0, %v1533
    %v1535 = vrot.slane %v1530, %v1534
    %v1545 = vunpack.c.l.b16 %v1521
    %v1546 = vunpack.c.l.b16 %v1522
    %v1547 = vunpack.c.l.b16 %v1523
    %v1548 = vunpack.c.l.b16 %v1524
    %v1549 = vunpack.c.l.b16 %v1525
    %v1550 = vunpack.c.l.b16 %v1526
    %v1551 = vunpack.c.l.b16 %v1527
    %v1552 = vunpack.c.l.b16 %v1528
    %v1553 = vpack.c.b16 %v1546, %v1545
    %v1554 = vpack.c.b16 %v1548, %v1547
    %v1555 = vpack.c.b16 %v1550, %v1549
    %v1556 = vpack.c.b16 %v1552, %v1551
    %vm1561 = vcmask 523264
    %v1563 = vsel %vm1561, %v1520, 0
    %1565 = vmatprep.subr.bf16.mxu0 0
    %1566 = vmatpush1.bf16.msra.mxu0 0
    %1567 = vmatprep.subr.bf16.mxu0 0
    %1568 = vmatpush1.bf16.msra.mxu0 0
    %1569 = vmatprep.subr.bf16.mxu0 0
    %1570 = vmatpush1.bf16.msra.mxu0 0
    %1571 = vmatprep.subr.bf16.mxu0 0
    %1572 = vmatpush1.bf16.msra.mxu0 0
    %1573 = vmatprep.subr.bf16.mxu0 0
    %1574 = vmatpush1.bf16.msra.mxu0 %v1556
    %1575 = vmatprep.subr.bf16.mxu0 0
    %1576 = vmatpush1.bf16.msra.mxu0 %v1555
    %1577 = vmatprep.subr.bf16.mxu0 0
    %1578 = vmatpush1.bf16.msra.mxu0 %v1554
    %1579 = vmatprep.subr.bf16.mxu0 0
    %1580 = vmatpush1.bf16.msra.mxu0 %v1553
    %1581 = vmatprep.subr.bf16.mxu0 0
    %1582 = vmatpush2.bf16.msra.mxu0 0
    %1583 = vmatprep.subr.bf16.mxu0 0
    %1584 = vmatpush2.bf16.msra.mxu0 0
    %1585 = vmatprep.subr.bf16.mxu0 0
    %1586 = vmatpush2.bf16.msra.mxu0 0
    %1587 = vmatprep.subr.bf16.mxu0 0
    %1588 = vmatpush2.bf16.msra.mxu0 0
    %1589 = vmatprep.subr.bf16.mxu0 0
    %1590 = vmatpush2.bf16.msra.mxu0 0
    %1591 = vmatprep.subr.bf16.mxu0 0
    %1592 = vmatpush2.bf16.msra.mxu0 0
    %1593 = vmatprep.subr.bf16.mxu0 0
    %1594 = vmatpush2.bf16.msra.mxu0 0
    %1595 = vmatprep.subr.bf16.mxu0 0
    %1596 = vmatpush2.bf16.msra.mxu0 0
    %1597 = vmatprep.mubr.bf16.mxu0 0
    %1598 = vmatmul.mubr.bf16.gmra.mxu0 %v1563
    %v1599 = vpop.f32.mrf.mxu0
    %v1600 = vadd.f32 %v1535, %v1599
    %v1601 = vpop.f32.mrf.mxu0
    %v1602 = vpop.f32.mrf.mxu0
    %v1603 = vadd.f32 %v1535, %v1602
    %v1604 = vpop.f32.mrf.mxu0
    %1605 = vdwg.mxu0
    %v1606 = vadd.f32 %v1431, %v1600
    %v1607 = vadd.f32 %v1432, %v1603
    %s1608 = scalar_lea.vmem %s8, 11
    %v1609 = vld [vmem:[%s1608] sm:$0x1]
    %s1610 = scalar_lea.vmem %s8, 12
    %v1611 = vld [vmem:[%s1610] sm:$0x1]
    %v1612 = vsel %vm164, %v1606, 0.0
    %1613 = vadd.xlane.f32.xlu0 %v1612
    %v1614 = vpop.xlane.xlu0 %1613
    %v1615 = vsel %vm164, %v1607, 0.0
    %1616 = vadd.xlane.f32.xlu0 %v1615
    %v1617 = vpop.xlane.xlu0 %1616
    %v1618 = vmul.f32 %v1614, %v171
    %v1619 = vmul.f32 %v1617, %v171
    %v1620 = vsub.f32 %v1606, %v1618
    %v1621 = vsub.f32 %v1607, %v1619
    %v1622 = vmul.f32 %v1620, %v1620
    %v1623 = vmul.f32 %v1621, %v1621
    %v1624 = vsel %vm164, %v1622, 0.0
    %1625 = vadd.xlane.f32.xlu0 %v1624
    %v1626 = vpop.xlane.xlu0 %1625
    %v1627 = vsel %vm164, %v1623, 0.0
    %1628 = vadd.xlane.f32.xlu0 %v1627
    %v1629 = vpop.xlane.xlu0 %1628
    %v1630 = vmul.f32 %v1626, %v171
    %v1631 = vmul.f32 %v1629, %v171
    %v1632 = vadd.f32 %v1630, 1e-12
    %v1633 = vadd.f32 %v1631, 1e-12
    %v1634 = vrsqrt.pop %v1632
    %v1635 = vrsqrt.pop %v1633
    %v1636 = vmul.f32 %v1620, %v1634
    %v1637 = vmul.f32 %v1621, %v1635
    %v1639 = vlaneseq
    %v1640 = vshrl.u32 %v1639, 7
    %v1641 = vsub.s32 0, %v1640
    %v1642 = vrot.slane %v1609, %v1641
    %v1644 = vmul.f32 %v1636, %v1642
    %v1645 = vmul.f32 %v1637, %v1642
    %v1647 = vlaneseq
    %v1648 = vshrl.u32 %v1647, 7
    %v1649 = vsub.s32 0, %v1648
    %v1650 = vrot.slane %v1611, %v1649
    %v1652 = vadd.f32 %v1644, %v1650
    %v1653 = vadd.f32 %v1645, %v1650
    %v1654 = vpack.c.bf16 %v1653, %v1652
    %s1655 = scalar_lea.vmem %s3, 96
    %v1656 = vld [vmem:[%s1655] sm:$0xf]
    %v1657 = vld [vmem:[%s1655 + $0x4] sm:$0xf]
    %v1658 = vld [vmem:[%s1655 + $0x8] sm:$0xf]
    %v1659 = vld [vmem:[%s1655 + $0xc] sm:$0xf]
    %s1660 = scalar_lea.vmem %s3, 128
    %v1661 = vld [vmem:[%s1660] sm:$0xf]
    %v1662 = vld [vmem:[%s1660 + $0x4] sm:$0xf]
    %v1663 = vld [vmem:[%s1660 + $0x8] sm:$0xf]
    %v1664 = vld [vmem:[%s1660 + $0xc] sm:$0xf]
    %s1665 = scalar_lea.vmem %s3, 160
    %v1666 = vld [vmem:[%s1665] sm:$0xf]
    %v1667 = vld [vmem:[%s1665 + $0x4] sm:$0xf]
    %v1668 = vld [vmem:[%s1665 + $0x8] sm:$0xf]
    %v1669 = vld [vmem:[%s1665 + $0xc] sm:$0xf]
    %s1670 = scalar_lea.vmem %s8, 13
    %v1671 = vld [vmem:[%s1670] sm:$0x1]
    %v1673 = vlaneseq
    %v1674 = vshrl.u32 %v1673, 7
    %v1675 = vsub.s32 0, %v1674
    %v1676 = vrot.slane %v1671, %v1675
    %v1682 = vunpack.c.l.b16 %v1656
    %v1683 = vunpack.c.l.b16 %v1657
    %v1684 = vunpack.c.l.b16 %v1658
    %v1685 = vunpack.c.l.b16 %v1659
    %v1686 = vpack.c.b16 %v1683, %v1682
    %v1687 = vpack.c.b16 %v1685, %v1684
    %v1691 = vsel %vm164, %v1654, 0
    %1693 = vmatprep.subr.bf16.mxu0 0
    %1694 = vmatpush1.bf16.msra.mxu0 0
    %1695 = vmatprep.subr.bf16.mxu0 0
    %1696 = vmatpush1.bf16.msra.mxu0 0
    %1697 = vmatprep.subr.bf16.mxu0 0
    %1698 = vmatpush1.bf16.msra.mxu0 0
    %1699 = vmatprep.subr.bf16.mxu0 0
    %1700 = vmatpush1.bf16.msra.mxu0 0
    %1701 = vmatprep.subr.bf16.mxu0 0
    %1702 = vmatpush1.bf16.msra.mxu0 0
    %1703 = vmatprep.subr.bf16.mxu0 0
    %1704 = vmatpush1.bf16.msra.mxu0 0
    %1705 = vmatprep.subr.bf16.mxu0 0
    %1706 = vmatpush1.bf16.msra.mxu0 %v1687
    %1707 = vmatprep.subr.bf16.mxu0 0
    %1708 = vmatpush1.bf16.msra.mxu0 %v1686
    %1709 = vmatprep.subr.bf16.mxu0 0
    %1710 = vmatpush2.bf16.msra.mxu0 0
    %1711 = vmatprep.subr.bf16.mxu0 0
    %1712 = vmatpush2.bf16.msra.mxu0 0
    %1713 = vmatprep.subr.bf16.mxu0 0
    %1714 = vmatpush2.bf16.msra.mxu0 0
    %1715 = vmatprep.subr.bf16.mxu0 0
    %1716 = vmatpush2.bf16.msra.mxu0 0
    %1717 = vmatprep.subr.bf16.mxu0 0
    %1718 = vmatpush2.bf16.msra.mxu0 0
    %1719 = vmatprep.subr.bf16.mxu0 0
    %1720 = vmatpush2.bf16.msra.mxu0 0
    %1721 = vmatprep.subr.bf16.mxu0 0
    %1722 = vmatpush2.bf16.msra.mxu0 0
    %1723 = vmatprep.subr.bf16.mxu0 0
    %1724 = vmatpush2.bf16.msra.mxu0 0
    %1725 = vmatprep.mubr.bf16.mxu0 0
    %1726 = vmatmul.mubr.bf16.gmra.mxu0 %v1691
    %v1727 = vpop.f32.mrf.mxu0
    %v1728 = vadd.f32 %v1676, %v1727
    %v1729 = vpop.f32.mrf.mxu0
    %v1730 = vpop.f32.mrf.mxu0
    %v1731 = vadd.f32 %v1676, %v1730
    %v1732 = vpop.f32.mrf.mxu0
    %1733 = vdwg.mxu0
    %s1734 = scalar_lea.vmem %s8, 15
    %v1735 = vld [vmem:[%s1734] sm:$0x1]
    %v1737 = vlaneseq
    %v1738 = vshrl.u32 %v1737, 7
    %v1739 = vsub.s32 0, %v1738
    %v1740 = vrot.slane %v1735, %v1739
    %v1746 = vunpack.c.l.b16 %v1661
    %v1747 = vunpack.c.l.b16 %v1662
    %v1748 = vunpack.c.l.b16 %v1663
    %v1749 = vunpack.c.l.b16 %v1664
    %v1750 = vpack.c.b16 %v1747, %v1746
    %v1751 = vpack.c.b16 %v1749, %v1748
    %1754 = vmatprep.subr.bf16.mxu0 0
    %1755 = vmatpush1.bf16.msra.mxu0 0
    %1756 = vmatprep.subr.bf16.mxu0 0
    %1757 = vmatpush1.bf16.msra.mxu0 0
    %1758 = vmatprep.subr.bf16.mxu0 0
    %1759 = vmatpush1.bf16.msra.mxu0 0
    %1760 = vmatprep.subr.bf16.mxu0 0
    %1761 = vmatpush1.bf16.msra.mxu0 0
    %1762 = vmatprep.subr.bf16.mxu0 0
    %1763 = vmatpush1.bf16.msra.mxu0 0
    %1764 = vmatprep.subr.bf16.mxu0 0
    %1765 = vmatpush1.bf16.msra.mxu0 0
    %1766 = vmatprep.subr.bf16.mxu0 0
    %1767 = vmatpush1.bf16.msra.mxu0 %v1751
    %1768 = vmatprep.subr.bf16.mxu0 0
    %1769 = vmatpush1.bf16.msra.mxu0 %v1750
    %1770 = vmatprep.subr.bf16.mxu0 0
    %1771 = vmatpush2.bf16.msra.mxu0 0
    %1772 = vmatprep.subr.bf16.mxu0 0
    %1773 = vmatpush2.bf16.msra.mxu0 0
    %1774 = vmatprep.subr.bf16.mxu0 0
    %1775 = vmatpush2.bf16.msra.mxu0 0
    %1776 = vmatprep.subr.bf16.mxu0 0
    %1777 = vmatpush2.bf16.msra.mxu0 0
    %1778 = vmatprep.subr.bf16.mxu0 0
    %1779 = vmatpush2.bf16.msra.mxu0 0
    %1780 = vmatprep.subr.bf16.mxu0 0
    %1781 = vmatpush2.bf16.msra.mxu0 0
    %1782 = vmatprep.subr.bf16.mxu0 0
    %1783 = vmatpush2.bf16.msra.mxu0 0
    %1784 = vmatprep.subr.bf16.mxu0 0
    %1785 = vmatpush2.bf16.msra.mxu0 0
    %1786 = vmatprep.mubr.bf16.mxu0 0
    %1787 = vmatmul.mubr.bf16.gmra.mxu0 %v1691
    %v1788 = vpop.f32.mrf.mxu0
    %v1789 = vadd.f32 %v1740, %v1788
    %v1790 = vpop.f32.mrf.mxu0
    %v1791 = vpop.f32.mrf.mxu0
    %v1792 = vadd.f32 %v1740, %v1791
    %v1793 = vpop.f32.mrf.mxu0
    %1794 = vdwg.mxu0
    %s1795 = scalar_lea.vmem %s8, 17
    %v1796 = vld [vmem:[%s1795] sm:$0x1]
    %v1798 = vlaneseq
    %v1799 = vshrl.u32 %v1798, 7
    %v1800 = vsub.s32 0, %v1799
    %v1801 = vrot.slane %v1796, %v1800
    %v1807 = vunpack.c.l.b16 %v1666
    %v1808 = vunpack.c.l.b16 %v1667
    %v1809 = vunpack.c.l.b16 %v1668
    %v1810 = vunpack.c.l.b16 %v1669
    %v1811 = vpack.c.b16 %v1808, %v1807
    %v1812 = vpack.c.b16 %v1810, %v1809
    %1815 = vmatprep.subr.bf16.mxu0 0
    %1816 = vmatpush1.bf16.msra.mxu0 0
    %1817 = vmatprep.subr.bf16.mxu0 0
    %1818 = vmatpush1.bf16.msra.mxu0 0
    %1819 = vmatprep.subr.bf16.mxu0 0
    %1820 = vmatpush1.bf16.msra.mxu0 0
    %1821 = vmatprep.subr.bf16.mxu0 0
    %1822 = vmatpush1.bf16.msra.mxu0 0
    %1823 = vmatprep.subr.bf16.mxu0 0
    %1824 = vmatpush1.bf16.msra.mxu0 0
    %1825 = vmatprep.subr.bf16.mxu0 0
    %1826 = vmatpush1.bf16.msra.mxu0 0
    %1827 = vmatprep.subr.bf16.mxu0 0
    %1828 = vmatpush1.bf16.msra.mxu0 %v1812
    %1829 = vmatprep.subr.bf16.mxu0 0
    %1830 = vmatpush1.bf16.msra.mxu0 %v1811
    %1831 = vmatprep.subr.bf16.mxu0 0
    %1832 = vmatpush2.bf16.msra.mxu0 0
    %1833 = vmatprep.subr.bf16.mxu0 0
    %1834 = vmatpush2.bf16.msra.mxu0 0
    %1835 = vmatprep.subr.bf16.mxu0 0
    %1836 = vmatpush2.bf16.msra.mxu0 0
    %1837 = vmatprep.subr.bf16.mxu0 0
    %1838 = vmatpush2.bf16.msra.mxu0 0
    %1839 = vmatprep.subr.bf16.mxu0 0
    %1840 = vmatpush2.bf16.msra.mxu0 0
    %1841 = vmatprep.subr.bf16.mxu0 0
    %1842 = vmatpush2.bf16.msra.mxu0 0
    %1843 = vmatprep.subr.bf16.mxu0 0
    %1844 = vmatpush2.bf16.msra.mxu0 0
    %1845 = vmatprep.subr.bf16.mxu0 0
    %1846 = vmatpush2.bf16.msra.mxu0 0
    %1847 = vmatprep.mubr.bf16.mxu0 0
    %1848 = vmatmul.mubr.bf16.gmra.mxu0 %v1691
    %v1849 = vpop.f32.mrf.mxu0
    %v1850 = vadd.f32 %v1801, %v1849
    %v1851 = vpop.f32.mrf.mxu0
    %v1852 = vpop.f32.mrf.mxu0
    %v1853 = vadd.f32 %v1801, %v1852
    %v1854 = vpop.f32.mrf.mxu0
    %1855 = vdwg.mxu0
    %v1857 = vsel %vm444, %v1728, 0
    %v1860 = vsel %vm444, %v1789, 0
    %1862 = vmatprep.subr.mxu0 0.0
    %1863 = vmatpush1.xpose.msra.mxu0 0.0
    %1864 = vmatprep.subr.mxu0 0.0
    %1865 = vmatpush1.xpose.msra.mxu0 0.0
    %1866 = vmatprep.subr.mxu0 0.0
    %1867 = vmatpush1.xpose.msra.mxu0 0.0
    %1868 = vmatprep.subr.mxu0 0.0
    %1869 = vmatpush1.xpose.msra.mxu0 0.0
    %1870 = vmatprep.subr.mxu0 0.0
    %1871 = vmatpush1.xpose.msra.mxu0 0.0
    %1872 = vmatprep.subr.mxu0 0.0
    %1873 = vmatpush1.xpose.msra.mxu0 0.0
    %1874 = vmatprep.subr.mxu0 0.0
    %1875 = vmatpush1.xpose.msra.mxu0 0.0
    %1876 = vmatprep.subr.mxu0 0.0
    %1877 = vmatpush1.xpose.msra.mxu0 0.0
    %1878 = vmatprep.subr.mxu0 0.0
    %1879 = vmatpush1.xpose.msra.mxu0 0.0
    %1880 = vmatprep.subr.mxu0 0.0
    %1881 = vmatpush1.xpose.msra.mxu0 0.0
    %1882 = vmatprep.subr.mxu0 0.0
    %1883 = vmatpush1.xpose.msra.mxu0 0.0
    %1884 = vmatprep.subr.mxu0 0.0
    %1885 = vmatpush1.xpose.msra.mxu0 0.0
    %1886 = vmatprep.subr.mxu0 0.0
    %1887 = vmatpush1.xpose.msra.mxu0 0.0
    %1888 = vmatprep.subr.mxu0 0.0
    %1889 = vmatpush1.xpose.msra.mxu0 0.0
    %1890 = vmatprep.subr.mxu0 0.0
    %1891 = vmatpush1.xpose.msra.mxu0 0.0
    %1892 = vmatprep.subr.mxu0 0.0
    %1893 = vmatpush1.xpose.msra.mxu0 %v1860
    %1894 = vmatprep.subr.mxu0 0.0
    %1895 = vmatpush2.xpose.msra.mxu0 0.0
    %1896 = vmatprep.subr.mxu0 0.0
    %1897 = vmatpush2.xpose.msra.mxu0 0.0
    %1898 = vmatprep.subr.mxu0 0.0
    %1899 = vmatpush2.xpose.msra.mxu0 0.0
    %1900 = vmatprep.subr.mxu0 0.0
    %1901 = vmatpush2.xpose.msra.mxu0 0.0
    %1902 = vmatprep.subr.mxu0 0.0
    %1903 = vmatpush2.xpose.msra.mxu0 0.0
    %1904 = vmatprep.subr.mxu0 0.0
    %1905 = vmatpush2.xpose.msra.mxu0 0.0
    %1906 = vmatprep.subr.mxu0 0.0
    %1907 = vmatpush2.xpose.msra.mxu0 0.0
    %1908 = vmatprep.subr.mxu0 0.0
    %1909 = vmatpush2.xpose.msra.mxu0 0.0
    %1910 = vmatprep.subr.mxu0 0.0
    %1911 = vmatpush2.xpose.msra.mxu0 0.0
    %1912 = vmatprep.subr.mxu0 0.0
    %1913 = vmatpush2.xpose.msra.mxu0 0.0
    %1914 = vmatprep.subr.mxu0 0.0
    %1915 = vmatpush2.xpose.msra.mxu0 0.0
    %1916 = vmatprep.subr.mxu0 0.0
    %1917 = vmatpush2.xpose.msra.mxu0 0.0
    %1918 = vmatprep.subr.mxu0 0.0
    %1919 = vmatpush2.xpose.msra.mxu0 0.0
    %1920 = vmatprep.subr.mxu0 0.0
    %1921 = vmatpush2.xpose.msra.mxu0 0.0
    %1922 = vmatprep.subr.mxu0 0.0
    %1923 = vmatpush2.xpose.msra.mxu0 0.0
    %1924 = vmatprep.subr.mxu0 0.0
    %1925 = vmatpush2.xpose.msra.mxu0 0.0
    %1926 = vmatprep.mubr.f32.mxu0 0.0
    %1927 = vmatmul.mubr.f32.gmra.mxu0 %v1857
    %v1928 = vpop.f32.mrf.mxu0
    %v1929 = vadd.f32 %v237, %v1928
    %v1930 = vpop.f32.mrf.mxu0
    %1931 = vdwg.mxu0
    %v1933 = vsel %vm444, %v1731, 0
    %v1936 = vsel %vm444, %v1792, 0
    %1938 = vmatprep.subr.mxu0 0.0
    %1939 = vmatpush1.xpose.msra.mxu0 0.0
    %1940 = vmatprep.subr.mxu0 0.0
    %1941 = vmatpush1.xpose.msra.mxu0 0.0
    %1942 = vmatprep.subr.mxu0 0.0
    %1943 = vmatpush1.xpose.msra.mxu0 0.0
    %1944 = vmatprep.subr.mxu0 0.0
    %1945 = vmatpush1.xpose.msra.mxu0 0.0
    %1946 = vmatprep.subr.mxu0 0.0
    %1947 = vmatpush1.xpose.msra.mxu0 0.0
    %1948 = vmatprep.subr.mxu0 0.0
    %1949 = vmatpush1.xpose.msra.mxu0 0.0
    %1950 = vmatprep.subr.mxu0 0.0
    %1951 = vmatpush1.xpose.msra.mxu0 0.0
    %1952 = vmatprep.subr.mxu0 0.0
    %1953 = vmatpush1.xpose.msra.mxu0 0.0
    %1954 = vmatprep.subr.mxu0 0.0
    %1955 = vmatpush1.xpose.msra.mxu0 0.0
    %1956 = vmatprep.subr.mxu0 0.0
    %1957 = vmatpush1.xpose.msra.mxu0 0.0
    %1958 = vmatprep.subr.mxu0 0.0
    %1959 = vmatpush1.xpose.msra.mxu0 0.0
    %1960 = vmatprep.subr.mxu0 0.0
    %1961 = vmatpush1.xpose.msra.mxu0 0.0
    %1962 = vmatprep.subr.mxu0 0.0
    %1963 = vmatpush1.xpose.msra.mxu0 0.0
    %1964 = vmatprep.subr.mxu0 0.0
    %1965 = vmatpush1.xpose.msra.mxu0 0.0
    %1966 = vmatprep.subr.mxu0 0.0
    %1967 = vmatpush1.xpose.msra.mxu0 0.0
    %1968 = vmatprep.subr.mxu0 0.0
    %1969 = vmatpush1.xpose.msra.mxu0 %v1936
    %1970 = vmatprep.subr.mxu0 0.0
    %1971 = vmatpush2.xpose.msra.mxu0 0.0
    %1972 = vmatprep.subr.mxu0 0.0
    %1973 = vmatpush2.xpose.msra.mxu0 0.0
    %1974 = vmatprep.subr.mxu0 0.0
    %1975 = vmatpush2.xpose.msra.mxu0 0.0
    %1976 = vmatprep.subr.mxu0 0.0
    %1977 = vmatpush2.xpose.msra.mxu0 0.0
    %1978 = vmatprep.subr.mxu0 0.0
    %1979 = vmatpush2.xpose.msra.mxu0 0.0
    %1980 = vmatprep.subr.mxu0 0.0
    %1981 = vmatpush2.xpose.msra.mxu0 0.0
    %1982 = vmatprep.subr.mxu0 0.0
    %1983 = vmatpush2.xpose.msra.mxu0 0.0
    %1984 = vmatprep.subr.mxu0 0.0
    %1985 = vmatpush2.xpose.msra.mxu0 0.0
    %1986 = vmatprep.subr.mxu0 0.0
    %1987 = vmatpush2.xpose.msra.mxu0 0.0
    %1988 = vmatprep.subr.mxu0 0.0
    %1989 = vmatpush2.xpose.msra.mxu0 0.0
    %1990 = vmatprep.subr.mxu0 0.0
    %1991 = vmatpush2.xpose.msra.mxu0 0.0
    %1992 = vmatprep.subr.mxu0 0.0
    %1993 = vmatpush2.xpose.msra.mxu0 0.0
    %1994 = vmatprep.subr.mxu0 0.0
    %1995 = vmatpush2.xpose.msra.mxu0 0.0
    %1996 = vmatprep.subr.mxu0 0.0
    %1997 = vmatpush2.xpose.msra.mxu0 0.0
    %1998 = vmatprep.subr.mxu0 0.0
    %1999 = vmatpush2.xpose.msra.mxu0 0.0
    %2000 = vmatprep.subr.mxu0 0.0
    %2001 = vmatpush2.xpose.msra.mxu0 0.0
    %2002 = vmatprep.mubr.f32.mxu0 0.0
    %2003 = vmatmul.mubr.f32.gmra.mxu0 %v1933
    %v2004 = vpop.f32.mrf.mxu0
    %v2005 = vadd.f32 %v241, %v2004
    %v2006 = vpop.f32.mrf.mxu0
    %2007 = vdwg.mxu0
    %v2008 = vmul.f32 %v1929, 1.442695
    %v2009 = vpow.pop %v2008
    %v2010 = vmul.f32 %v2005, 1.442695
    %v2011 = vpow.pop %v2010
    %v2012 = vsel %vm601, %v2009, 0.0
    %2013 = vadd.xlane.f32.xlu0 %v2012
    %v2014 = vpop.xlane.xlu0 %2013
    %v2015 = vsel %vm601, %v2011, 0.0
    %2016 = vadd.xlane.f32.xlu0 %v2015
    %v2017 = vpop.xlane.xlu0 %2016
    %v2018 = vrcp.pop %v2014
    %v2019 = vrcp.pop %v2017
    %v2020 = vmul.f32 %v2009, %v2018
    %v2021 = vmul.f32 %v2011, %v2019
    %v2023 = vsel %vm601, %v2020, 0
    %2025 = vmatprep.subr.mxu0 0.0
    %2026 = vmatpush1.msra.mxu0 0.0
    %2027 = vmatprep.subr.mxu0 0.0
    %2028 = vmatpush1.msra.mxu0 0.0
    %2029 = vmatprep.subr.mxu0 0.0
    %2030 = vmatpush1.msra.mxu0 0.0
    %2031 = vmatprep.subr.mxu0 0.0
    %2032 = vmatpush1.msra.mxu0 0.0
    %2033 = vmatprep.subr.mxu0 0.0
    %2034 = vmatpush1.msra.mxu0 0.0
    %2035 = vmatprep.subr.mxu0 0.0
    %2036 = vmatpush1.msra.mxu0 0.0
    %2037 = vmatprep.subr.mxu0 0.0
    %2038 = vmatpush1.msra.mxu0 0.0
    %2039 = vmatprep.subr.mxu0 0.0
    %2040 = vmatpush1.msra.mxu0 0.0
    %2041 = vmatprep.subr.mxu0 0.0
    %2042 = vmatpush1.msra.mxu0 0.0
    %2043 = vmatprep.subr.mxu0 0.0
    %2044 = vmatpush1.msra.mxu0 0.0
    %2045 = vmatprep.subr.mxu0 0.0
    %2046 = vmatpush1.msra.mxu0 0.0
    %2047 = vmatprep.subr.mxu0 0.0
    %2048 = vmatpush1.msra.mxu0 0.0
    %2049 = vmatprep.subr.mxu0 0.0
    %2050 = vmatpush1.msra.mxu0 0.0
    %2051 = vmatprep.subr.mxu0 0.0
    %2052 = vmatpush1.msra.mxu0 0.0
    %2053 = vmatprep.subr.mxu0 0.0
    %2054 = vmatpush1.msra.mxu0 0.0
    %2055 = vmatprep.subr.mxu0 0.0
    %2056 = vmatpush1.msra.mxu0 %v1850
    %2057 = vmatprep.subr.mxu0 0.0
    %2058 = vmatpush2.msra.mxu0 0.0
    %2059 = vmatprep.subr.mxu0 0.0
    %2060 = vmatpush2.msra.mxu0 0.0
    %2061 = vmatprep.subr.mxu0 0.0
    %2062 = vmatpush2.msra.mxu0 0.0
    %2063 = vmatprep.subr.mxu0 0.0
    %2064 = vmatpush2.msra.mxu0 0.0
    %2065 = vmatprep.subr.mxu0 0.0
    %2066 = vmatpush2.msra.mxu0 0.0
    %2067 = vmatprep.subr.mxu0 0.0
    %2068 = vmatpush2.msra.mxu0 0.0
    %2069 = vmatprep.subr.mxu0 0.0
    %2070 = vmatpush2.msra.mxu0 0.0
    %2071 = vmatprep.subr.mxu0 0.0
    %2072 = vmatpush2.msra.mxu0 0.0
    %2073 = vmatprep.subr.mxu0 0.0
    %2074 = vmatpush2.msra.mxu0 0.0
    %2075 = vmatprep.subr.mxu0 0.0
    %2076 = vmatpush2.msra.mxu0 0.0
    %2077 = vmatprep.subr.mxu0 0.0
    %2078 = vmatpush2.msra.mxu0 0.0
    %2079 = vmatprep.subr.mxu0 0.0
    %2080 = vmatpush2.msra.mxu0 0.0
    %2081 = vmatprep.subr.mxu0 0.0
    %2082 = vmatpush2.msra.mxu0 0.0
    %2083 = vmatprep.subr.mxu0 0.0
    %2084 = vmatpush2.msra.mxu0 0.0
    %2085 = vmatprep.subr.mxu0 0.0
    %2086 = vmatpush2.msra.mxu0 0.0
    %2087 = vmatprep.subr.mxu0 0.0
    %2088 = vmatpush2.msra.mxu0 0.0
    %2089 = vmatprep.mubr.f32.mxu0 0.0
    %2090 = vmatmul.mubr.f32.gmra.mxu0 %v2023
    %v2091 = vpop.f32.mrf.mxu0
    %v2092 = vadd.f32 0.0, %v2091
    %v2093 = vpop.f32.mrf.mxu0
    %2094 = vdwg.mxu0
    %v2096 = vsel %vm601, %v2021, 0
    %2098 = vmatprep.subr.mxu0 0.0
    %2099 = vmatpush1.msra.mxu0 0.0
    %2100 = vmatprep.subr.mxu0 0.0
    %2101 = vmatpush1.msra.mxu0 0.0
    %2102 = vmatprep.subr.mxu0 0.0
    %2103 = vmatpush1.msra.mxu0 0.0
    %2104 = vmatprep.subr.mxu0 0.0
    %2105 = vmatpush1.msra.mxu0 0.0
    %2106 = vmatprep.subr.mxu0 0.0
    %2107 = vmatpush1.msra.mxu0 0.0
    %2108 = vmatprep.subr.mxu0 0.0
    %2109 = vmatpush1.msra.mxu0 0.0
    %2110 = vmatprep.subr.mxu0 0.0
    %2111 = vmatpush1.msra.mxu0 0.0
    %2112 = vmatprep.subr.mxu0 0.0
    %2113 = vmatpush1.msra.mxu0 0.0
    %2114 = vmatprep.subr.mxu0 0.0
    %2115 = vmatpush1.msra.mxu0 0.0
    %2116 = vmatprep.subr.mxu0 0.0
    %2117 = vmatpush1.msra.mxu0 0.0
    %2118 = vmatprep.subr.mxu0 0.0
    %2119 = vmatpush1.msra.mxu0 0.0
    %2120 = vmatprep.subr.mxu0 0.0
    %2121 = vmatpush1.msra.mxu0 0.0
    %2122 = vmatprep.subr.mxu0 0.0
    %2123 = vmatpush1.msra.mxu0 0.0
    %2124 = vmatprep.subr.mxu0 0.0
    %2125 = vmatpush1.msra.mxu0 0.0
    %2126 = vmatprep.subr.mxu0 0.0
    %2127 = vmatpush1.msra.mxu0 0.0
    %2128 = vmatprep.subr.mxu0 0.0
    %2129 = vmatpush1.msra.mxu0 %v1853
    %2130 = vmatprep.subr.mxu0 0.0
    %2131 = vmatpush2.msra.mxu0 0.0
    %2132 = vmatprep.subr.mxu0 0.0
    %2133 = vmatpush2.msra.mxu0 0.0
    %2134 = vmatprep.subr.mxu0 0.0
    %2135 = vmatpush2.msra.mxu0 0.0
    %2136 = vmatprep.subr.mxu0 0.0
    %2137 = vmatpush2.msra.mxu0 0.0
    %2138 = vmatprep.subr.mxu0 0.0
    %2139 = vmatpush2.msra.mxu0 0.0
    %2140 = vmatprep.subr.mxu0 0.0
    %2141 = vmatpush2.msra.mxu0 0.0
    %2142 = vmatprep.subr.mxu0 0.0
    %2143 = vmatpush2.msra.mxu0 0.0
    %2144 = vmatprep.subr.mxu0 0.0
    %2145 = vmatpush2.msra.mxu0 0.0
    %2146 = vmatprep.subr.mxu0 0.0
    %2147 = vmatpush2.msra.mxu0 0.0
    %2148 = vmatprep.subr.mxu0 0.0
    %2149 = vmatpush2.msra.mxu0 0.0
    %2150 = vmatprep.subr.mxu0 0.0
    %2151 = vmatpush2.msra.mxu0 0.0
    %2152 = vmatprep.subr.mxu0 0.0
    %2153 = vmatpush2.msra.mxu0 0.0
    %2154 = vmatprep.subr.mxu0 0.0
    %2155 = vmatpush2.msra.mxu0 0.0
    %2156 = vmatprep.subr.mxu0 0.0
    %2157 = vmatpush2.msra.mxu0 0.0
    %2158 = vmatprep.subr.mxu0 0.0
    %2159 = vmatpush2.msra.mxu0 0.0
    %2160 = vmatprep.subr.mxu0 0.0
    %2161 = vmatpush2.msra.mxu0 0.0
    %2162 = vmatprep.mubr.f32.mxu0 0.0
    %2163 = vmatmul.mubr.f32.gmra.mxu0 %v2096
    %v2164 = vpop.f32.mrf.mxu0
    %v2165 = vadd.f32 0.0, %v2164
    %v2166 = vpop.f32.mrf.mxu0
    %2167 = vdwg.mxu0
    %v2168 = vpack.c.bf16 %v2165, %v2092
    %s2169 = scalar_lea.vmem %s4, 16
    %v2170 = vld [vmem:[%s2169] sm:$0xf]
    %v2171 = vld [vmem:[%s2169 + $0x4] sm:$0xf]
    %s2172 = scalar_lea.vmem %s3, 112
    %v2173 = vld [vmem:[%s2172] sm:$0xf]
    %v2174 = vld [vmem:[%s2172 + $0x4] sm:$0xf]
    %v2175 = vld [vmem:[%s2172 + $0x8] sm:$0xf]
    %v2176 = vld [vmem:[%s2172 + $0xc] sm:$0xf]
    %s2177 = scalar_lea.vmem %s3, 144
    %v2178 = vld [vmem:[%s2177] sm:$0xf]
    %v2179 = vld [vmem:[%s2177 + $0x4] sm:$0xf]
    %v2180 = vld [vmem:[%s2177 + $0x8] sm:$0xf]
    %v2181 = vld [vmem:[%s2177 + $0xc] sm:$0xf]
    %s2182 = scalar_lea.vmem %s3, 176
    %v2183 = vld [vmem:[%s2182] sm:$0xf]
    %v2184 = vld [vmem:[%s2182 + $0x4] sm:$0xf]
    %v2185 = vld [vmem:[%s2182 + $0x8] sm:$0xf]
    %v2186 = vld [vmem:[%s2182 + $0xc] sm:$0xf]
    %s2187 = scalar_lea.vmem %s8, 14
    %v2188 = vld [vmem:[%s2187] sm:$0x1]
    %v2190 = vlaneseq
    %v2191 = vshrl.u32 %v2190, 7
    %v2192 = vsub.s32 0, %v2191
    %v2193 = vrot.slane %v2188, %v2192
    %v2199 = vunpack.c.l.b16 %v2173
    %v2200 = vunpack.c.l.b16 %v2174
    %v2201 = vunpack.c.l.b16 %v2175
    %v2202 = vunpack.c.l.b16 %v2176
    %v2203 = vpack.c.b16 %v2200, %v2199
    %v2204 = vpack.c.b16 %v2202, %v2201
    %2207 = vmatprep.subr.bf16.mxu0 0
    %2208 = vmatpush1.bf16.msra.mxu0 0
    %2209 = vmatprep.subr.bf16.mxu0 0
    %2210 = vmatpush1.bf16.msra.mxu0 0
    %2211 = vmatprep.subr.bf16.mxu0 0
    %2212 = vmatpush1.bf16.msra.mxu0 0
    %2213 = vmatprep.subr.bf16.mxu0 0
    %2214 = vmatpush1.bf16.msra.mxu0 0
    %2215 = vmatprep.subr.bf16.mxu0 0
    %2216 = vmatpush1.bf16.msra.mxu0 0
    %2217 = vmatprep.subr.bf16.mxu0 0
    %2218 = vmatpush1.bf16.msra.mxu0 0
    %2219 = vmatprep.subr.bf16.mxu0 0
    %2220 = vmatpush1.bf16.msra.mxu0 %v2204
    %2221 = vmatprep.subr.bf16.mxu0 0
    %2222 = vmatpush1.bf16.msra.mxu0 %v2203
    %2223 = vmatprep.subr.bf16.mxu0 0
    %2224 = vmatpush2.bf16.msra.mxu0 0
    %2225 = vmatprep.subr.bf16.mxu0 0
    %2226 = vmatpush2.bf16.msra.mxu0 0
    %2227 = vmatprep.subr.bf16.mxu0 0
    %2228 = vmatpush2.bf16.msra.mxu0 0
    %2229 = vmatprep.subr.bf16.mxu0 0
    %2230 = vmatpush2.bf16.msra.mxu0 0
    %2231 = vmatprep.subr.bf16.mxu0 0
    %2232 = vmatpush2.bf16.msra.mxu0 0
    %2233 = vmatprep.subr.bf16.mxu0 0
    %2234 = vmatpush2.bf16.msra.mxu0 0
    %2235 = vmatprep.subr.bf16.mxu0 0
    %2236 = vmatpush2.bf16.msra.mxu0 0
    %2237 = vmatprep.subr.bf16.mxu0 0
    %2238 = vmatpush2.bf16.msra.mxu0 0
    %2239 = vmatprep.mubr.bf16.mxu0 0
    %2240 = vmatmul.mubr.bf16.gmra.mxu0 %v1691
    %v2241 = vpop.f32.mrf.mxu0
    %v2242 = vadd.f32 %v2193, %v2241
    %v2243 = vpop.f32.mrf.mxu0
    %v2244 = vpop.f32.mrf.mxu0
    %v2245 = vadd.f32 %v2193, %v2244
    %v2246 = vpop.f32.mrf.mxu0
    %2247 = vdwg.mxu0
    %s2248 = scalar_lea.vmem %s8, 16
    %v2249 = vld [vmem:[%s2248] sm:$0x1]
    %v2251 = vlaneseq
    %v2252 = vshrl.u32 %v2251, 7
    %v2253 = vsub.s32 0, %v2252
    %v2254 = vrot.slane %v2249, %v2253
    %v2260 = vunpack.c.l.b16 %v2178
    %v2261 = vunpack.c.l.b16 %v2179
    %v2262 = vunpack.c.l.b16 %v2180
    %v2263 = vunpack.c.l.b16 %v2181
    %v2264 = vpack.c.b16 %v2261, %v2260
    %v2265 = vpack.c.b16 %v2263, %v2262
    %2268 = vmatprep.subr.bf16.mxu0 0
    %2269 = vmatpush1.bf16.msra.mxu0 0
    %2270 = vmatprep.subr.bf16.mxu0 0
    %2271 = vmatpush1.bf16.msra.mxu0 0
    %2272 = vmatprep.subr.bf16.mxu0 0
    %2273 = vmatpush1.bf16.msra.mxu0 0
    %2274 = vmatprep.subr.bf16.mxu0 0
    %2275 = vmatpush1.bf16.msra.mxu0 0
    %2276 = vmatprep.subr.bf16.mxu0 0
    %2277 = vmatpush1.bf16.msra.mxu0 0
    %2278 = vmatprep.subr.bf16.mxu0 0
    %2279 = vmatpush1.bf16.msra.mxu0 0
    %2280 = vmatprep.subr.bf16.mxu0 0
    %2281 = vmatpush1.bf16.msra.mxu0 %v2265
    %2282 = vmatprep.subr.bf16.mxu0 0
    %2283 = vmatpush1.bf16.msra.mxu0 %v2264
    %2284 = vmatprep.subr.bf16.mxu0 0
    %2285 = vmatpush2.bf16.msra.mxu0 0
    %2286 = vmatprep.subr.bf16.mxu0 0
    %2287 = vmatpush2.bf16.msra.mxu0 0
    %2288 = vmatprep.subr.bf16.mxu0 0
    %2289 = vmatpush2.bf16.msra.mxu0 0
    %2290 = vmatprep.subr.bf16.mxu0 0
    %2291 = vmatpush2.bf16.msra.mxu0 0
    %2292 = vmatprep.subr.bf16.mxu0 0
    %2293 = vmatpush2.bf16.msra.mxu0 0
    %2294 = vmatprep.subr.bf16.mxu0 0
    %2295 = vmatpush2.bf16.msra.mxu0 0
    %2296 = vmatprep.subr.bf16.mxu0 0
    %2297 = vmatpush2.bf16.msra.mxu0 0
    %2298 = vmatprep.subr.bf16.mxu0 0
    %2299 = vmatpush2.bf16.msra.mxu0 0
    %2300 = vmatprep.mubr.bf16.mxu0 0
    %2301 = vmatmul.mubr.bf16.gmra.mxu0 %v1691
    %v2302 = vpop.f32.mrf.mxu0
    %v2303 = vadd.f32 %v2254, %v2302
    %v2304 = vpop.f32.mrf.mxu0
    %v2305 = vpop.f32.mrf.mxu0
    %v2306 = vadd.f32 %v2254, %v2305
    %v2307 = vpop.f32.mrf.mxu0
    %2308 = vdwg.mxu0
    %s2309 = scalar_lea.vmem %s8, 18
    %v2310 = vld [vmem:[%s2309] sm:$0x1]
    %v2312 = vlaneseq
    %v2313 = vshrl.u32 %v2312, 7
    %v2314 = vsub.s32 0, %v2313
    %v2315 = vrot.slane %v2310, %v2314
    %v2321 = vunpack.c.l.b16 %v2183
    %v2322 = vunpack.c.l.b16 %v2184
    %v2323 = vunpack.c.l.b16 %v2185
    %v2324 = vunpack.c.l.b16 %v2186
    %v2325 = vpack.c.b16 %v2322, %v2321
    %v2326 = vpack.c.b16 %v2324, %v2323
    %2329 = vmatprep.subr.bf16.mxu0 0
    %2330 = vmatpush1.bf16.msra.mxu0 0
    %2331 = vmatprep.subr.bf16.mxu0 0
    %2332 = vmatpush1.bf16.msra.mxu0 0
    %2333 = vmatprep.subr.bf16.mxu0 0
    %2334 = vmatpush1.bf16.msra.mxu0 0
    %2335 = vmatprep.subr.bf16.mxu0 0
    %2336 = vmatpush1.bf16.msra.mxu0 0
    %2337 = vmatprep.subr.bf16.mxu0 0
    %2338 = vmatpush1.bf16.msra.mxu0 0
    %2339 = vmatprep.subr.bf16.mxu0 0
    %2340 = vmatpush1.bf16.msra.mxu0 0
    %2341 = vmatprep.subr.bf16.mxu0 0
    %2342 = vmatpush1.bf16.msra.mxu0 %v2326
    %2343 = vmatprep.subr.bf16.mxu0 0
    %2344 = vmatpush1.bf16.msra.mxu0 %v2325
    %2345 = vmatprep.subr.bf16.mxu0 0
    %2346 = vmatpush2.bf16.msra.mxu0 0
    %2347 = vmatprep.subr.bf16.mxu0 0
    %2348 = vmatpush2.bf16.msra.mxu0 0
    %2349 = vmatprep.subr.bf16.mxu0 0
    %2350 = vmatpush2.bf16.msra.mxu0 0
    %2351 = vmatprep.subr.bf16.mxu0 0
    %2352 = vmatpush2.bf16.msra.mxu0 0
    %2353 = vmatprep.subr.bf16.mxu0 0
    %2354 = vmatpush2.bf16.msra.mxu0 0
    %2355 = vmatprep.subr.bf16.mxu0 0
    %2356 = vmatpush2.bf16.msra.mxu0 0
    %2357 = vmatprep.subr.bf16.mxu0 0
    %2358 = vmatpush2.bf16.msra.mxu0 0
    %2359 = vmatprep.subr.bf16.mxu0 0
    %2360 = vmatpush2.bf16.msra.mxu0 0
    %2361 = vmatprep.mubr.bf16.mxu0 0
    %2362 = vmatmul.mubr.bf16.gmra.mxu0 %v1691
    %v2363 = vpop.f32.mrf.mxu0
    %v2364 = vadd.f32 %v2315, %v2363
    %v2365 = vpop.f32.mrf.mxu0
    %v2366 = vpop.f32.mrf.mxu0
    %v2367 = vadd.f32 %v2315, %v2366
    %v2368 = vpop.f32.mrf.mxu0
    %2369 = vdwg.mxu0
    %v2371 = vsel %vm444, %v2242, 0
    %v2374 = vsel %vm444, %v2303, 0
    %2376 = vmatprep.subr.mxu0 0.0
    %2377 = vmatpush1.xpose.msra.mxu0 0.0
    %2378 = vmatprep.subr.mxu0 0.0
    %2379 = vmatpush1.xpose.msra.mxu0 0.0
    %2380 = vmatprep.subr.mxu0 0.0
    %2381 = vmatpush1.xpose.msra.mxu0 0.0
    %2382 = vmatprep.subr.mxu0 0.0
    %2383 = vmatpush1.xpose.msra.mxu0 0.0
    %2384 = vmatprep.subr.mxu0 0.0
    %2385 = vmatpush1.xpose.msra.mxu0 0.0
    %2386 = vmatprep.subr.mxu0 0.0
    %2387 = vmatpush1.xpose.msra.mxu0 0.0
    %2388 = vmatprep.subr.mxu0 0.0
    %2389 = vmatpush1.xpose.msra.mxu0 0.0
    %2390 = vmatprep.subr.mxu0 0.0
    %2391 = vmatpush1.xpose.msra.mxu0 0.0
    %2392 = vmatprep.subr.mxu0 0.0
    %2393 = vmatpush1.xpose.msra.mxu0 0.0
    %2394 = vmatprep.subr.mxu0 0.0
    %2395 = vmatpush1.xpose.msra.mxu0 0.0
    %2396 = vmatprep.subr.mxu0 0.0
    %2397 = vmatpush1.xpose.msra.mxu0 0.0
    %2398 = vmatprep.subr.mxu0 0.0
    %2399 = vmatpush1.xpose.msra.mxu0 0.0
    %2400 = vmatprep.subr.mxu0 0.0
    %2401 = vmatpush1.xpose.msra.mxu0 0.0
    %2402 = vmatprep.subr.mxu0 0.0
    %2403 = vmatpush1.xpose.msra.mxu0 0.0
    %2404 = vmatprep.subr.mxu0 0.0
    %2405 = vmatpush1.xpose.msra.mxu0 0.0
    %2406 = vmatprep.subr.mxu0 0.0
    %2407 = vmatpush1.xpose.msra.mxu0 %v2374
    %2408 = vmatprep.subr.mxu0 0.0
    %2409 = vmatpush2.xpose.msra.mxu0 0.0
    %2410 = vmatprep.subr.mxu0 0.0
    %2411 = vmatpush2.xpose.msra.mxu0 0.0
    %2412 = vmatprep.subr.mxu0 0.0
    %2413 = vmatpush2.xpose.msra.mxu0 0.0
    %2414 = vmatprep.subr.mxu0 0.0
    %2415 = vmatpush2.xpose.msra.mxu0 0.0
    %2416 = vmatprep.subr.mxu0 0.0
    %2417 = vmatpush2.xpose.msra.mxu0 0.0
    %2418 = vmatprep.subr.mxu0 0.0
    %2419 = vmatpush2.xpose.msra.mxu0 0.0
    %2420 = vmatprep.subr.mxu0 0.0
    %2421 = vmatpush2.xpose.msra.mxu0 0.0
    %2422 = vmatprep.subr.mxu0 0.0
    %2423 = vmatpush2.xpose.msra.mxu0 0.0
    %2424 = vmatprep.subr.mxu0 0.0
    %2425 = vmatpush2.xpose.msra.mxu0 0.0
    %2426 = vmatprep.subr.mxu0 0.0
    %2427 = vmatpush2.xpose.msra.mxu0 0.0
    %2428 = vmatprep.subr.mxu0 0.0
    %2429 = vmatpush2.xpose.msra.mxu0 0.0
    %2430 = vmatprep.subr.mxu0 0.0
    %2431 = vmatpush2.xpose.msra.mxu0 0.0
    %2432 = vmatprep.subr.mxu0 0.0
    %2433 = vmatpush2.xpose.msra.mxu0 0.0
    %2434 = vmatprep.subr.mxu0 0.0
    %2435 = vmatpush2.xpose.msra.mxu0 0.0
    %2436 = vmatprep.subr.mxu0 0.0
    %2437 = vmatpush2.xpose.msra.mxu0 0.0
    %2438 = vmatprep.subr.mxu0 0.0
    %2439 = vmatpush2.xpose.msra.mxu0 0.0
    %2440 = vmatprep.mubr.f32.mxu0 0.0
    %2441 = vmatmul.mubr.f32.gmra.mxu0 %v2371
    %v2442 = vpop.f32.mrf.mxu0
    %v2443 = vadd.f32 %v237, %v2442
    %v2444 = vpop.f32.mrf.mxu0
    %2445 = vdwg.mxu0
    %v2447 = vsel %vm444, %v2245, 0
    %v2450 = vsel %vm444, %v2306, 0
    %2452 = vmatprep.subr.mxu0 0.0
    %2453 = vmatpush1.xpose.msra.mxu0 0.0
    %2454 = vmatprep.subr.mxu0 0.0
    %2455 = vmatpush1.xpose.msra.mxu0 0.0
    %2456 = vmatprep.subr.mxu0 0.0
    %2457 = vmatpush1.xpose.msra.mxu0 0.0
    %2458 = vmatprep.subr.mxu0 0.0
    %2459 = vmatpush1.xpose.msra.mxu0 0.0
    %2460 = vmatprep.subr.mxu0 0.0
    %2461 = vmatpush1.xpose.msra.mxu0 0.0
    %2462 = vmatprep.subr.mxu0 0.0
    %2463 = vmatpush1.xpose.msra.mxu0 0.0
    %2464 = vmatprep.subr.mxu0 0.0
    %2465 = vmatpush1.xpose.msra.mxu0 0.0
    %2466 = vmatprep.subr.mxu0 0.0
    %2467 = vmatpush1.xpose.msra.mxu0 0.0
    %2468 = vmatprep.subr.mxu0 0.0
    %2469 = vmatpush1.xpose.msra.mxu0 0.0
    %2470 = vmatprep.subr.mxu0 0.0
    %2471 = vmatpush1.xpose.msra.mxu0 0.0
    %2472 = vmatprep.subr.mxu0 0.0
    %2473 = vmatpush1.xpose.msra.mxu0 0.0
    %2474 = vmatprep.subr.mxu0 0.0
    %2475 = vmatpush1.xpose.msra.mxu0 0.0
    %2476 = vmatprep.subr.mxu0 0.0
    %2477 = vmatpush1.xpose.msra.mxu0 0.0
    %2478 = vmatprep.subr.mxu0 0.0
    %2479 = vmatpush1.xpose.msra.mxu0 0.0
    %2480 = vmatprep.subr.mxu0 0.0
    %2481 = vmatpush1.xpose.msra.mxu0 0.0
    %2482 = vmatprep.subr.mxu0 0.0
    %2483 = vmatpush1.xpose.msra.mxu0 %v2450
    %2484 = vmatprep.subr.mxu0 0.0
    %2485 = vmatpush2.xpose.msra.mxu0 0.0
    %2486 = vmatprep.subr.mxu0 0.0
    %2487 = vmatpush2.xpose.msra.mxu0 0.0
    %2488 = vmatprep.subr.mxu0 0.0
    %2489 = vmatpush2.xpose.msra.mxu0 0.0
    %2490 = vmatprep.subr.mxu0 0.0
    %2491 = vmatpush2.xpose.msra.mxu0 0.0
    %2492 = vmatprep.subr.mxu0 0.0
    %2493 = vmatpush2.xpose.msra.mxu0 0.0
    %2494 = vmatprep.subr.mxu0 0.0
    %2495 = vmatpush2.xpose.msra.mxu0 0.0
    %2496 = vmatprep.subr.mxu0 0.0
    %2497 = vmatpush2.xpose.msra.mxu0 0.0
    %2498 = vmatprep.subr.mxu0 0.0
    %2499 = vmatpush2.xpose.msra.mxu0 0.0
    %2500 = vmatprep.subr.mxu0 0.0
    %2501 = vmatpush2.xpose.msra.mxu0 0.0
    %2502 = vmatprep.subr.mxu0 0.0
    %2503 = vmatpush2.xpose.msra.mxu0 0.0
    %2504 = vmatprep.subr.mxu0 0.0
    %2505 = vmatpush2.xpose.msra.mxu0 0.0
    %2506 = vmatprep.subr.mxu0 0.0
    %2507 = vmatpush2.xpose.msra.mxu0 0.0
    %2508 = vmatprep.subr.mxu0 0.0
    %2509 = vmatpush2.xpose.msra.mxu0 0.0
    %2510 = vmatprep.subr.mxu0 0.0
    %2511 = vmatpush2.xpose.msra.mxu0 0.0
    %2512 = vmatprep.subr.mxu0 0.0
    %2513 = vmatpush2.xpose.msra.mxu0 0.0
    %2514 = vmatprep.subr.mxu0 0.0
    %2515 = vmatpush2.xpose.msra.mxu0 0.0
    %2516 = vmatprep.mubr.f32.mxu0 0.0
    %2517 = vmatmul.mubr.f32.gmra.mxu0 %v2447
    %v2518 = vpop.f32.mrf.mxu0
    %v2519 = vadd.f32 %v241, %v2518
    %v2520 = vpop.f32.mrf.mxu0
    %2521 = vdwg.mxu0
    %v2522 = vmul.f32 %v2443, 1.442695
    %v2523 = vpow.pop %v2522
    %v2524 = vmul.f32 %v2519, 1.442695
    %v2525 = vpow.pop %v2524
    %v2526 = vsel %vm601, %v2523, 0.0
    %2527 = vadd.xlane.f32.xlu0 %v2526
    %v2528 = vpop.xlane.xlu0 %2527
    %v2529 = vsel %vm601, %v2525, 0.0
    %2530 = vadd.xlane.f32.xlu0 %v2529
    %v2531 = vpop.xlane.xlu0 %2530
    %v2532 = vrcp.pop %v2528
    %v2533 = vrcp.pop %v2531
    %v2534 = vmul.f32 %v2523, %v2532
    %v2535 = vmul.f32 %v2525, %v2533
    %v2537 = vsel %vm601, %v2534, 0
    %2539 = vmatprep.subr.mxu0 0.0
    %2540 = vmatpush1.msra.mxu0 0.0
    %2541 = vmatprep.subr.mxu0 0.0
    %2542 = vmatpush1.msra.mxu0 0.0
    %2543 = vmatprep.subr.mxu0 0.0
    %2544 = vmatpush1.msra.mxu0 0.0
    %2545 = vmatprep.subr.mxu0 0.0
    %2546 = vmatpush1.msra.mxu0 0.0
    %2547 = vmatprep.subr.mxu0 0.0
    %2548 = vmatpush1.msra.mxu0 0.0
    %2549 = vmatprep.subr.mxu0 0.0
    %2550 = vmatpush1.msra.mxu0 0.0
    %2551 = vmatprep.subr.mxu0 0.0
    %2552 = vmatpush1.msra.mxu0 0.0
    %2553 = vmatprep.subr.mxu0 0.0
    %2554 = vmatpush1.msra.mxu0 0.0
    %2555 = vmatprep.subr.mxu0 0.0
    %2556 = vmatpush1.msra.mxu0 0.0
    %2557 = vmatprep.subr.mxu0 0.0
    %2558 = vmatpush1.msra.mxu0 0.0
    %2559 = vmatprep.subr.mxu0 0.0
    %2560 = vmatpush1.msra.mxu0 0.0
    %2561 = vmatprep.subr.mxu0 0.0
    %2562 = vmatpush1.msra.mxu0 0.0
    %2563 = vmatprep.subr.mxu0 0.0
    %2564 = vmatpush1.msra.mxu0 0.0
    %2565 = vmatprep.subr.mxu0 0.0
    %2566 = vmatpush1.msra.mxu0 0.0
    %2567 = vmatprep.subr.mxu0 0.0
    %2568 = vmatpush1.msra.mxu0 0.0
    %2569 = vmatprep.subr.mxu0 0.0
    %2570 = vmatpush1.msra.mxu0 %v2364
    %2571 = vmatprep.subr.mxu0 0.0
    %2572 = vmatpush2.msra.mxu0 0.0
    %2573 = vmatprep.subr.mxu0 0.0
    %2574 = vmatpush2.msra.mxu0 0.0
    %2575 = vmatprep.subr.mxu0 0.0
    %2576 = vmatpush2.msra.mxu0 0.0
    %2577 = vmatprep.subr.mxu0 0.0
    %2578 = vmatpush2.msra.mxu0 0.0
    %2579 = vmatprep.subr.mxu0 0.0
    %2580 = vmatpush2.msra.mxu0 0.0
    %2581 = vmatprep.subr.mxu0 0.0
    %2582 = vmatpush2.msra.mxu0 0.0
    %2583 = vmatprep.subr.mxu0 0.0
    %2584 = vmatpush2.msra.mxu0 0.0
    %2585 = vmatprep.subr.mxu0 0.0
    %2586 = vmatpush2.msra.mxu0 0.0
    %2587 = vmatprep.subr.mxu0 0.0
    %2588 = vmatpush2.msra.mxu0 0.0
    %2589 = vmatprep.subr.mxu0 0.0
    %2590 = vmatpush2.msra.mxu0 0.0
    %2591 = vmatprep.subr.mxu0 0.0
    %2592 = vmatpush2.msra.mxu0 0.0
    %2593 = vmatprep.subr.mxu0 0.0
    %2594 = vmatpush2.msra.mxu0 0.0
    %2595 = vmatprep.subr.mxu0 0.0
    %2596 = vmatpush2.msra.mxu0 0.0
    %2597 = vmatprep.subr.mxu0 0.0
    %2598 = vmatpush2.msra.mxu0 0.0
    %2599 = vmatprep.subr.mxu0 0.0
    %2600 = vmatpush2.msra.mxu0 0.0
    %2601 = vmatprep.subr.mxu0 0.0
    %2602 = vmatpush2.msra.mxu0 0.0
    %2603 = vmatprep.mubr.f32.mxu0 0.0
    %2604 = vmatmul.mubr.f32.gmra.mxu0 %v2537
    %v2605 = vpop.f32.mrf.mxu0
    %v2606 = vadd.f32 0.0, %v2605
    %v2607 = vpop.f32.mrf.mxu0
    %2608 = vdwg.mxu0
    %v2610 = vsel %vm601, %v2535, 0
    %2612 = vmatprep.subr.mxu0 0.0
    %2613 = vmatpush1.msra.mxu0 0.0
    %2614 = vmatprep.subr.mxu0 0.0
    %2615 = vmatpush1.msra.mxu0 0.0
    %2616 = vmatprep.subr.mxu0 0.0
    %2617 = vmatpush1.msra.mxu0 0.0
    %2618 = vmatprep.subr.mxu0 0.0
    %2619 = vmatpush1.msra.mxu0 0.0
    %2620 = vmatprep.subr.mxu0 0.0
    %2621 = vmatpush1.msra.mxu0 0.0
    %2622 = vmatprep.subr.mxu0 0.0
    %2623 = vmatpush1.msra.mxu0 0.0
    %2624 = vmatprep.subr.mxu0 0.0
    %2625 = vmatpush1.msra.mxu0 0.0
    %2626 = vmatprep.subr.mxu0 0.0
    %2627 = vmatpush1.msra.mxu0 0.0
    %2628 = vmatprep.subr.mxu0 0.0
    %2629 = vmatpush1.msra.mxu0 0.0
    %2630 = vmatprep.subr.mxu0 0.0
    %2631 = vmatpush1.msra.mxu0 0.0
    %2632 = vmatprep.subr.mxu0 0.0
    %2633 = vmatpush1.msra.mxu0 0.0
    %2634 = vmatprep.subr.mxu0 0.0
    %2635 = vmatpush1.msra.mxu0 0.0
    %2636 = vmatprep.subr.mxu0 0.0
    %2637 = vmatpush1.msra.mxu0 0.0
    %2638 = vmatprep.subr.mxu0 0.0
    %2639 = vmatpush1.msra.mxu0 0.0
    %2640 = vmatprep.subr.mxu0 0.0
    %2641 = vmatpush1.msra.mxu0 0.0
    %2642 = vmatprep.subr.mxu0 0.0
    %2643 = vmatpush1.msra.mxu0 %v2367
    %2644 = vmatprep.subr.mxu0 0.0
    %2645 = vmatpush2.msra.mxu0 0.0
    %2646 = vmatprep.subr.mxu0 0.0
    %2647 = vmatpush2.msra.mxu0 0.0
    %2648 = vmatprep.subr.mxu0 0.0
    %2649 = vmatpush2.msra.mxu0 0.0
    %2650 = vmatprep.subr.mxu0 0.0
    %2651 = vmatpush2.msra.mxu0 0.0
    %2652 = vmatprep.subr.mxu0 0.0
    %2653 = vmatpush2.msra.mxu0 0.0
    %2654 = vmatprep.subr.mxu0 0.0
    %2655 = vmatpush2.msra.mxu0 0.0
    %2656 = vmatprep.subr.mxu0 0.0
    %2657 = vmatpush2.msra.mxu0 0.0
    %2658 = vmatprep.subr.mxu0 0.0
    %2659 = vmatpush2.msra.mxu0 0.0
    %2660 = vmatprep.subr.mxu0 0.0
    %2661 = vmatpush2.msra.mxu0 0.0
    %2662 = vmatprep.subr.mxu0 0.0
    %2663 = vmatpush2.msra.mxu0 0.0
    %2664 = vmatprep.subr.mxu0 0.0
    %2665 = vmatpush2.msra.mxu0 0.0
    %2666 = vmatprep.subr.mxu0 0.0
    %2667 = vmatpush2.msra.mxu0 0.0
    %2668 = vmatprep.subr.mxu0 0.0
    %2669 = vmatpush2.msra.mxu0 0.0
    %2670 = vmatprep.subr.mxu0 0.0
    %2671 = vmatpush2.msra.mxu0 0.0
    %2672 = vmatprep.subr.mxu0 0.0
    %2673 = vmatpush2.msra.mxu0 0.0
    %2674 = vmatprep.subr.mxu0 0.0
    %2675 = vmatpush2.msra.mxu0 0.0
    %2676 = vmatprep.mubr.f32.mxu0 0.0
    %2677 = vmatmul.mubr.f32.gmra.mxu0 %v2610
    %v2678 = vpop.f32.mrf.mxu0
    %v2679 = vadd.f32 0.0, %v2678
    %v2680 = vpop.f32.mrf.mxu0
    %2681 = vdwg.mxu0
    %v2682 = vpack.c.bf16 %v2679, %v2606
    %s2683 = scalar_lea.vmem %s4, 24
    %v2684 = vld [vmem:[%s2683] sm:$0xf]
    %v2685 = vld [vmem:[%s2683 + $0x4] sm:$0xf]
    %v2688 = vunpack.c.l.b16 %v2684
    %v2689 = vunpack.c.l.b16 %v2685
    %v2690 = vpack.c.b16 %v2689, %v2688
    %v2693 = vsel %vm444, %v2682, 0
    %2695 = vmatprep.subr.bf16.mxu0 0
    %2696 = vmatpush1.bf16.msra.mxu0 0
    %2697 = vmatprep.subr.bf16.mxu0 0
    %2698 = vmatpush1.bf16.msra.mxu0 0
    %2699 = vmatprep.subr.bf16.mxu0 0
    %2700 = vmatpush1.bf16.msra.mxu0 0
    %2701 = vmatprep.subr.bf16.mxu0 0
    %2702 = vmatpush1.bf16.msra.mxu0 0
    %2703 = vmatprep.subr.bf16.mxu0 0
    %2704 = vmatpush1.bf16.msra.mxu0 0
    %2705 = vmatprep.subr.bf16.mxu0 0
    %2706 = vmatpush1.bf16.msra.mxu0 0
    %2707 = vmatprep.subr.bf16.mxu0 0
    %2708 = vmatpush1.bf16.msra.mxu0 0
    %2709 = vmatprep.subr.bf16.mxu0 0
    %2710 = vmatpush1.bf16.msra.mxu0 %v2690
    %2711 = vmatprep.subr.bf16.mxu0 0
    %2712 = vmatpush2.bf16.msra.mxu0 0
    %2713 = vmatprep.subr.bf16.mxu0 0
    %2714 = vmatpush2.bf16.msra.mxu0 0
    %2715 = vmatprep.subr.bf16.mxu0 0
    %2716 = vmatpush2.bf16.msra.mxu0 0
    %2717 = vmatprep.subr.bf16.mxu0 0
    %2718 = vmatpush2.bf16.msra.mxu0 0
    %2719 = vmatprep.subr.bf16.mxu0 0
    %2720 = vmatpush2.bf16.msra.mxu0 0
    %2721 = vmatprep.subr.bf16.mxu0 0
    %2722 = vmatpush2.bf16.msra.mxu0 0
    %2723 = vmatprep.subr.bf16.mxu0 0
    %2724 = vmatpush2.bf16.msra.mxu0 0
    %2725 = vmatprep.subr.bf16.mxu0 0
    %2726 = vmatpush2.bf16.msra.mxu0 0
    %2727 = vmatprep.mubr.bf16.mxu0 0
    %2728 = vmatmul.mubr.bf16.gmra.mxu0 %v2693
    %v2729 = vpop.f32.mrf.mxu0
    %v2730 = vadd.f32 0.0, %v2729
    %v2731 = vpop.f32.mrf.mxu0
    %v2732 = vpop.f32.mrf.mxu0
    %v2733 = vadd.f32 0.0, %v2732
    %v2734 = vpop.f32.mrf.mxu0
    %2735 = vdwg.mxu0
    %v2738 = vunpack.c.l.b16 %v2170
    %v2739 = vunpack.c.l.b16 %v2171
    %v2740 = vpack.c.b16 %v2739, %v2738
    %v2743 = vsel %vm444, %v2168, 0
    %2745 = vmatprep.subr.bf16.mxu0 0
    %2746 = vmatpush1.bf16.msra.mxu0 0
    %2747 = vmatprep.subr.bf16.mxu0 0
    %2748 = vmatpush1.bf16.msra.mxu0 0
    %2749 = vmatprep.subr.bf16.mxu0 0
    %2750 = vmatpush1.bf16.msra.mxu0 0
    %2751 = vmatprep.subr.bf16.mxu0 0
    %2752 = vmatpush1.bf16.msra.mxu0 0
    %2753 = vmatprep.subr.bf16.mxu0 0
    %2754 = vmatpush1.bf16.msra.mxu0 0
    %2755 = vmatprep.subr.bf16.mxu0 0
    %2756 = vmatpush1.bf16.msra.mxu0 0
    %2757 = vmatprep.subr.bf16.mxu0 0
    %2758 = vmatpush1.bf16.msra.mxu0 0
    %2759 = vmatprep.subr.bf16.mxu0 0
    %2760 = vmatpush1.bf16.msra.mxu0 %v2740
    %2761 = vmatprep.subr.bf16.mxu0 0
    %2762 = vmatpush2.bf16.msra.mxu0 0
    %2763 = vmatprep.subr.bf16.mxu0 0
    %2764 = vmatpush2.bf16.msra.mxu0 0
    %2765 = vmatprep.subr.bf16.mxu0 0
    %2766 = vmatpush2.bf16.msra.mxu0 0
    %2767 = vmatprep.subr.bf16.mxu0 0
    %2768 = vmatpush2.bf16.msra.mxu0 0
    %2769 = vmatprep.subr.bf16.mxu0 0
    %2770 = vmatpush2.bf16.msra.mxu0 0
    %2771 = vmatprep.subr.bf16.mxu0 0
    %2772 = vmatpush2.bf16.msra.mxu0 0
    %2773 = vmatprep.subr.bf16.mxu0 0
    %2774 = vmatpush2.bf16.msra.mxu0 0
    %2775 = vmatprep.subr.bf16.mxu0 0
    %2776 = vmatpush2.bf16.msra.mxu0 0
    %2777 = vmatprep.mubr.bf16.mxu0 0
    %2778 = vmatmul.mubr.bf16.gmra.mxu0 %v2743
    %v2779 = vpop.f32.mrf.mxu0
    %v2780 = vadd.f32 %v2730, %v2779
    %v2781 = vpop.f32.mrf.mxu0
    %v2782 = vpop.f32.mrf.mxu0
    %v2783 = vadd.f32 %v2733, %v2782
    %v2784 = vpop.f32.mrf.mxu0
    %2785 = vdwg.mxu0
    %s2786 = scalar_lea.vmem %s8, 19
    %v2787 = vld [vmem:[%s2786] sm:$0x1]
    %v2789 = vlaneseq
    %v2790 = vshrl.u32 %v2789, 7
    %v2791 = vsub.s32 0, %v2790
    %v2792 = vrot.slane %v2787, %v2791
    %v2794 = vadd.f32 %v2780, %v2792
    %v2795 = vadd.f32 %v2783, %v2792
    %v2796 = vadd.f32 %v1652, %v2794
    %v2797 = vadd.f32 %v1653, %v2795
    %s2798 = scalar_lea.vmem %s8, 20
    %v2799 = vld [vmem:[%s2798] sm:$0x1]
    %s2800 = scalar_lea.vmem %s8, 21
    %v2801 = vld [vmem:[%s2800] sm:$0x1]
    %v2802 = vsel %vm164, %v2796, 0.0
    %2803 = vadd.xlane.f32.xlu0 %v2802
    %v2804 = vpop.xlane.xlu0 %2803
    %v2805 = vsel %vm164, %v2797, 0.0
    %2806 = vadd.xlane.f32.xlu0 %v2805
    %v2807 = vpop.xlane.xlu0 %2806
    %v2808 = vmul.f32 %v2804, %v171
    %v2809 = vmul.f32 %v2807, %v171
    %v2810 = vsub.f32 %v2796, %v2808
    %v2811 = vsub.f32 %v2797, %v2809
    %v2812 = vmul.f32 %v2810, %v2810
    %v2813 = vmul.f32 %v2811, %v2811
    %v2814 = vsel %vm164, %v2812, 0.0
    %2815 = vadd.xlane.f32.xlu0 %v2814
    %v2816 = vpop.xlane.xlu0 %2815
    %v2817 = vsel %vm164, %v2813, 0.0
    %2818 = vadd.xlane.f32.xlu0 %v2817
    %v2819 = vpop.xlane.xlu0 %2818
    %v2820 = vmul.f32 %v2816, %v171
    %v2821 = vmul.f32 %v2819, %v171
    %v2822 = vadd.f32 %v2820, 1e-12
    %v2823 = vadd.f32 %v2821, 1e-12
    %v2824 = vrsqrt.pop %v2822
    %v2825 = vrsqrt.pop %v2823
    %v2826 = vmul.f32 %v2810, %v2824
    %v2827 = vmul.f32 %v2811, %v2825
    %v2829 = vlaneseq
    %v2830 = vshrl.u32 %v2829, 7
    %v2831 = vsub.s32 0, %v2830
    %v2832 = vrot.slane %v2799, %v2831
    %v2834 = vmul.f32 %v2826, %v2832
    %v2835 = vmul.f32 %v2827, %v2832
    %v2837 = vlaneseq
    %v2838 = vshrl.u32 %v2837, 7
    %v2839 = vsub.s32 0, %v2838
    %v2840 = vrot.slane %v2801, %v2839
    %v2842 = vadd.f32 %v2834, %v2840
    %v2843 = vadd.f32 %v2835, %v2840
    %v2844 = vpack.c.bf16 %v2843, %v2842
    %s2845 = scalar_lea.vmem %s5, 16
    %v2846 = vld [vmem:[%s2845] sm:$0xf]
    %v2847 = vld [vmem:[%s2845 + $0x4] sm:$0xf]
    %v2848 = vld [vmem:[%s2845 + $0x8] sm:$0xf]
    %v2849 = vld [vmem:[%s2845 + $0xc] sm:$0xf]
    %s2850 = scalar_lea.vmem %s8, 22
    %v2851 = vld [vmem:[%s2850] sm:$0x1]
    %v2853 = vlaneseq
    %v2854 = vshrl.u32 %v2853, 7
    %v2855 = vsub.s32 0, %v2854
    %v2856 = vrot.slane %v2851, %v2855
    %v2862 = vunpack.c.l.b16 %v2846
    %v2863 = vunpack.c.l.b16 %v2847
    %v2864 = vunpack.c.l.b16 %v2848
    %v2865 = vunpack.c.l.b16 %v2849
    %v2866 = vpack.c.b16 %v2863, %v2862
    %v2867 = vpack.c.b16 %v2865, %v2864
    %v2871 = vsel %vm164, %v2844, 0
    %2873 = vmatprep.subr.bf16.mxu0 0
    %2874 = vmatpush1.bf16.msra.mxu0 0
    %2875 = vmatprep.subr.bf16.mxu0 0
    %2876 = vmatpush1.bf16.msra.mxu0 0
    %2877 = vmatprep.subr.bf16.mxu0 0
    %2878 = vmatpush1.bf16.msra.mxu0 0
    %2879 = vmatprep.subr.bf16.mxu0 0
    %2880 = vmatpush1.bf16.msra.mxu0 0
    %2881 = vmatprep.subr.bf16.mxu0 0
    %2882 = vmatpush1.bf16.msra.mxu0 0
    %2883 = vmatprep.subr.bf16.mxu0 0
    %2884 = vmatpush1.bf16.msra.mxu0 0
    %2885 = vmatprep.subr.bf16.mxu0 0
    %2886 = vmatpush1.bf16.msra.mxu0 %v2867
    %2887 = vmatprep.subr.bf16.mxu0 0
    %2888 = vmatpush1.bf16.msra.mxu0 %v2866
    %2889 = vmatprep.subr.bf16.mxu0 0
    %2890 = vmatpush2.bf16.msra.mxu0 0
    %2891 = vmatprep.subr.bf16.mxu0 0
    %2892 = vmatpush2.bf16.msra.mxu0 0
    %2893 = vmatprep.subr.bf16.mxu0 0
    %2894 = vmatpush2.bf16.msra.mxu0 0
    %2895 = vmatprep.subr.bf16.mxu0 0
    %2896 = vmatpush2.bf16.msra.mxu0 0
    %2897 = vmatprep.subr.bf16.mxu0 0
    %2898 = vmatpush2.bf16.msra.mxu0 0
    %2899 = vmatprep.subr.bf16.mxu0 0
    %2900 = vmatpush2.bf16.msra.mxu0 0
    %2901 = vmatprep.subr.bf16.mxu0 0
    %2902 = vmatpush2.bf16.msra.mxu0 0
    %2903 = vmatprep.subr.bf16.mxu0 0
    %2904 = vmatpush2.bf16.msra.mxu0 0
    %2905 = vmatprep.mubr.bf16.mxu0 0
    %2906 = vmatmul.mubr.bf16.gmra.mxu0 %v2871
    %v2907 = vpop.f32.mrf.mxu0
    %v2908 = vadd.f32 %v2856, %v2907
    %v2909 = vpop.f32.mrf.mxu0
    %v2910 = vpop.f32.mrf.mxu0
    %v2911 = vadd.f32 %v2856, %v2910
    %v2912 = vpop.f32.mrf.mxu0
    %2913 = vdwg.mxu0
    %v2914 = vmul.f32 %v2908, 0.5
    %v2915 = vmul.f32 %v2911, 0.5
    %v2916 = vmul.f32 %v2908, 0.044715
    %v2917 = vmul.f32 %v2911, 0.044715
    %v2918 = vmul.f32 %v2916, %v2908
    %v2919 = vmul.f32 %v2917, %v2911
    %v2920 = vmul.f32 %v2918, %v2908
    %v2921 = vmul.f32 %v2919, %v2911
    %v2922 = vadd.f32 %v2908, %v2920
    %v2923 = vadd.f32 %v2911, %v2921
    %v2924 = vmul.f32 %v2922, 0.7978846
    %v2925 = vmul.f32 %v2923, 0.7978846
    %v2926 = vtanh.pop %v2924
    %v2927 = vtanh.pop %v2925
    %v2928 = vadd.f32 %v2926, 1.0
    %v2929 = vadd.f32 %v2927, 1.0
    %v2930 = vmul.f32 %v2914, %v2928
    %v2931 = vmul.f32 %v2915, %v2929
    %v2932 = vpack.c.bf16 %v2931, %v2930
    %s2933 = scalar_lea.vmem %s6, 32
    %v2934 = vld [vmem:[%s2933] sm:$0xf]
    %v2935 = vld [vmem:[%s2933 + $0x4] sm:$0xf]
    %v2936 = vld [vmem:[%s2933 + $0x8] sm:$0xf]
    %v2937 = vld [vmem:[%s2933 + $0xc] sm:$0xf]
    %v2938 = vld [vmem:[%s2933 + $0x10] sm:$0xf]
    %v2939 = vld [vmem:[%s2933 + $0x14] sm:$0xf]
    %v2940 = vld [vmem:[%s2933 + $0x18] sm:$0xf]
    %v2941 = vld [vmem:[%s2933 + $0x1c] sm:$0xf]
    %s2942 = scalar_lea.vmem %s8, 23
    %v2943 = vld [vmem:[%s2942] sm:$0x1]
    %v2945 = vlaneseq
    %v2946 = vshrl.u32 %v2945, 7
    %v2947 = vsub.s32 0, %v2946
    %v2948 = vrot.slane %v2943, %v2947
    %v2958 = vunpack.c.l.b16 %v2934
    %v2959 = vunpack.c.l.b16 %v2935
    %v2960 = vunpack.c.l.b16 %v2936
    %v2961 = vunpack.c.l.b16 %v2937
    %v2962 = vunpack.c.l.b16 %v2938
    %v2963 = vunpack.c.l.b16 %v2939
    %v2964 = vunpack.c.l.b16 %v2940
    %v2965 = vunpack.c.l.b16 %v2941
    %v2966 = vpack.c.b16 %v2959, %v2958
    %v2967 = vpack.c.b16 %v2961, %v2960
    %v2968 = vpack.c.b16 %v2963, %v2962
    %v2969 = vpack.c.b16 %v2965, %v2964
    %v2975 = vsel %vm1561, %v2932, 0
    %2977 = vmatprep.subr.bf16.mxu0 0
    %2978 = vmatpush1.bf16.msra.mxu0 0
    %2979 = vmatprep.subr.bf16.mxu0 0
    %2980 = vmatpush1.bf16.msra.mxu0 0
    %2981 = vmatprep.subr.bf16.mxu0 0
    %2982 = vmatpush1.bf16.msra.mxu0 0
    %2983 = vmatprep.subr.bf16.mxu0 0
    %2984 = vmatpush1.bf16.msra.mxu0 0
    %2985 = vmatprep.subr.bf16.mxu0 0
    %2986 = vmatpush1.bf16.msra.mxu0 %v2969
    %2987 = vmatprep.subr.bf16.mxu0 0
    %2988 = vmatpush1.bf16.msra.mxu0 %v2968
    %2989 = vmatprep.subr.bf16.mxu0 0
    %2990 = vmatpush1.bf16.msra.mxu0 %v2967
    %2991 = vmatprep.subr.bf16.mxu0 0
    %2992 = vmatpush1.bf16.msra.mxu0 %v2966
    %2993 = vmatprep.subr.bf16.mxu0 0
    %2994 = vmatpush2.bf16.msra.mxu0 0
    %2995 = vmatprep.subr.bf16.mxu0 0
    %2996 = vmatpush2.bf16.msra.mxu0 0
    %2997 = vmatprep.subr.bf16.mxu0 0
    %2998 = vmatpush2.bf16.msra.mxu0 0
    %2999 = vmatprep.subr.bf16.mxu0 0
    %3000 = vmatpush2.bf16.msra.mxu0 0
    %3001 = vmatprep.subr.bf16.mxu0 0
    %3002 = vmatpush2.bf16.msra.mxu0 0
    %3003 = vmatprep.subr.bf16.mxu0 0
    %3004 = vmatpush2.bf16.msra.mxu0 0
    %3005 = vmatprep.subr.bf16.mxu0 0
    %3006 = vmatpush2.bf16.msra.mxu0 0
    %3007 = vmatprep.subr.bf16.mxu0 0
    %3008 = vmatpush2.bf16.msra.mxu0 0
    %3009 = vmatprep.mubr.bf16.mxu0 0
    %3010 = vmatmul.mubr.bf16.gmra.mxu0 %v2975
    %v3011 = vpop.f32.mrf.mxu0
    %v3012 = vadd.f32 %v2948, %v3011
    %v3013 = vpop.f32.mrf.mxu0
    %v3014 = vpop.f32.mrf.mxu0
    %v3015 = vadd.f32 %v2948, %v3014
    %v3016 = vpop.f32.mrf.mxu0
    %3017 = vdwg.mxu0
    %v3018 = vadd.f32 %v2842, %v3012
    %v3019 = vadd.f32 %v2843, %v3015
    %s3020 = scalar_lea.vmem %s8, 24
    %v3021 = vld [vmem:[%s3020] sm:$0x1]
    %s3022 = scalar_lea.vmem %s8, 25
    %v3023 = vld [vmem:[%s3022] sm:$0x1]
    %v3024 = vsel %vm164, %v3018, 0.0
    %3025 = vadd.xlane.f32.xlu0 %v3024
    %v3026 = vpop.xlane.xlu0 %3025
    %v3027 = vsel %vm164, %v3019, 0.0
    %3028 = vadd.xlane.f32.xlu0 %v3027
    %v3029 = vpop.xlane.xlu0 %3028
    %v3030 = vmul.f32 %v3026, %v171
    %v3031 = vmul.f32 %v3029, %v171
    %v3032 = vsub.f32 %v3018, %v3030
    %v3033 = vsub.f32 %v3019, %v3031
    %v3034 = vmul.f32 %v3032, %v3032
    %v3035 = vmul.f32 %v3033, %v3033
    %v3036 = vsel %vm164, %v3034, 0.0
    %3037 = vadd.xlane.f32.xlu0 %v3036
    %v3038 = vpop.xlane.xlu0 %3037
    %v3039 = vsel %vm164, %v3035, 0.0
    %3040 = vadd.xlane.f32.xlu0 %v3039
    %v3041 = vpop.xlane.xlu0 %3040
    %v3042 = vmul.f32 %v3038, %v171
    %v3043 = vmul.f32 %v3041, %v171
    %v3044 = vadd.f32 %v3042, 1e-12
    %v3045 = vadd.f32 %v3043, 1e-12
    %v3046 = vrsqrt.pop %v3044
    %v3047 = vrsqrt.pop %v3045
    %v3048 = vmul.f32 %v3032, %v3046
    %v3049 = vmul.f32 %v3033, %v3047
    %v3051 = vlaneseq
    %v3052 = vshrl.u32 %v3051, 7
    %v3053 = vsub.s32 0, %v3052
    %v3054 = vrot.slane %v3021, %v3053
    %v3056 = vmul.f32 %v3048, %v3054
    %v3057 = vmul.f32 %v3049, %v3054
    %v3059 = vlaneseq
    %v3060 = vshrl.u32 %v3059, 7
    %v3061 = vsub.s32 0, %v3060
    %v3062 = vrot.slane %v3023, %v3061
    %v3064 = vadd.f32 %v3056, %v3062
    %v3065 = vadd.f32 %v3057, %v3062
    %v3066 = vpack.c.bf16 %v3064, %v3064
    %v3067 = vpack.c.bf16 %v3065, %v3065
    %v3068 = vld [vmem:[%s7] sm:$0xf]
    %v3069 = vld [vmem:[%s7 + $0x4] sm:$0xf]
    %v3070 = vld [vmem:[%s7 + $0x8] sm:$0xf]
    %v3071 = vld [vmem:[%s7 + $0xc] sm:$0xf]
    %s3072 = scalar_lea.vmem %s8, 28
    %v3073 = vld [vmem:[%s3072] sm:$0x1]
    %v3075 = vlaneseq
    %v3076 = vshrl.u32 %v3075, 7
    %v3077 = vsub.s32 0, %v3076
    %v3078 = vrot.slane %v3073, %v3077
    %v3082 = vunpack.c.l.b16 %v3066
    %v3083 = vunpack.c.l.b16 %v3067
    %v3084 = vrot.slane %v3083, 7
    %vm3085 = vcmask 1041409
    %v3086 = vsel %vm3085, %v3084, %v3082
    %v3087 = vpack.c.b16 %v3086, %v3086
    %v3092 = vunpack.c.l.b16 %v3068
    %v3093 = vunpack.c.l.b16 %v3069
    %v3094 = vunpack.c.l.b16 %v3070
    %v3095 = vunpack.c.l.b16 %v3071
    %v3096 = vpack.c.b16 %v3093, %v3092
    %v3097 = vpack.c.b16 %v3095, %v3094
    %v3101 = vsel %vm164, %v3087, 0
    %3103 = vmatprep.subr.bf16.mxu0 0
    %3104 = vmatpush1.bf16.msra.mxu0 0
    %3105 = vmatprep.subr.bf16.mxu0 0
    %3106 = vmatpush1.bf16.msra.mxu0 0
    %3107 = vmatprep.subr.bf16.mxu0 0
    %3108 = vmatpush1.bf16.msra.mxu0 0
    %3109 = vmatprep.subr.bf16.mxu0 0
    %3110 = vmatpush1.bf16.msra.mxu0 0
    %3111 = vmatprep.subr.bf16.mxu0 0
    %3112 = vmatpush1.bf16.msra.mxu0 0
    %3113 = vmatprep.subr.bf16.mxu0 0
    %3114 = vmatpush1.bf16.msra.mxu0 0
    %3115 = vmatprep.subr.bf16.mxu0 0
    %3116 = vmatpush1.bf16.msra.mxu0 %v3097
    %3117 = vmatprep.subr.bf16.mxu0 0
    %3118 = vmatpush1.bf16.msra.mxu0 %v3096
    %3119 = vmatprep.subr.bf16.mxu0 0
    %3120 = vmatpush2.bf16.msra.mxu0 0
    %3121 = vmatprep.subr.bf16.mxu0 0
    %3122 = vmatpush2.bf16.msra.mxu0 0
    %3123 = vmatprep.subr.bf16.mxu0 0
    %3124 = vmatpush2.bf16.msra.mxu0 0
    %3125 = vmatprep.subr.bf16.mxu0 0
    %3126 = vmatpush2.bf16.msra.mxu0 0
    %3127 = vmatprep.subr.bf16.mxu0 0
    %3128 = vmatpush2.bf16.msra.mxu0 0
    %3129 = vmatprep.subr.bf16.mxu0 0
    %3130 = vmatpush2.bf16.msra.mxu0 0
    %3131 = vmatprep.subr.bf16.mxu0 0
    %3132 = vmatpush2.bf16.msra.mxu0 0
    %3133 = vmatprep.subr.bf16.mxu0 0
    %3134 = vmatpush2.bf16.msra.mxu0 0
    %3135 = vmatprep.mubr.bf16.mxu0 0
    %3136 = vmatmul.mubr.bf16.gmra.mxu0 %v3101
    %v3137 = vpop.f32.mrf.mxu0
    %v3138 = vadd.f32 %v3078, %v3137
    %v3139 = vpop.f32.mrf.mxu0
    %v3140 = vpop.f32.mrf.mxu0
    %v3141 = vpop.f32.mrf.mxu0
    %3142 = vdwg.mxu0
    %v3143 = vtanh.pop %v3138
    %v3144 = vpack.c.bf16 %v3143, %v3143
    %s3145 = scalar_lea.vmem %s7, 16
    %v3146 = vld [vmem:[%s3145] sm:$0xf]
    %v3147 = vld [vmem:[%s3145 + $0x4] sm:$0xf]
    %v3148 = vld [vmem:[%s3145 + $0x8] sm:$0xf]
    %v3149 = vld [vmem:[%s3145 + $0xc] sm:$0xf]
    %s3150 = scalar_lea.vmem %s8, 29
    %v3151 = vld [vmem:[%s3150] sm:$0x1]
    %v3153 = vlaneseq
    %v3154 = vshrl.u32 %v3153, 7
    %v3155 = vsub.s32 0, %v3154
    %v3156 = vrot.slane %v3151, %v3155
    %v3162 = vunpack.c.l.b16 %v3146
    %v3163 = vunpack.c.l.b16 %v3147
    %v3164 = vunpack.c.l.b16 %v3148
    %v3165 = vunpack.c.l.b16 %v3149
    %v3166 = vpack.c.b16 %v3163, %v3162
    %v3167 = vpack.c.b16 %v3165, %v3164
    %v3171 = vsel %vm164, %v3144, 0
    %3173 = vmatprep.subr.bf16.mxu0 0
    %3174 = vmatpush1.bf16.msra.mxu0 0
    %3175 = vmatprep.subr.bf16.mxu0 0
    %3176 = vmatpush1.bf16.msra.mxu0 0
    %3177 = vmatprep.subr.bf16.mxu0 0
    %3178 = vmatpush1.bf16.msra.mxu0 0
    %3179 = vmatprep.subr.bf16.mxu0 0
    %3180 = vmatpush1.bf16.msra.mxu0 0
    %3181 = vmatprep.subr.bf16.mxu0 0
    %3182 = vmatpush1.bf16.msra.mxu0 0
    %3183 = vmatprep.subr.bf16.mxu0 0
    %3184 = vmatpush1.bf16.msra.mxu0 0
    %3185 = vmatprep.subr.bf16.mxu0 0
    %3186 = vmatpush1.bf16.msra.mxu0 %v3167
    %3187 = vmatprep.subr.bf16.mxu0 0
    %3188 = vmatpush1.bf16.msra.mxu0 %v3166
    %3189 = vmatprep.subr.bf16.mxu0 0
    %3190 = vmatpush2.bf16.msra.mxu0 0
    %3191 = vmatprep.subr.bf16.mxu0 0
    %3192 = vmatpush2.bf16.msra.mxu0 0
    %3193 = vmatprep.subr.bf16.mxu0 0
    %3194 = vmatpush2.bf16.msra.mxu0 0
    %3195 = vmatprep.subr.bf16.mxu0 0
    %3196 = vmatpush2.bf16.msra.mxu0 0
    %3197 = vmatprep.subr.bf16.mxu0 0
    %3198 = vmatpush2.bf16.msra.mxu0 0
    %3199 = vmatprep.subr.bf16.mxu0 0
    %3200 = vmatpush2.bf16.msra.mxu0 0
    %3201 = vmatprep.subr.bf16.mxu0 0
    %3202 = vmatpush2.bf16.msra.mxu0 0
    %3203 = vmatprep.subr.bf16.mxu0 0
    %3204 = vmatpush2.bf16.msra.mxu0 0
    %3205 = vmatprep.mubr.bf16.mxu0 0
    %3206 = vmatmul.mubr.bf16.gmra.mxu0 %v3171
    %v3207 = vpop.f32.mrf.mxu0
    %v3208 = vadd.f32 %v3156, %v3207
    %v3209 = vpop.f32.mrf.mxu0
    %v3210 = vpop.f32.mrf.mxu0
    %v3211 = vpop.f32.mrf.mxu0
    %3212 = vdwg.mxu0
    %vm3213 = vcmask 9216
    %3214 = vst.msk [vmem:[#allocation2] sm:$0x3] %vm3213, %v3208
    // Predicated region
    $region38: #{forward.1} parent=1 // pred_check
      _
    $region39: #{forward.1} parent=1 // pred_check_branch
      %3216 = sbr.rel (0) target = $region41
    $region40: #{forward.1} parent=1 // pred_region
      %s3218 = ssub.s32 32, 32
      %3219 = vsyncadd [#allocation3], %s3218
      %s3221 = sshll.u32 [#allocation2], 4
      %s3222 = int_to_ptr.vmem [resolvable:$true] %s3221
      %3224 = dma.vmem_to_hbm [thread:$0]  %s3222, 32, %s9, [#allocation3]
    $region41: #{forward.1} parent=1 // pred_fallthru
      _
    // Predicated region
    $region42: #{forward.1} parent=1 // pred_check
      _
    $region43: #{forward.1} parent=1 // pred_check_branch
      %3226 = sbr.rel (0) target = $region45
    $region44: #{forward.1} parent=1 // pred_region
      %3227 = dma.done [#allocation3], 32
    $region45: #{forward.1} parent=1 // pred_fallthru
      _
    %3228 = vsyncpa [#allocation3], 1

</llo_original>
